<compile_context>
chip_gen: v7x
topology: tpu7x:2x2x1
jax: 0.10.0
libtpu: 0.0.40
codegen_flags: <defaults>
</compile_context>

<pallas_src>
import functools

import jax
import jax.numpy as jnp
from jax.experimental import pallas as pl
from jax.experimental.pallas import tpu as pltpu

NEG_BIG = -1e9  # safe: self-loops guarantee >=1 valid edge per destination row


# ---------------------------------------------------------------------------
# Generation-aware knobs
# ---------------------------------------------------------------------------

def _tpu_kind():
    try:
        return jax.devices()[0].device_kind.lower()
    except Exception:  # pragma: no cover
        return ""


_KIND = _tpu_kind()
_IS_V7 = ("v7" in _KIND) or ("7x" in _KIND)
_HAS_BF16_VPU = _IS_V7 or ("v6" in _KIND)
# bf16 softmax elementwise chain only where the VPU/EUP have bf16 paths.
_SOFTMAX_DTYPE = jnp.bfloat16 if _HAS_BF16_VPU else jnp.float32
# v7x has 64 MiB physical VMEM -> keep the scoped budget at 32 MiB there.
_VMEM_LIMIT = (32 if _IS_V7 else 64) * 1024 * 1024

_COMPILER_PARAMS = pltpu.CompilerParams(
    dimension_semantics=("parallel",),          # split row/graph tiles across TCs
    vmem_limit_bytes=_VMEM_LIMIT,
)
_VMEM = pl.BlockSpec(memory_space=pltpu.MemorySpace.VMEM)


# ---------------------------------------------------------------------------
# Pallas kernels
# ---------------------------------------------------------------------------

def gat_project_kernel(x_ref, wext_ref, h_ref, alpha_ref, *, hf):
    """Single MXU matmul: x @ [W | W@a_src | W@a_dst] -> h and per-head logits."""
    xb = x_ref[...].astype(jnp.bfloat16)                                 # [T, Fin]
    hw = jnp.dot(xb, wext_ref[...], preferred_element_type=jnp.float32)  # [T, hf+2H]
    h_ref[...] = hw[:, :hf].astype(jnp.bfloat16)                         # node features
    alpha_ref[...] = hw[:, hf:]                                          # [T, 2H] f32


def gat_attention_kernel(adst_ref, asrcT_ref, h_ref, mask_ref, bias_ref, o_ref,
                         *, heads, compute_dtype):
    """Per-graph-block masked softmax attention + aggregation + bias + ReLU."""
    cdt = compute_dtype
    mask = mask_ref[...].astype(cdt)              # [T, S]  (S = graph block = T)
    a_dst = adst_ref[...].astype(cdt)             # [T, H]
    a_srcT = asrcT_ref[...].astype(cdt)           # [H, S]
    outs = []
    for hd in range(heads):  # static unroll: one head's [T, S] temporaries live at a time
        logits = a_dst[:, hd:hd + 1] + a_srcT[hd:hd + 1, :]              # [T, S]
        e = jnp.maximum(logits, 0.2 * logits) + mask                     # LeakyReLU + mask
        e = e - jnp.max(e, axis=-1, keepdims=True)                       # safe softmax shift
        p = jnp.exp(e)                                                   # cdt (bf16 on v6e/v7x)
        l = jnp.sum(p.astype(jnp.float32), axis=-1, keepdims=True)       # f32 row-sum
        inv = pl.reciprocal(l, approx=True).astype(cdt)                  # EUP reciprocal
        attn = (p * inv).astype(jnp.bfloat16)                            # MXU LHS
        outs.append(jnp.dot(attn, h_ref[hd],                             # head-major RHS
                            preferred_element_type=jnp.float32))         # [T, Fh]
    # TODO(synk): attention-coefficient dropout omitted (module is in eval mode).
    out = jnp.concatenate(outs, axis=-1) + bias_ref[...]                 # [T, H*Fh] f32
    o_ref[...] = jnp.maximum(out, 0.0).astype(o_ref.dtype)               # fused ReLU


def pool_classifier_kernel(x_ref, pool_ref, w1_ref, b1_ref, w2_ref, b2_ref,
                           w3_ref, b3_ref, o_ref):
    """global_mean_pool (matmul with pool matrix) + 3-layer MLP classifier."""
    g = jnp.dot(pool_ref[...], x_ref[...],
                preferred_element_type=jnp.float32)                      # [G, H*Fh]
    h1 = jnp.maximum(
        jnp.dot(g, w1_ref[...], preferred_element_type=jnp.float32) + b1_ref[...], 0.0)
    h2 = jnp.maximum(
        jnp.dot(h1, w2_ref[...], preferred_element_type=jnp.float32) + b2_ref[...], 0.0)
    o_ref[...] = (jnp.dot(h2, w3_ref[...], preferred_element_type=jnp.float32)
                  + b3_ref[...])


# ---------------------------------------------------------------------------
# Wrappers (glue)
# ---------------------------------------------------------------------------

def gat_layer(x, mask_bias, params, *, heads, fh, graph_size):
    """One GATConv layer (dense per-graph blocks) fused with the trailing ReLU."""
    n, fin = x.shape
    hf = heads * fh
    tile = graph_size
    assert n % tile == 0 and tile % 8 == 0, (n, tile)
    grid = (n // tile,)

    # --- projection: one x @ W_ext matmul -> h, [alpha_src | alpha_dst] -------
    h, alpha = pl.pallas_call(
        functools.partial(gat_project_kernel, hf=hf),
        grid=grid,
        in_specs=[
            pl.BlockSpec((tile, fin), lambda i: (i, 0)),             # x row tile
            pl.BlockSpec((fin, hf + 2 * heads), lambda i: (0, 0)),   # W_ext (invariant)
        ],
        out_specs=(
            pl.BlockSpec((tile, hf), lambda i: (i, 0)),              # h
            pl.BlockSpec((tile, 2 * heads), lambda i: (i, 0)),       # merged alphas
        ),
        out_shape=(
            jax.ShapeDtypeStruct((n, hf), jnp.bfloat16),
            jax.ShapeDtypeStruct((n, 2 * heads), jnp.float32),
        ),
        compiler_params=_COMPILER_PARAMS,
    )(x, params["w_ext"])

    # Tiny XLA layout plumbing (done once per layer, outside the hot kernel):
    a_srcT = alpha[:, :heads].T                           # [H, N] sources on lanes
    a_dst = alpha[:, heads:]                              # [N, H]
    h_hm = h.reshape(n, heads, fh).transpose(1, 0, 2)     # [H, N, Fh] head-major

    # --- attention + aggregation, gridded over graph blocks -------------------
    out = pl.pallas_call(
        functools.partial(gat_attention_kernel, heads=heads,
                          compute_dtype=_SOFTMAX_DTYPE),
        grid=grid,
        in_specs=[
            pl.BlockSpec((tile, heads), lambda i: (i, 0)),           # a_dst (dst rows)
            pl.BlockSpec((heads, tile), lambda i: (0, i)),           # a_srcT (graph's sources)
            pl.BlockSpec((heads, tile, fh), lambda i: (0, i, 0)),    # h (graph's sources)
            pl.BlockSpec((tile, tile), lambda i: (i, i)),            # mask diagonal block
            pl.BlockSpec((1, hf), lambda i: (0, 0)),                 # bias (invariant)
        ],
        out_specs=pl.BlockSpec((tile, hf), lambda i: (i, 0)),        # lane-dense output
        out_shape=jax.ShapeDtypeStruct((n, hf), jnp.bfloat16),
        compiler_params=_COMPILER_PARAMS,
    )(a_dst, a_srcT, h_hm, mask_bias, params["bias"])
    return out


def pool_and_classify(x, pool_mat, cls):
    g = pool_mat.shape[0]
    out_ch = cls["w3"].shape[1]
    return pl.pallas_call(
        pool_classifier_kernel,
        out_shape=jax.ShapeDtypeStruct((g, out_ch), jnp.float32),
        in_specs=[_VMEM] * 8,
        out_specs=_VMEM,
    )(x, pool_mat, cls["w1"], cls["b1"], cls["w2"], cls["b2"],
      cls["w3"], cls["b3"])


def simple_gat_forward(x, mask_bias, pool_mat, gat_params, cls_params, *,
                       heads, fh, graph_size):
    # TODO(synk): genuinely sparse / unequal-size graphs need an edge-list segment
    # formulation with scalar-prefetched neighbor offsets; here graphs are
    # contiguous equal-size node blocks (PyG batching has no cross-graph edges).
    for p in gat_params:
        x = gat_layer(x, mask_bias, p, heads=heads, fh=fh, graph_size=graph_size)
    return pool_and_classify(x, pool_mat, cls_params)


# ---------------------------------------------------------------------------
# Deterministic parameter / input construction
# ---------------------------------------------------------------------------

def att_to_matrix(att, heads, fh):
    """[H, Fh] attention vectors -> block matrix [H*Fh, H] so alpha = h @ M."""
    eye = jnp.eye(heads, dtype=att.dtype)                   # [H, H]
    return (att[:, :, None] * eye[:, None, :]).reshape(heads * fh, heads)


def init_gat_params(key, in_ch, dim_h, heads):
    k1, k2, k3 = jax.random.split(key, 3)
    scale = 1.0 / jnp.sqrt(jnp.float32(in_ch))
    w = jax.random.normal(k1, (in_ch, heads * dim_h), jnp.float32) * scale
    att_src = jax.random.normal(k2, (heads, dim_h), jnp.float32) * 0.1
    att_dst = jax.random.normal(k3, (heads, dim_h), jnp.float32) * 0.1
    a_src_mat = att_to_matrix(att_src, heads, dim_h)        # [H*Fh, H]
    a_dst_mat = att_to_matrix(att_dst, heads, dim_h)
    # Fold attention projections into the weight: x @ W_ext gives h and both alphas.
    w_ext = jnp.concatenate([w, w @ a_src_mat, w @ a_dst_mat], axis=1)
    return {
        "w_ext": w_ext.astype(jnp.bfloat16),                # [Fin, H*Fh + 2H] bf16 MXU operand
        "bias": jnp.zeros((1, heads * dim_h), jnp.float32),
    }


def init_classifier_params(key, in_dim, dim_h, out_ch):
    k1, k2, k3 = jax.random.split(key, 3)
    w1 = jax.random.normal(k1, (in_dim, dim_h), jnp.float32) / jnp.sqrt(
        jnp.float32(in_dim))
    w2 = jax.random.normal(k2, (dim_h, dim_h // 2), jnp.float32) / jnp.sqrt(
        jnp.float32(dim_h))
    w3 = jax.random.normal(k3, (dim_h // 2, out_ch), jnp.float32) / jnp.sqrt(
        jnp.float32(dim_h // 2))
    return {
        "w1": w1, "b1": jnp.zeros((1, dim_h), jnp.float32),
        "w2": w2, "b2": jnp.zeros((1, dim_h // 2), jnp.float32),
        "w3": w3, "b3": jnp.zeros((1, out_ch), jnp.float32),
    }


def build_mask_bias(edge_index, num_nodes):
    """Additive mask [N_dst, N_src]: 0 for edges (incl. self-loops), NEG_BIG otherwise."""
    src, dst = edge_index
    adj = jnp.zeros((num_nodes, num_nodes), jnp.float32)
    adj = adj.at[dst, src].set(1.0)
    adj = adj + jnp.eye(num_nodes, dtype=jnp.float32)       # PyG default self-loops
    return jnp.where(adj > 0, 0.0, NEG_BIG).astype(jnp.bfloat16)


def build_pool_matrix(batch, num_graphs):
    """[G, N] matrix: P @ x == global_mean_pool(x, batch)."""
    one_hot = (batch[None, :] == jnp.arange(num_graphs)[:, None]).astype(jnp.float32)
    counts = jnp.maximum(one_hot.sum(axis=1, keepdims=True), 1.0)
    return (one_hot / counts).astype(jnp.bfloat16)


# ---------------------------------------------------------------------------
# Main
# ---------------------------------------------------------------------------

if __name__ == "__main__":
    # Model hyper-params (small, consistent with the module's constructor).
    # heads * dim_h = 128 -> lane-dense layer outputs and K=128 contractions.
    in_channels, dim_h, out_channels = 16, 32, 4
    num_layers, heads = 2, 4
    num_nodes, nodes_per_graph = 512, 128
    num_graphs = num_nodes // nodes_per_graph

    key = jax.random.PRNGKey(0)
    k_x, k_g1, k_g2, k_cls = jax.random.split(key, 4)

    # Node features.
    x = jax.random.normal(k_x, (num_nodes, in_channels), jnp.float32)

    # Deterministic edge_index: a bidirectional ring inside each graph.
    src_list, dst_list = [], []
    for g in range(num_graphs):
        base = g * nodes_per_graph
        for i in range(nodes_per_graph):
            a = base + i
            b = base + (i + 1) % nodes_per_graph
            src_list += [a, b]
            dst_list += [b, a]
    edge_index = jnp.array([src_list, dst_list], dtype=jnp.int32)

    # Per-graph blocking requires edges to stay within their graph block (always
    # true for PyG batching); verify for the constructed edge list.
    assert all(s // nodes_per_graph == d // nodes_per_graph
               for s, d in zip(src_list, dst_list))

    batch = jnp.repeat(jnp.arange(num_graphs, dtype=jnp.int32), nodes_per_graph)

    mask_bias = build_mask_bias(edge_index, num_nodes)       # [N, N] bf16 additive mask
    pool_mat = build_pool_matrix(batch, num_graphs)          # [G, N] bf16

    # Parameters: conv1(in_channels -> dim_h, heads) then GAT_layers on dim_h*heads.
    gat_params = [init_gat_params(k_g1, in_channels, dim_h, heads)]
    layer_keys = jax.random.split(k_g2, num_layers - 1)
    for lk in layer_keys:
        gat_params.append(init_gat_params(lk, dim_h * heads, dim_h, heads))
    cls_params = init_classifier_params(k_cls, dim_h * heads, dim_h, out_channels)

    fwd = jax.jit(functools.partial(simple_gat_forward, heads=heads, fh=dim_h,
                                    graph_size=nodes_per_graph))
    out = fwd(x, mask_bias, pool_mat, gat_params, cls_params)
    out = jax.block_until_ready(out)
    assert out.shape == (num_graphs, out_channels)
    assert bool(jnp.all(jnp.isfinite(out)))
    print("KERNEL_OK")
</pallas_src>

<mosaic_0001>
module attributes {stable_mosaic.version = 11 : i64} {
  func.func @gat_project_kernel(%arg0: i32, %arg1: memref<128x16xf32, #tpu.memory_space<vmem>>, %arg2: memref<16x136xbf16, #tpu.memory_space<vmem>>, %arg3: memref<128x128xbf16, #tpu.memory_space<vmem>>, %arg4: memref<128x8xf32, #tpu.memory_space<vmem>>) attributes {dimension_semantics = [#tpu.dimension_semantics<parallel>], iteration_bounds = array<i64: 4>, scalar_prefetch = 0 : i64, scratch_operands = 0 : i64, tpu.core_type = #tpu.core_type<tc>, window_params = [{transform_indices = @transform_0, window_bounds = array<i64: 128, 16>}, {pipeline_mode = #tpu.pipeline_mode<synchronous>, transform_indices = @transform_1, window_bounds = array<i64: 16, 136>}, {transform_indices = @transform_2, window_bounds = array<i64: 128, 128>}, {transform_indices = @transform_3, window_bounds = array<i64: 128, 8>}]} {
    %c0 = arith.constant 0 : index
    %c0_0 = arith.constant 0 : index
    %0 = vector.load %arg1[%c0, %c0_0] : memref<128x16xf32, #tpu.memory_space<vmem>>, vector<128x16xf32>
    %1 = arith.truncf %0 : vector<128x16xf32> to vector<128x16xbf16>
    %c0_1 = arith.constant 0 : index
    %c0_2 = arith.constant 0 : index
    %2 = vector.load %arg2[%c0_1, %c0_2] : memref<16x136xbf16, #tpu.memory_space<vmem>>, vector<16x136xbf16>
    %cst = arith.constant dense<0.000000e+00> : vector<128x136xf32>
    %3 = tpu.matmul %1, %2, %cst {dimension_numbers = #tpu.dot_dimension_numbers<[1], [0], [0], [1], [0, 0, 1, 1], [], []>} : vector<128x16xbf16>, vector<16x136xbf16>, vector<128x136xf32> -> vector<128x136xf32>
    %4 = vector.extract_strided_slice %3 {offsets = [0, 0], sizes = [128, 128], strides = [1, 1]} : vector<128x136xf32> to vector<128x128xf32>
    %5 = arith.truncf %4 : vector<128x128xf32> to vector<128x128xbf16>
    %c0_3 = arith.constant 0 : index
    %c0_4 = arith.constant 0 : index
    %6 = vector.load %arg3[%c0_3, %c0_4] : memref<128x128xbf16, #tpu.memory_space<vmem>>, vector<128x128xbf16>
    tpu.vector_store %arg3[%c0_3, %c0_4], %5 {strides = array<i32>} : memref<128x128xbf16, #tpu.memory_space<vmem>>, vector<128x128xbf16>,
    %7 = vector.extract_strided_slice %3 {offsets = [0, 128], sizes = [128, 8], strides = [1, 1]} : vector<128x136xf32> to vector<128x8xf32>
    %c0_5 = arith.constant 0 : index
    %c0_6 = arith.constant 0 : index
    %8 = vector.load %arg4[%c0_5, %c0_6] : memref<128x8xf32, #tpu.memory_space<vmem>>, vector<128x8xf32>
    tpu.vector_store %arg4[%c0_5, %c0_6], %7 {strides = array<i32>} : memref<128x8xf32, #tpu.memory_space<vmem>>, vector<128x8xf32>,
    return
  }
  func.func @transform_0(%arg0: i32) -> (i32, i32) {
    %c0_i32 = arith.constant 0 : i32
    %c0_i32_0 = arith.constant 0 : i32
    return %arg0, %c0_i32 : i32, i32
  }
  func.func @transform_1(%arg0: i32) -> (i32, i32) {
    %c0_i32 = arith.constant 0 : i32
    %c0_i32_0 = arith.constant 0 : i32
    %c0_i32_1 = arith.constant 0 : i32
    return %c0_i32, %c0_i32_0 : i32, i32
  }
  func.func @transform_2(%arg0: i32) -> (i32, i32) {
    %c0_i32 = arith.constant 0 : i32
    %c0_i32_0 = arith.constant 0 : i32
    return %arg0, %c0_i32 : i32, i32
  }
  func.func @transform_3(%arg0: i32) -> (i32, i32) {
    %c0_i32 = arith.constant 0 : i32
    %c0_i32_0 = arith.constant 0 : i32
    return %arg0, %c0_i32 : i32, i32
  }
}

module attributes {stable_mosaic.version = 11 : i64} {
  func.func @gat_attention_kernel(%arg0: i32, %arg1: memref<128x4xf32, #tpu.memory_space<vmem>>, %arg2: memref<4x128xf32, #tpu.memory_space<vmem>>, %arg3: memref<4x128x32xbf16, #tpu.memory_space<vmem>>, %arg4: memref<128x128xbf16, #tpu.memory_space<vmem>>, %arg5: memref<1x128xf32, #tpu.memory_space<vmem>>, %arg6: memref<128x128xbf16, #tpu.memory_space<vmem>>) attributes {dimension_semantics = [#tpu.dimension_semantics<parallel>], iteration_bounds = array<i64: 4>, scalar_prefetch = 0 : i64, scratch_operands = 0 : i64, tpu.core_type = #tpu.core_type<tc>, window_params = [{transform_indices = @transform_0, window_bounds = array<i64: 128, 4>}, {transform_indices = @transform_1, window_bounds = array<i64: 4, 128>}, {transform_indices = @transform_2, window_bounds = array<i64: 4, 128, 32>}, {transform_indices = @transform_3, window_bounds = array<i64: 128, 128>}, {pipeline_mode = #tpu.pipeline_mode<synchronous>, transform_indices = @transform_4, window_bounds = array<i64: 1, 128>}, {transform_indices = @transform_5, window_bounds = array<i64: 128, 128>}]} {
    %c0 = arith.constant 0 : index
    %c0_0 = arith.constant 0 : index
    %0 = vector.load %arg4[%c0, %c0_0] : memref<128x128xbf16, #tpu.memory_space<vmem>>, vector<128x128xbf16>
    %1 = arith.extf %0 : vector<128x128xbf16> to vector<128x128xf32>
    %c0_1 = arith.constant 0 : index
    %c0_2 = arith.constant 0 : index
    %2 = vector.load %arg1[%c0_1, %c0_2] : memref<128x4xf32, #tpu.memory_space<vmem>>, vector<128x4xf32>
    %c0_3 = arith.constant 0 : index
    %c0_4 = arith.constant 0 : index
    %3 = vector.load %arg2[%c0_3, %c0_4] : memref<4x128xf32, #tpu.memory_space<vmem>>, vector<4x128xf32>
    %4 = vector.extract_strided_slice %2 {offsets = [0, 0], sizes = [128, 1], strides = [1, 1]} : vector<128x4xf32> to vector<128x1xf32>
    %5 = vector.extract_strided_slice %3 {offsets = [0, 0], sizes = [1, 128], strides = [1, 1]} : vector<4x128xf32> to vector<1x128xf32>
    %6 = vector.broadcast %4 : vector<128x1xf32> to vector<128x128xf32>
    %7 = vector.broadcast %5 : vector<1x128xf32> to vector<128x128xf32>
    %8 = arith.addf %6, %7 : vector<128x128xf32>
    %cst = arith.constant 2.000000e-01 : f32
    %9 = vector.broadcast %cst : f32 to vector<128x128xf32>
    %10 = arith.mulf %9, %8 : vector<128x128xf32>
    %11 = arith.maximumf %8, %10 : vector<128x128xf32>
    %12 = arith.addf %11, %1 : vector<128x128xf32>
    %cst_5 = arith.constant dense<0xFF800000> : vector<128xf32>
    %13 = vector.multi_reduction <maximumf>, %12, %cst_5 [1] : vector<128x128xf32> to vector<128xf32>
    %14 = vector.shape_cast %13 : vector<128xf32> to vector<128x1xf32>
    %15 = vector.broadcast %14 : vector<128x1xf32> to vector<128x128xf32>
    %16 = arith.subf %12, %15 : vector<128x128xf32>
    %17 = math.exp %16 : vector<128x128xf32>
    %cst_6 = arith.constant dense<0.000000e+00> : vector<128xf32>
    %18 = vector.multi_reduction <add>, %17, %cst_6 [1] : vector<128x128xf32> to vector<128xf32>
    %19 = vector.shape_cast %18 : vector<128xf32> to vector<128x1xf32>
    %20 = tpu.reciprocal %19 {approx = true} : vector<128x1xf32> -> vector<128x1xf32>
    %21 = vector.broadcast %20 : vector<128x1xf32> to vector<128x128xf32>
    %22 = arith.mulf %17, %21 : vector<128x128xf32>
    %23 = arith.truncf %22 : vector<128x128xf32> to vector<128x128xbf16>
    %c0_7 = arith.constant 0 : index
    %c0_8 = arith.constant 0 : index
    %c0_9 = arith.constant 0 : index
    %24 = vector.load %arg3[%c0_7, %c0_8, %c0_9] : memref<4x128x32xbf16, #tpu.memory_space<vmem>>, vector<1x128x32xbf16>
    %25 = vector.shape_cast %24 : vector<1x128x32xbf16> to vector<128x32xbf16>
    %cst_10 = arith.constant dense<0.000000e+00> : vector<128x32xf32>
    %26 = tpu.matmul %23, %25, %cst_10 {dimension_numbers = #tpu.dot_dimension_numbers<[1], [0], [0], [1], [0, 0, 1, 1], [], []>} : vector<128x128xbf16>, vector<128x32xbf16>, vector<128x32xf32> -> vector<128x32xf32>
    %27 = vector.extract_strided_slice %2 {offsets = [0, 1], sizes = [128, 1], strides = [1, 1]} : vector<128x4xf32> to vector<128x1xf32>
    %28 = vector.extract_strided_slice %3 {offsets = [1, 0], sizes = [1, 128], strides = [1, 1]} : vector<4x128xf32> to vector<1x128xf32>
    %29 = vector.broadcast %27 : vector<128x1xf32> to vector<128x128xf32>
    %30 = vector.broadcast %28 : vector<1x128xf32> to vector<128x128xf32>
    %31 = arith.addf %29, %30 : vector<128x128xf32>
    %cst_11 = arith.constant 2.000000e-01 : f32
    %32 = vector.broadcast %cst_11 : f32 to vector<128x128xf32>
    %33 = arith.mulf %32, %31 : vector<128x128xf32>
    %34 = arith.maximumf %31, %33 : vector<128x128xf32>
    %35 = arith.addf %34, %1 : vector<128x128xf32>
    %cst_12 = arith.constant dense<0xFF800000> : vector<128xf32>
    %36 = vector.multi_reduction <maximumf>, %35, %cst_12 [1] : vector<128x128xf32> to vector<128xf32>
    %37 = vector.shape_cast %36 : vector<128xf32> to vector<128x1xf32>
    %38 = vector.broadcast %37 : vector<128x1xf32> to vector<128x128xf32>
    %39 = arith.subf %35, %38 : vector<128x128xf32>
    %40 = math.exp %39 : vector<128x128xf32>
    %cst_13 = arith.constant dense<0.000000e+00> : vector<128xf32>
    %41 = vector.multi_reduction <add>, %40, %cst_13 [1] : vector<128x128xf32> to vector<128xf32>
    %42 = vector.shape_cast %41 : vector<128xf32> to vector<128x1xf32>
    %43 = tpu.reciprocal %42 {approx = true} : vector<128x1xf32> -> vector<128x1xf32>
    %44 = vector.broadcast %43 : vector<128x1xf32> to vector<128x128xf32>
    %45 = arith.mulf %40, %44 : vector<128x128xf32>
    %46 = arith.truncf %45 : vector<128x128xf32> to vector<128x128xbf16>
    %c1 = arith.constant 1 : index
    %c0_14 = arith.constant 0 : index
    %c0_15 = arith.constant 0 : index
    %47 = vector.load %arg3[%c1, %c0_14, %c0_15] : memref<4x128x32xbf16, #tpu.memory_space<vmem>>, vector<1x128x32xbf16>
    %48 = vector.shape_cast %47 : vector<1x128x32xbf16> to vector<128x32xbf16>
    %cst_16 = arith.constant dense<0.000000e+00> : vector<128x32xf32>
    %49 = tpu.matmul %46, %48, %cst_16 {dimension_numbers = #tpu.dot_dimension_numbers<[1], [0], [0], [1], [0, 0, 1, 1], [], []>} : vector<128x128xbf16>, vector<128x32xbf16>, vector<128x32xf32> -> vector<128x32xf32>
    %50 = vector.extract_strided_slice %2 {offsets = [0, 2], sizes = [128, 1], strides = [1, 1]} : vector<128x4xf32> to vector<128x1xf32>
    %51 = vector.extract_strided_slice %3 {offsets = [2, 0], sizes = [1, 128], strides = [1, 1]} : vector<4x128xf32> to vector<1x128xf32>
    %52 = vector.broadcast %50 : vector<128x1xf32> to vector<128x128xf32>
    %53 = vector.broadcast %51 : vector<1x128xf32> to vector<128x128xf32>
    %54 = arith.addf %52, %53 : vector<128x128xf32>
    %cst_17 = arith.constant 2.000000e-01 : f32
    %55 = vector.broadcast %cst_17 : f32 to vector<128x128xf32>
    %56 = arith.mulf %55, %54 : vector<128x128xf32>
    %57 = arith.maximumf %54, %56 : vector<128x128xf32>
    %58 = arith.addf %57, %1 : vector<128x128xf32>
    %cst_18 = arith.constant dense<0xFF800000> : vector<128xf32>
    %59 = vector.multi_reduction <maximumf>, %58, %cst_18 [1] : vector<128x128xf32> to vector<128xf32>
    %60 = vector.shape_cast %59 : vector<128xf32> to vector<128x1xf32>
    %61 = vector.broadcast %60 : vector<128x1xf32> to vector<128x128xf32>
    %62 = arith.subf %58, %61 : vector<128x128xf32>
    %63 = math.exp %62 : vector<128x128xf32>
    %cst_19 = arith.constant dense<0.000000e+00> : vector<128xf32>
    %64 = vector.multi_reduction <add>, %63, %cst_19 [1] : vector<128x128xf32> to vector<128xf32>
    %65 = vector.shape_cast %64 : vector<128xf32> to vector<128x1xf32>
    %66 = tpu.reciprocal %65 {approx = true} : vector<128x1xf32> -> vector<128x1xf32>
    %67 = vector.broadcast %66 : vector<128x1xf32> to vector<128x128xf32>
    %68 = arith.mulf %63, %67 : vector<128x128xf32>
    %69 = arith.truncf %68 : vector<128x128xf32> to vector<128x128xbf16>
    %c2 = arith.constant 2 : index
    %c0_20 = arith.constant 0 : index
    %c0_21 = arith.constant 0 : index
    %70 = vector.load %arg3[%c2, %c0_20, %c0_21] : memref<4x128x32xbf16, #tpu.memory_space<vmem>>, vector<1x128x32xbf16>
    %71 = vector.shape_cast %70 : vector<1x128x32xbf16> to vector<128x32xbf16>
    %cst_22 = arith.constant dense<0.000000e+00> : vector<128x32xf32>
    %72 = tpu.matmul %69, %71, %cst_22 {dimension_numbers = #tpu.dot_dimension_numbers<[1], [0], [0], [1], [0, 0, 1, 1], [], []>} : vector<128x128xbf16>, vector<128x32xbf16>, vector<128x32xf32> -> vector<128x32xf32>
    %73 = vector.extract_strided_slice %2 {offsets = [0, 3], sizes = [128, 1], strides = [1, 1]} : vector<128x4xf32> to vector<128x1xf32>
    %74 = vector.extract_strided_slice %3 {offsets = [3, 0], sizes = [1, 128], strides = [1, 1]} : vector<4x128xf32> to vector<1x128xf32>
    %75 = vector.broadcast %73 : vector<128x1xf32> to vector<128x128xf32>
    %76 = vector.broadcast %74 : vector<1x128xf32> to vector<128x128xf32>
    %77 = arith.addf %75, %76 : vector<128x128xf32>
    %cst_23 = arith.constant 2.000000e-01 : f32
    %78 = vector.broadcast %cst_23 : f32 to vector<128x128xf32>
    %79 = arith.mulf %78, %77 : vector<128x128xf32>
    %80 = arith.maximumf %77, %79 : vector<128x128xf32>
    %81 = arith.addf %80, %1 : vector<128x128xf32>
    %cst_24 = arith.constant dense<0xFF800000> : vector<128xf32>
    %82 = vector.multi_reduction <maximumf>, %81, %cst_24 [1] : vector<128x128xf32> to vector<128xf32>
    %83 = vector.shape_cast %82 : vector<128xf32> to vector<128x1xf32>
    %84 = vector.broadcast %83 : vector<128x1xf32> to vector<128x128xf32>
    %85 = arith.subf %81, %84 : vector<128x128xf32>
    %86 = math.exp %85 : vector<128x128xf32>
    %cst_25 = arith.constant dense<0.000000e+00> : vector<128xf32>
    %87 = vector.multi_reduction <add>, %86, %cst_25 [1] : vector<128x128xf32> to vector<128xf32>
    %88 = vector.shape_cast %87 : vector<128xf32> to vector<128x1xf32>
    %89 = tpu.reciprocal %88 {approx = true} : vector<128x1xf32> -> vector<128x1xf32>
    %90 = vector.broadcast %89 : vector<128x1xf32> to vector<128x128xf32>
    %91 = arith.mulf %86, %90 : vector<128x128xf32>
    %92 = arith.truncf %91 : vector<128x128xf32> to vector<128x128xbf16>
    %c3 = arith.constant 3 : index
    %c0_26 = arith.constant 0 : index
    %c0_27 = arith.constant 0 : index
    %93 = vector.load %arg3[%c3, %c0_26, %c0_27] : memref<4x128x32xbf16, #tpu.memory_space<vmem>>, vector<1x128x32xbf16>
    %94 = vector.shape_cast %93 : vector<1x128x32xbf16> to vector<128x32xbf16>
    %cst_28 = arith.constant dense<0.000000e+00> : vector<128x32xf32>
    %95 = tpu.matmul %92, %94, %cst_28 {dimension_numbers = #tpu.dot_dimension_numbers<[1], [0], [0], [1], [0, 0, 1, 1], [], []>} : vector<128x128xbf16>, vector<128x32xbf16>, vector<128x32xf32> -> vector<128x32xf32>
    %96 = tpu.concatenate %26, %49, %72, %95 in 1 : vector<128x32xf32>, vector<128x32xf32>, vector<128x32xf32>, vector<128x32xf32> -> vector<128x128xf32>
    %c0_29 = arith.constant 0 : index
    %c0_30 = arith.constant 0 : index
    %97 = vector.load %arg5[%c0_29, %c0_30] : memref<1x128xf32, #tpu.memory_space<vmem>>, vector<1x128xf32>
    %98 = vector.broadcast %97 : vector<1x128xf32> to vector<128x128xf32>
    %99 = arith.addf %96, %98 : vector<128x128xf32>
    %cst_31 = arith.constant 0.000000e+00 : f32
    %100 = vector.broadcast %cst_31 : f32 to vector<128x128xf32>
    %101 = arith.maximumf %99, %100 : vector<128x128xf32>
    %102 = arith.truncf %101 : vector<128x128xf32> to vector<128x128xbf16>
    %c0_32 = arith.constant 0 : index
    %c0_33 = arith.constant 0 : index
    %103 = vector.load %arg6[%c0_32, %c0_33] : memref<128x128xbf16, #tpu.memory_space<vmem>>, vector<128x128xbf16>
    tpu.vector_store %arg6[%c0_32, %c0_33], %102 {strides = array<i32>} : memref<128x128xbf16, #tpu.memory_space<vmem>>, vector<128x128xbf16>,
    return
  }
  func.func @transform_0(%arg0: i32) -> (i32, i32) {
    %c0_i32 = arith.constant 0 : i32
    %c0_i32_0 = arith.constant 0 : i32
    return %arg0, %c0_i32 : i32, i32
  }
  func.func @transform_1(%arg0: i32) -> (i32, i32) {
    %c0_i32 = arith.constant 0 : i32
    %c0_i32_0 = arith.constant 0 : i32
    return %c0_i32, %arg0 : i32, i32
  }
  func.func @transform_2(%arg0: i32) -> (i32, i32, i32) {
    %c0_i32 = arith.constant 0 : i32
    %c0_i32_0 = arith.constant 0 : i32
    %c0_i32_1 = arith.constant 0 : i32
    return %c0_i32, %arg0, %c0_i32_0 : i32, i32, i32
  }
  func.func @transform_3(%arg0: i32) -> (i32, i32) {
    %c0_i32 = arith.constant 0 : i32
    return %arg0, %arg0 : i32, i32
  }
  func.func @transform_4(%arg0: i32) -> (i32, i32) {
    %c0_i32 = arith.constant 0 : i32
    %c0_i32_0 = arith.constant 0 : i32
    %c0_i32_1 = arith.constant 0 : i32
    return %c0_i32, %c0_i32_0 : i32, i32
  }
  func.func @transform_5(%arg0: i32) -> (i32, i32) {
    %c0_i32 = arith.constant 0 : i32
    %c0_i32_0 = arith.constant 0 : i32
    return %arg0, %c0_i32 : i32, i32
  }
}

module attributes {stable_mosaic.version = 11 : i64} {
  func.func @gat_project_kernel(%arg0: i32, %arg1: memref<128x128xbf16, #tpu.memory_space<vmem>>, %arg2: memref<128x136xbf16, #tpu.memory_space<vmem>>, %arg3: memref<128x128xbf16, #tpu.memory_space<vmem>>, %arg4: memref<128x8xf32, #tpu.memory_space<vmem>>) attributes {dimension_semantics = [#tpu.dimension_semantics<parallel>], iteration_bounds = array<i64: 4>, scalar_prefetch = 0 : i64, scratch_operands = 0 : i64, tpu.core_type = #tpu.core_type<tc>, window_params = [{transform_indices = @transform_0, window_bounds = array<i64: 128, 128>}, {pipeline_mode = #tpu.pipeline_mode<synchronous>, transform_indices = @transform_1, window_bounds = array<i64: 128, 136>}, {transform_indices = @transform_2, window_bounds = array<i64: 128, 128>}, {transform_indices = @transform_3, window_bounds = array<i64: 128, 8>}]} {
    %c0 = arith.constant 0 : index
    %c0_0 = arith.constant 0 : index
    %0 = vector.load %arg1[%c0, %c0_0] : memref<128x128xbf16, #tpu.memory_space<vmem>>, vector<128x128xbf16>
    %c0_1 = arith.constant 0 : index
    %c0_2 = arith.constant 0 : index
    %1 = vector.load %arg2[%c0_1, %c0_2] : memref<128x136xbf16, #tpu.memory_space<vmem>>, vector<128x136xbf16>
    %cst = arith.constant dense<0.000000e+00> : vector<128x136xf32>
    %2 = tpu.matmul %0, %1, %cst {dimension_numbers = #tpu.dot_dimension_numbers<[1], [0], [0], [1], [0, 0, 1, 1], [], []>} : vector<128x128xbf16>, vector<128x136xbf16>, vector<128x136xf32> -> vector<128x136xf32>
    %3 = vector.extract_strided_slice %2 {offsets = [0, 0], sizes = [128, 128], strides = [1, 1]} : vector<128x136xf32> to vector<128x128xf32>
    %4 = arith.truncf %3 : vector<128x128xf32> to vector<128x128xbf16>
    %c0_3 = arith.constant 0 : index
    %c0_4 = arith.constant 0 : index
    %5 = vector.load %arg3[%c0_3, %c0_4] : memref<128x128xbf16, #tpu.memory_space<vmem>>, vector<128x128xbf16>
    tpu.vector_store %arg3[%c0_3, %c0_4], %4 {strides = array<i32>} : memref<128x128xbf16, #tpu.memory_space<vmem>>, vector<128x128xbf16>,
    %6 = vector.extract_strided_slice %2 {offsets = [0, 128], sizes = [128, 8], strides = [1, 1]} : vector<128x136xf32> to vector<128x8xf32>
    %c0_5 = arith.constant 0 : index
    %c0_6 = arith.constant 0 : index
    %7 = vector.load %arg4[%c0_5, %c0_6] : memref<128x8xf32, #tpu.memory_space<vmem>>, vector<128x8xf32>
    tpu.vector_store %arg4[%c0_5, %c0_6], %6 {strides = array<i32>} : memref<128x8xf32, #tpu.memory_space<vmem>>, vector<128x8xf32>,
    return
  }
  func.func @transform_0(%arg0: i32) -> (i32, i32) {
    %c0_i32 = arith.constant 0 : i32
    %c0_i32_0 = arith.constant 0 : i32
    return %arg0, %c0_i32 : i32, i32
  }
  func.func @transform_1(%arg0: i32) -> (i32, i32) {
    %c0_i32 = arith.constant 0 : i32
    %c0_i32_0 = arith.constant 0 : i32
    %c0_i32_1 = arith.constant 0 : i32
    return %c0_i32, %c0_i32_0 : i32, i32
  }
  func.func @transform_2(%arg0: i32) -> (i32, i32) {
    %c0_i32 = arith.constant 0 : i32
    %c0_i32_0 = arith.constant 0 : i32
    return %arg0, %c0_i32 : i32, i32
  }
  func.func @transform_3(%arg0: i32) -> (i32, i32) {
    %c0_i32 = arith.constant 0 : i32
    %c0_i32_0 = arith.constant 0 : i32
    return %arg0, %c0_i32 : i32, i32
  }
}

module attributes {stable_mosaic.version = 11 : i64} {
  func.func @pool_classifier_kernel(%arg0: memref<512x128xbf16, #tpu.memory_space<vmem>>, %arg1: memref<4x512xbf16, #tpu.memory_space<vmem>>, %arg2: memref<128x32xf32, #tpu.memory_space<vmem>>, %arg3: memref<1x32xf32, #tpu.memory_space<vmem>>, %arg4: memref<32x16xf32, #tpu.memory_space<vmem>>, %arg5: memref<1x16xf32, #tpu.memory_space<vmem>>, %arg6: memref<16x4xf32, #tpu.memory_space<vmem>>, %arg7: memref<1x4xf32, #tpu.memory_space<vmem>>, %arg8: memref<4x4xf32, #tpu.memory_space<vmem>>) attributes {dimension_semantics = [], scalar_prefetch = 0 : i64, scratch_operands = 0 : i64, tpu.core_type = #tpu.core_type<tc>} {
    %c0 = arith.constant 0 : index
    %c0_0 = arith.constant 0 : index
    %0 = vector.load %arg1[%c0, %c0_0] : memref<4x512xbf16, #tpu.memory_space<vmem>>, vector<4x512xbf16>
    %c0_1 = arith.constant 0 : index
    %c0_2 = arith.constant 0 : index
    %1 = vector.load %arg0[%c0_1, %c0_2] : memref<512x128xbf16, #tpu.memory_space<vmem>>, vector<512x128xbf16>
    %cst = arith.constant dense<0.000000e+00> : vector<4x128xf32>
    %2 = tpu.matmul %0, %1, %cst {dimension_numbers = #tpu.dot_dimension_numbers<[1], [0], [0], [1], [0, 0, 1, 1], [], []>} : vector<4x512xbf16>, vector<512x128xbf16>, vector<4x128xf32> -> vector<4x128xf32>
    %c0_3 = arith.constant 0 : index
    %c0_4 = arith.constant 0 : index
    %3 = vector.load %arg2[%c0_3, %c0_4] : memref<128x32xf32, #tpu.memory_space<vmem>>, vector<128x32xf32>
    %cst_5 = arith.constant dense<0.000000e+00> : vector<4x32xf32>
    %4 = tpu.matmul %2, %3, %cst_5 {dimension_numbers = #tpu.dot_dimension_numbers<[1], [0], [0], [1], [0, 0, 1, 1], [], []>} : vector<4x128xf32>, vector<128x32xf32>, vector<4x32xf32> -> vector<4x32xf32>
    %c0_6 = arith.constant 0 : index
    %c0_7 = arith.constant 0 : index
    %5 = vector.load %arg3[%c0_6, %c0_7] : memref<1x32xf32, #tpu.memory_space<vmem>>, vector<1x32xf32>
    %6 = vector.broadcast %5 : vector<1x32xf32> to vector<4x32xf32>
    %7 = arith.addf %4, %6 : vector<4x32xf32>
    %cst_8 = arith.constant 0.000000e+00 : f32
    %8 = vector.broadcast %cst_8 : f32 to vector<4x32xf32>
    %9 = arith.maximumf %7, %8 : vector<4x32xf32>
    %c0_9 = arith.constant 0 : index
    %c0_10 = arith.constant 0 : index
    %10 = vector.load %arg4[%c0_9, %c0_10] : memref<32x16xf32, #tpu.memory_space<vmem>>, vector<32x16xf32>
    %cst_11 = arith.constant dense<0.000000e+00> : vector<4x16xf32>
    %11 = tpu.matmul %9, %10, %cst_11 {dimension_numbers = #tpu.dot_dimension_numbers<[1], [0], [0], [1], [0, 0, 1, 1], [], []>} : vector<4x32xf32>, vector<32x16xf32>, vector<4x16xf32> -> vector<4x16xf32>
    %c0_12 = arith.constant 0 : index
    %c0_13 = arith.constant 0 : index
    %12 = vector.load %arg5[%c0_12, %c0_13] : memref<1x16xf32, #tpu.memory_space<vmem>>, vector<1x16xf32>
    %13 = vector.broadcast %12 : vector<1x16xf32> to vector<4x16xf32>
    %14 = arith.addf %11, %13 : vector<4x16xf32>
    %cst_14 = arith.constant 0.000000e+00 : f32
    %15 = vector.broadcast %cst_14 : f32 to vector<4x16xf32>
    %16 = arith.maximumf %14, %15 : vector<4x16xf32>
    %c0_15 = arith.constant 0 : index
    %c0_16 = arith.constant 0 : index
    %17 = vector.load %arg6[%c0_15, %c0_16] : memref<16x4xf32, #tpu.memory_space<vmem>>, vector<16x4xf32>
    %cst_17 = arith.constant dense<0.000000e+00> : vector<4x4xf32>
    %18 = tpu.matmul %16, %17, %cst_17 {dimension_numbers = #tpu.dot_dimension_numbers<[1], [0], [0], [1], [0, 0, 1, 1], [], []>} : vector<4x16xf32>, vector<16x4xf32>, vector<4x4xf32> -> vector<4x4xf32>
    %c0_18 = arith.constant 0 : index
    %c0_19 = arith.constant 0 : index
    %19 = vector.load %arg7[%c0_18, %c0_19] : memref<1x4xf32, #tpu.memory_space<vmem>>, vector<1x4xf32>
    %20 = vector.broadcast %19 : vector<1x4xf32> to vector<4x4xf32>
    %21 = arith.addf %18, %20 : vector<4x4xf32>
    %c0_20 = arith.constant 0 : index
    %c0_21 = arith.constant 0 : index
    %22 = vector.load %arg8[%c0_20, %c0_21] : memref<4x4xf32, #tpu.memory_space<vmem>>, vector<4x4xf32>
    tpu.vector_store %arg8[%c0_20, %c0_21], %21 {strides = array<i32>} : memref<4x4xf32, #tpu.memory_space<vmem>>, vector<4x4xf32>,
    return
  }
}

</mosaic_0001>

<llo_original>
// kernel: simple_gat_forward.5
$region0: #{simple_gat_forward.5}
  #allocation0 [shape = 'u32[]', space=smem, size = 0x4, offset = 0x4, fixed_abs, tag = 'smem constant byte address 0x4 - core index']
  #allocation1 [shape = 'u32[144,128]{1,0:T(1,128)}', space=vmem, size = 0x12000, scoped, tag = 'internal scratch']
  %s0 = inlined_call_operand.hbm [shape: f32[512,16], index: 0, kind: input, shape index: {}]
  %s1 = inlined_call_operand.hbm [shape: bf16[16,136], index: 1, kind: input, shape index: {}]
  %s2 = inlined_call_operand.hbm [shape: bf16[512,128], index: 2, kind: output, shape index: {0}]
  %s3 = inlined_call_operand.hbm [shape: f32[512,8], index: 3, kind: output, shape index: {1}]
  %4 = xla_tuple %s2, %s3
  %s5 = sld [smem:[#allocation0]]
  $region57: #{simple_gat_forward.5} parent=0
    _
  %s7 = ssub.s32 1, %s5
  %s8 = scalar_select 0, %s7, %s5
  $region1: #{simple_gat_forward.5} parent=0
    #allocation2 [shape = 'u8[131072]{0}', space=vmem, size = 0x20000, scoped, tag = 'input window, operand 0']
    #allocation3 [shape = 's32[2]{0}', space=sflag, size = 0x8, scoped, tag = 'scoped memory for simple_gat_forward.5']
    #allocation4 [shape = 's32[2]{0}', space=sflag, size = 0x8, scoped, tag = 'scoped memory for simple_gat_forward.5']
    #allocation5 [shape = 'u8[8192]{0}', space=vmem, size = 0x2000, scoped, tag = 'input window, operand 1, single buffered']
    #allocation6 [shape = 's32[1]{0}', space=sflag, size = 0x4, scoped, tag = 'scoped memory for simple_gat_forward.5']
    #allocation7 [shape = 'u8[65536]{0}', space=vmem, size = 0x10000, scoped, tag = 'output window, operand 0']
    #allocation8 [shape = 'u8[131072]{0}', space=vmem, size = 0x20000, scoped, tag = 'output window, operand 1']
    #allocation9 [shape = 's32[2]{0}', space=sflag, size = 0x8, scoped, tag = 'scoped memory for simple_gat_forward.5']
    %9 = vsyncpa [#allocation3], 0
    %s10 = scalar_lea.sflag [#allocation3], 1
    %11 = vsyncpa %s10, 0
    %12 = vsyncpa [#allocation6], 0
    %13 = vsyncpa [#allocation4], 0
    %s14 = scalar_lea.sflag [#allocation4], 1
    %15 = vsyncpa %s14, 0
    %16 = vsyncpa [#allocation9], 0
    %s17 = scalar_lea.sflag [#allocation9], 1
    %18 = vsyncpa %s17, 0
    loop: start=0, step=1, limit=6
    $region2: #{simple_gat_forward.5} parent=1 // loop_pre_header
      _
    $region3: #{simple_gat_forward.5} parent=1 // loop_header
      %s20 = sphi 0, %s24
      %p21 = scmp.ge.s32.totalorder %s20, 6
      %s30 = sphi 0, %s32
      %s33 = sphi 0, %s30
      %s34 = sphi 0, %s33
      %s50 = sphi 0, %s34
      %s54 = sphi 0, %s54
      %s56 = sphi 0, %s54
      %s57 = sphi 0, %s56
      %s71 = sphi 0, %s57
      %s77 = sphi 0, %s79
      %s80 = sphi 0, %s77
      %s81 = sphi 0, %s80
      %s97 = sphi 0, %s81
      %s103 = sphi 0, %s105
      %s106 = sphi 0, %s103
      %s107 = sphi 0, %s106
      %s123 = sphi 0, %s107
    $region4: #{simple_gat_forward.5} parent=1 // loop_header_branch
      %23 = sbr.rel (%p21) target = $region8
    $region5: #{simple_gat_forward.5} parent=1 // loop_body
      %s25 = ssub.s32 %s20, 1
      %s26 = ssub.s32 %s20, 2
      %s27 = sadd.s32 %s20, 1
      %s28 = ssub.s32 %s20, %s27
      %p29 = scmp.eq.s32.totalorder %s28, 0
      %s31 = sadd.s32 %s30, 1
      %s32 = scalar_select %p29, %s30, %s31
      %p35 = pneg %p29
      %p36 = scmp.eq.s32.totalorder %s20, 3
      %p37 = por %p35, %p36
      %p38 = scmp.ne.s32.totalorder %s30, %s33
      %p39 = scmp.eq.s32.totalorder %s20, 0
      %p40 = por %p38, %p39
      %p41 = scmp.ne.s32.totalorder %s30, %s33
      %p42 = scmp.eq.s32.totalorder %s25, 3
      %p43 = por %p41, %p42
      %p44 = scmp.ne.s32.totalorder %s33, %s34
      %p45 = scmp.eq.s32.totalorder %s25, 0
      %p46 = por %p44, %p45
      %p47 = scmp.ne.s32.totalorder %s33, %s34
      %p48 = scmp.eq.s32.totalorder %s26, 3
      %p49 = por %p47, %p48
      %p51 = scmp.ne.s32.totalorder %s34, %s50
      %p52 = scmp.eq.s32.totalorder %s26, 0
      %p53 = por %p51, %p52
      %s55 = sadd.s32 %s54, 1
      %p58 = scmp.eq.s32.totalorder %s20, 3
      %p59 = scmp.ne.s32.totalorder %s54, %s56
      %p60 = scmp.eq.s32.totalorder %s20, 0
      %p61 = por %p59, %p60
      %p62 = scmp.ne.s32.totalorder %s54, %s56
      %p63 = scmp.eq.s32.totalorder %s25, 3
      %p64 = por %p62, %p63
      %p65 = scmp.ne.s32.totalorder %s56, %s57
      %p66 = scmp.eq.s32.totalorder %s25, 0
      %p67 = por %p65, %p66
      %p68 = scmp.ne.s32.totalorder %s56, %s57
      %p69 = scmp.eq.s32.totalorder %s26, 3
      %p70 = por %p68, %p69
      %p72 = scmp.ne.s32.totalorder %s57, %s71
      %p73 = scmp.eq.s32.totalorder %s26, 0
      %p74 = por %p72, %p73
      %s75 = ssub.s32 %s20, %s27
      %p76 = scmp.eq.s32.totalorder %s75, 0
      %s78 = sadd.s32 %s77, 1
      %s79 = scalar_select %p76, %s77, %s78
      %p82 = pneg %p76
      %p83 = scmp.eq.s32.totalorder %s20, 3
      %p84 = por %p82, %p83
      %p85 = scmp.ne.s32.totalorder %s77, %s80
      %p86 = scmp.eq.s32.totalorder %s20, 0
      %p87 = por %p85, %p86
      %p88 = scmp.ne.s32.totalorder %s77, %s80
      %p89 = scmp.eq.s32.totalorder %s25, 3
      %p90 = por %p88, %p89
      %p91 = scmp.ne.s32.totalorder %s80, %s81
      %p92 = scmp.eq.s32.totalorder %s25, 0
      %p93 = por %p91, %p92
      %p94 = scmp.ne.s32.totalorder %s80, %s81
      %p95 = scmp.eq.s32.totalorder %s26, 3
      %p96 = por %p94, %p95
      %p98 = scmp.ne.s32.totalorder %s81, %s97
      %p99 = scmp.eq.s32.totalorder %s26, 0
      %p100 = por %p98, %p99
      %s101 = ssub.s32 %s20, %s27
      %p102 = scmp.eq.s32.totalorder %s101, 0
      %s104 = sadd.s32 %s103, 1
      %s105 = scalar_select %p102, %s103, %s104
      %p108 = pneg %p102
      %p109 = scmp.eq.s32.totalorder %s20, 3
      %p110 = por %p108, %p109
      %p111 = scmp.ne.s32.totalorder %s103, %s106
      %p112 = scmp.eq.s32.totalorder %s20, 0
      %p113 = por %p111, %p112
      %p114 = scmp.ne.s32.totalorder %s103, %s106
      %p115 = scmp.eq.s32.totalorder %s25, 3
      %p116 = por %p114, %p115
      %p117 = scmp.ne.s32.totalorder %s106, %s107
      %p118 = scmp.eq.s32.totalorder %s25, 0
      %p119 = por %p117, %p118
      %p120 = scmp.ne.s32.totalorder %s106, %s107
      %p121 = scmp.eq.s32.totalorder %s26, 3
      %p122 = por %p120, %p121
      %p124 = scmp.ne.s32.totalorder %s107, %s123
      %p125 = scmp.eq.s32.totalorder %s26, 0
      %p126 = por %p124, %p125
      %p127 = scmp.le.s32.totalorder 1, %s20
      %p128 = scmp.lt.s32.totalorder %s20, 5
      %p129 = pnand %p127, %p128
      %p130 = pneg %p129
      // Predicated region
      $region9: #{simple_gat_forward.5} parent=5 // pred_check
        _
      $region10: #{simple_gat_forward.5} parent=5 // pred_check_branch
        %132 = sbr.rel (%p129) target = $region12
      $region11: #{simple_gat_forward.5} parent=5 // pred_region
        %s133 = ssub.s32 %s20, 1
        // Predicated region
        $region13: #{simple_gat_forward.5} parent=11 // pred_check
          %p134 = pneg %p67
        $region14: #{simple_gat_forward.5} parent=11 // pred_check_branch
          %136 = sbr.rel (%p134) target = $region16
        $region15: #{simple_gat_forward.5} parent=11 // pred_region
          %s138 = ssub.s32 256, 256
          %139 = vsyncadd [#allocation6], %s138
          %s140 = sshll.u32 [#allocation5], 4
          %s141 = int_to_ptr.vmem [resolvable:$true] %s140
          %146 = dma.hbm_to_vmem [thread:$0]  %s1, 256, %s141, [#allocation6], 128, 128, 8
        $region16: #{simple_gat_forward.5} parent=11 // pred_fallthru
          _
      $region12: #{simple_gat_forward.5} parent=5 // pred_fallthru
        _
      %p147 = scmp.lt.s32.totalorder %s20, 4
      // Predicated region
      $region17: #{simple_gat_forward.5} parent=5 // pred_check
        %p148 = pneg %p147
      $region18: #{simple_gat_forward.5} parent=5 // pred_check_branch
        %150 = sbr.rel (%p148) target = $region20
      $region19: #{simple_gat_forward.5} parent=5 // pred_region
        // Predicated region
        $region21: #{simple_gat_forward.5} parent=19 // pred_check
          %p151 = pneg %p40
        $region22: #{simple_gat_forward.5} parent=19 // pred_check_branch
          %153 = sbr.rel (%p151) target = $region24
        $region23: #{simple_gat_forward.5} parent=19 // pred_region
          %s154 = sand.u32 %s30, 1
          %s155 = scalar_lea.sflag [#allocation3], %s154
          %s156 = sand.u32 %s30, 1
          %s157 = smul.addr %s156, 128
          %s158 = scalar_lea.vmem [#allocation2], %s157
          %s159 = smul.u32 16, %s20
          %s161 = ssub.s32 2048, 2048
          %162 = vsyncadd %s155, %s161
          %s163 = smul.addr %s159, 128
          %s164 = scalar_lea.hbm %s0, %s163
          %s165 = sshll.u32 %s158, 4
          %s166 = int_to_ptr.vmem [resolvable:$true] %s165
          %171 = dma.hbm_to_vmem [thread:$0]  %s164, 2048, %s166, %s155, 128, 128, 8
        $region24: #{simple_gat_forward.5} parent=19 // pred_fallthru
          _
      $region20: #{simple_gat_forward.5} parent=5 // pred_fallthru
        _
      %p172 = scmp.le.s32.totalorder 1, %s20
      %p173 = scmp.lt.s32.totalorder %s20, 5
      %p174 = pnand %p172, %p173
      %p175 = pneg %p174
      // Predicated region
      $region25: #{simple_gat_forward.5} parent=5 // pred_check
        _
      $region26: #{simple_gat_forward.5} parent=5 // pred_check_branch
        %177 = sbr.rel (%p174) target = $region28
      $region27: #{simple_gat_forward.5} parent=5 // pred_region
        %s178 = ssub.s32 %s20, 1
        %s179 = sand.u32 %s33, 1
        %s180 = scalar_lea.sflag [#allocation3], %s179
        %s181 = sand.u32 %s33, 1
        %s182 = smul.addr %s181, 128
        %s183 = scalar_lea.vmem [#allocation2], %s182
        // Predicated region
        $region29: #{simple_gat_forward.5} parent=27 // pred_check
          %p184 = pneg %p46
        $region30: #{simple_gat_forward.5} parent=27 // pred_check_branch
          %186 = sbr.rel (%p184) target = $region32
        $region31: #{simple_gat_forward.5} parent=27 // pred_region
          %187 = dma.done %s180, 2048
        $region32: #{simple_gat_forward.5} parent=27 // pred_fallthru
          _
        // Predicated region
        $region33: #{simple_gat_forward.5} parent=27 // pred_check
          %p188 = pneg %p67
        $region34: #{simple_gat_forward.5} parent=27 // pred_check_branch
          %190 = sbr.rel (%p188) target = $region36
        $region35: #{simple_gat_forward.5} parent=27 // pred_region
          %191 = dma.done [#allocation6], 256
        $region36: #{simple_gat_forward.5} parent=27 // pred_fallthru
          _
        %s192 = sand.u32 %s33, 1
        %s193 = scalar_lea.sflag [#allocation3], %s192
        %s194 = sand.u32 %s33, 1
        %s195 = smul.addr %s194, 128
        %s196 = scalar_lea.vmem [#allocation2], %s195
        %p197 = pneg %p46
        %p198 = pneg %p43
        %p199 = pneg %p67
        %p200 = pneg %p64
        %p201 = pneg %p93
        %p202 = pneg %p90
        %s203 = sand.u32 %s80, 1
        %s204 = scalar_lea.sflag [#allocation4], %s203
        %s205 = sand.u32 %s80, 1
        %s206 = smul.addr %s205, 64
        %s207 = scalar_lea.vmem [#allocation7], %s206
        %p208 = pneg %p119
        %p209 = pneg %p116
        %s210 = sand.u32 %s106, 1
        %s211 = scalar_lea.sflag [#allocation9], %s210
        %s212 = sand.u32 %s106, 1
        %s213 = smul.addr %s212, 128
        %s214 = scalar_lea.vmem [#allocation8], %s213
        %s215 = smul.u32 16, %s25
        %s216 = smul.u32 16, %s25
        %s217 = smul.u32 16, %s25
        %v219 = vld [vmem:[%s183] sm:$0xff]
        %v220 = vld [vmem:[%s183 + $0x8] sm:$0xff]
        %v221 = vld [vmem:[%s183 + $0x10] sm:$0xff]
        %v222 = vld [vmem:[%s183 + $0x18] sm:$0xff]
        %v223 = vld [vmem:[%s183 + $0x20] sm:$0xff]
        %v224 = vld [vmem:[%s183 + $0x28] sm:$0xff]
        %v225 = vld [vmem:[%s183 + $0x30] sm:$0xff]
        %v226 = vld [vmem:[%s183 + $0x38] sm:$0xff]
        %v227 = vld [vmem:[%s183 + $0x40] sm:$0xff]
        %v228 = vld [vmem:[%s183 + $0x48] sm:$0xff]
        %v229 = vld [vmem:[%s183 + $0x50] sm:$0xff]
        %v230 = vld [vmem:[%s183 + $0x58] sm:$0xff]
        %v231 = vld [vmem:[%s183 + $0x60] sm:$0xff]
        %v232 = vld [vmem:[%s183 + $0x68] sm:$0xff]
        %v233 = vld [vmem:[%s183 + $0x70] sm:$0xff]
        %v234 = vld [vmem:[%s183 + $0x78] sm:$0xff]
        %v235 = vpack.c.bf16 %v220, %v219
        %v236 = vpack.c.bf16 %v222, %v221
        %v237 = vpack.c.bf16 %v224, %v223
        %v238 = vpack.c.bf16 %v226, %v225
        %v239 = vpack.c.bf16 %v228, %v227
        %v240 = vpack.c.bf16 %v230, %v229
        %v241 = vpack.c.bf16 %v232, %v231
        %v242 = vpack.c.bf16 %v234, %v233
        %v243 = vld [vmem:[#allocation5] sm:$0xff]
        %v244 = vld [vmem:[#allocation5 + $0x8] sm:$0xff]
        %v247 = vunpack.c.l.b16 %v243
        %v248 = vunpack.c.h.b16 %v243
        %v249 = vunpack.c.l.b16 %v244
        %v250 = vunpack.c.h.b16 %v244
        %v251 = vpack.c.b16 %v249, %v247
        %v252 = vpack.c.b16 %v250, %v248
        %vm255 = vcmask 130048
        %v257 = vsel %vm255, %v235, 0
        %v260 = vsel %vm255, %v236, 0
        %v263 = vsel %vm255, %v237, 0
        %v266 = vsel %vm255, %v238, 0
        %v269 = vsel %vm255, %v239, 0
        %v272 = vsel %vm255, %v240, 0
        %v275 = vsel %vm255, %v241, 0
        %v278 = vsel %vm255, %v242, 0
        %280 = vmatprep.subr.bf16.mxu0 %v252
        %281 = vmatpush1.bf16.msra.mxu0 %v251
        %282 = vmatprep.subr.bf16.mxu0 0
        %283 = vmatpush1.bf16.msra.mxu0 0
        %284 = vmatprep.subr.bf16.mxu0 0
        %285 = vmatpush1.bf16.msra.mxu0 0
        %286 = vmatprep.subr.bf16.mxu0 0
        %287 = vmatpush1.bf16.msra.mxu0 0
        %288 = vmatprep.subr.bf16.mxu0 0
        %289 = vmatpush1.bf16.msra.mxu0 0
        %290 = vmatprep.subr.bf16.mxu0 0
        %291 = vmatpush1.bf16.msra.mxu0 0
        %292 = vmatprep.subr.bf16.mxu0 0
        %293 = vmatpush1.bf16.msra.mxu0 0
        %294 = vmatprep.subr.bf16.mxu0 0
        %295 = vmatpush1.bf16.msra.mxu0 0
        %296 = vmatprep.subr.bf16.mxu0 0
        %297 = vmatpush1.bf16.msra.mxu0 0
        %298 = vmatprep.subr.bf16.mxu0 0
        %299 = vmatpush1.bf16.msra.mxu0 0
        %300 = vmatprep.subr.bf16.mxu0 0
        %301 = vmatpush1.bf16.msra.mxu0 0
        %302 = vmatprep.subr.bf16.mxu0 0
        %303 = vmatpush1.bf16.msra.mxu0 0
        %304 = vmatprep.subr.bf16.mxu0 0
        %305 = vmatpush1.bf16.msra.mxu0 0
        %306 = vmatprep.subr.bf16.mxu0 0
        %307 = vmatpush1.bf16.msra.mxu0 0
        %308 = vmatprep.subr.bf16.mxu0 0
        %309 = vmatpush1.bf16.msra.mxu0 0
        %310 = vmatprep.subr.bf16.mxu0 0
        %311 = vmatpush1.bf16.msra.mxu0 0
        %312 = vmatprep.mubr.bf16.mxu0 0
        %313 = vmatmul.mubr.bf16.gmra.mrb[0].mxu0 %v257
        %v314 = vpop.f32.mrb[0].mxu0
        %v315 = vadd.f32 0.0, %v314
        %v316 = vpop.f32.mrb[0].mxu0
        %v317 = vadd.f32 0.0, %v316
        %v318 = vpop.f32.mrb[0].mxu0
        %v319 = vadd.f32 0.0, %v318
        %v320 = vpop.f32.mrb[0].mxu0
        %v321 = vadd.f32 0.0, %v320
        %322 = vmatprep.mubr.bf16.mxu0 0
        %323 = vmatmul.mubr.bf16.gmra.mrb[0].mxu0 %v260
        %v324 = vpop.f32.mrb[0].mxu0
        %v325 = vadd.f32 0.0, %v324
        %v326 = vpop.f32.mrb[0].mxu0
        %v327 = vadd.f32 0.0, %v326
        %v328 = vpop.f32.mrb[0].mxu0
        %v329 = vadd.f32 0.0, %v328
        %v330 = vpop.f32.mrb[0].mxu0
        %v331 = vadd.f32 0.0, %v330
        %332 = vmatprep.mubr.bf16.mxu0 0
        %333 = vmatmul.mubr.bf16.gmra.mrb[0].mxu0 %v263
        %v334 = vpop.f32.mrb[0].mxu0
        %v335 = vadd.f32 0.0, %v334
        %v336 = vpop.f32.mrb[0].mxu0
        %v337 = vadd.f32 0.0, %v336
        %v338 = vpop.f32.mrb[0].mxu0
        %v339 = vadd.f32 0.0, %v338
        %v340 = vpop.f32.mrb[0].mxu0
        %v341 = vadd.f32 0.0, %v340
        %342 = vmatprep.mubr.bf16.mxu0 0
        %343 = vmatmul.mubr.bf16.gmra.mrb[0].mxu0 %v266
        %v344 = vpop.f32.mrb[0].mxu0
        %v345 = vadd.f32 0.0, %v344
        %v346 = vpop.f32.mrb[0].mxu0
        %v347 = vadd.f32 0.0, %v346
        %v348 = vpop.f32.mrb[0].mxu0
        %v349 = vadd.f32 0.0, %v348
        %v350 = vpop.f32.mrb[0].mxu0
        %v351 = vadd.f32 0.0, %v350
        %352 = vmatprep.mubr.bf16.mxu0 0
        %353 = vmatmul.mubr.bf16.gmra.mrb[0].mxu0 %v269
        %v354 = vpop.f32.mrb[0].mxu0
        %v355 = vadd.f32 0.0, %v354
        %v356 = vpop.f32.mrb[0].mxu0
        %v357 = vadd.f32 0.0, %v356
        %v358 = vpop.f32.mrb[0].mxu0
        %v359 = vadd.f32 0.0, %v358
        %v360 = vpop.f32.mrb[0].mxu0
        %v361 = vadd.f32 0.0, %v360
        %362 = vmatprep.mubr.bf16.mxu0 0
        %363 = vmatmul.mubr.bf16.gmra.mrb[0].mxu0 %v272
        %v364 = vpop.f32.mrb[0].mxu0
        %v365 = vadd.f32 0.0, %v364
        %v366 = vpop.f32.mrb[0].mxu0
        %v367 = vadd.f32 0.0, %v366
        %v368 = vpop.f32.mrb[0].mxu0
        %v369 = vadd.f32 0.0, %v368
        %v370 = vpop.f32.mrb[0].mxu0
        %v371 = vadd.f32 0.0, %v370
        %372 = vmatprep.mubr.bf16.mxu0 0
        %373 = vmatmul.mubr.bf16.gmra.mrb[0].mxu0 %v275
        %v374 = vpop.f32.mrb[0].mxu0
        %v375 = vadd.f32 0.0, %v374
        %v376 = vpop.f32.mrb[0].mxu0
        %v377 = vadd.f32 0.0, %v376
        %v378 = vpop.f32.mrb[0].mxu0
        %v379 = vadd.f32 0.0, %v378
        %v380 = vpop.f32.mrb[0].mxu0
        %v381 = vadd.f32 0.0, %v380
        %382 = vmatprep.mubr.bf16.mxu0 0
        %383 = vmatmul.mubr.bf16.gmra.mrb[0].mxu0 %v278
        %v384 = vpop.f32.mrb[0].mxu0
        %v385 = vadd.f32 0.0, %v384
        %v386 = vpop.f32.mrb[0].mxu0
        %v387 = vadd.f32 0.0, %v386
        %v388 = vpop.f32.mrb[0].mxu0
        %v389 = vadd.f32 0.0, %v388
        %v390 = vpop.f32.mrb[0].mxu0
        %v391 = vadd.f32 0.0, %v390
        %392 = vdwg.mxu0
        %v393 = vpack.c.bf16 %v319, %v315
        %v394 = vpack.c.bf16 %v329, %v325
        %v395 = vpack.c.bf16 %v339, %v335
        %v396 = vpack.c.bf16 %v349, %v345
        %v397 = vpack.c.bf16 %v359, %v355
        %v398 = vpack.c.bf16 %v369, %v365
        %v399 = vpack.c.bf16 %v379, %v375
        %v400 = vpack.c.bf16 %v389, %v385
        %v409 = vunpack.c.l.b16 %v393
        %v410 = vunpack.c.h.b16 %v393
        %v411 = vunpack.c.l.b16 %v394
        %v412 = vunpack.c.h.b16 %v394
        %v413 = vunpack.c.l.b16 %v395
        %v414 = vunpack.c.h.b16 %v395
        %v415 = vunpack.c.l.b16 %v396
        %v416 = vunpack.c.h.b16 %v396
        %v417 = vunpack.c.l.b16 %v397
        %v418 = vunpack.c.h.b16 %v397
        %v419 = vunpack.c.l.b16 %v398
        %v420 = vunpack.c.h.b16 %v398
        %v421 = vunpack.c.l.b16 %v399
        %v422 = vunpack.c.h.b16 %v399
        %v423 = vunpack.c.l.b16 %v400
        %v424 = vunpack.c.h.b16 %v400
        %v425 = vpack.c.b16 %v409, %v409
        %v426 = vpack.c.b16 %v410, %v410
        %v427 = vpack.c.b16 %v411, %v411
        %v428 = vpack.c.b16 %v412, %v412
        %v429 = vpack.c.b16 %v413, %v413
        %v430 = vpack.c.b16 %v414, %v414
        %v431 = vpack.c.b16 %v415, %v415
        %v432 = vpack.c.b16 %v416, %v416
        %v433 = vpack.c.b16 %v417, %v417
        %v434 = vpack.c.b16 %v418, %v418
        %v435 = vpack.c.b16 %v419, %v419
        %v436 = vpack.c.b16 %v420, %v420
        %v437 = vpack.c.b16 %v421, %v421
        %v438 = vpack.c.b16 %v422, %v422
        %v439 = vpack.c.b16 %v423, %v423
        %v440 = vpack.c.b16 %v424, %v424
        %457 = vst [vmem:[%s207] sm:$0xf] %v425
        %458 = vst [vmem:[%s207 + $0x4] sm:$0xf] %v426
        %459 = vst [vmem:[%s207 + $0x8] sm:$0xf] %v427
        %460 = vst [vmem:[%s207 + $0xc] sm:$0xf] %v428
        %461 = vst [vmem:[%s207 + $0x10] sm:$0xf] %v429
        %462 = vst [vmem:[%s207 + $0x14] sm:$0xf] %v430
        %463 = vst [vmem:[%s207 + $0x18] sm:$0xf] %v431
        %464 = vst [vmem:[%s207 + $0x1c] sm:$0xf] %v432
        %465 = vst [vmem:[%s207 + $0x20] sm:$0xf] %v433
        %466 = vst [vmem:[%s207 + $0x24] sm:$0xf] %v434
        %467 = vst [vmem:[%s207 + $0x28] sm:$0xf] %v435
        %468 = vst [vmem:[%s207 + $0x2c] sm:$0xf] %v436
        %469 = vst [vmem:[%s207 + $0x30] sm:$0xf] %v437
        %470 = vst [vmem:[%s207 + $0x34] sm:$0xf] %v438
        %471 = vst [vmem:[%s207 + $0x38] sm:$0xf] %v439
        %472 = vst [vmem:[%s207 + $0x3c] sm:$0xf] %v440
        %vm473 = vcmask 64512
        %474 = vst.msk [vmem:[%s214] sm:$0xff] %vm473, %v317
        %475 = vst.msk [vmem:[%s214 + $0x8] sm:$0xff] %vm473, %v321
        %476 = vst.msk [vmem:[%s214 + $0x10] sm:$0xff] %vm473, %v327
        %477 = vst.msk [vmem:[%s214 + $0x18] sm:$0xff] %vm473, %v331
        %478 = vst.msk [vmem:[%s214 + $0x20] sm:$0xff] %vm473, %v337
        %479 = vst.msk [vmem:[%s214 + $0x28] sm:$0xff] %vm473, %v341
        %480 = vst.msk [vmem:[%s214 + $0x30] sm:$0xff] %vm473, %v347
        %481 = vst.msk [vmem:[%s214 + $0x38] sm:$0xff] %vm473, %v351
        %482 = vst.msk [vmem:[%s214 + $0x40] sm:$0xff] %vm473, %v357
        %483 = vst.msk [vmem:[%s214 + $0x48] sm:$0xff] %vm473, %v361
        %484 = vst.msk [vmem:[%s214 + $0x50] sm:$0xff] %vm473, %v367
        %485 = vst.msk [vmem:[%s214 + $0x58] sm:$0xff] %vm473, %v371
        %486 = vst.msk [vmem:[%s214 + $0x60] sm:$0xff] %vm473, %v377
        %487 = vst.msk [vmem:[%s214 + $0x68] sm:$0xff] %vm473, %v381
        %488 = vst.msk [vmem:[%s214 + $0x70] sm:$0xff] %vm473, %v387
        %489 = vst.msk [vmem:[%s214 + $0x78] sm:$0xff] %vm473, %v391
        %s490 = sand.u32 %s80, 1
        %s491 = scalar_lea.sflag [#allocation4], %s490
        %s492 = sand.u32 %s80, 1
        %s493 = smul.addr %s492, 64
        %s494 = scalar_lea.vmem [#allocation7], %s493
        %s495 = sand.u32 %s106, 1
        %s496 = scalar_lea.sflag [#allocation9], %s495
        %s497 = sand.u32 %s106, 1
        %s498 = smul.addr %s497, 128
        %s499 = scalar_lea.vmem [#allocation8], %s498
        // Predicated region
        $region37: #{simple_gat_forward.5} parent=27 // pred_check
          %p500 = pneg %p90
        $region38: #{simple_gat_forward.5} parent=27 // pred_check_branch
          %502 = sbr.rel (%p500) target = $region40
        $region39: #{simple_gat_forward.5} parent=27 // pred_region
          %s503 = smul.u32 16, %s25
          %s505 = ssub.s32 1024, 1024
          %506 = vsyncadd %s491, %s505
          %s507 = smul.addr %s503, 64
          %s508 = scalar_lea.hbm %s2, %s507
          %s509 = sshll.u32 %s494, 4
          %s510 = int_to_ptr.vmem [resolvable:$true] %s509
          %515 = dma.vmem_to_hbm [thread:$0]  %s510, 1024, %s508, %s491, 64, 64, 4
        $region40: #{simple_gat_forward.5} parent=27 // pred_fallthru
          _
        // Predicated region
        $region41: #{simple_gat_forward.5} parent=27 // pred_check
          %p516 = pneg %p116
        $region42: #{simple_gat_forward.5} parent=27 // pred_check_branch
          %518 = sbr.rel (%p516) target = $region44
        $region43: #{simple_gat_forward.5} parent=27 // pred_region
          %s519 = smul.u32 16, %s25
          %s521 = ssub.s32 2048, 2048
          %522 = vsyncadd %s496, %s521
          %s523 = smul.addr %s519, 128
          %s524 = scalar_lea.hbm %s3, %s523
          %s525 = sshll.u32 %s499, 4
          %s526 = int_to_ptr.vmem [resolvable:$true] %s525
          %531 = dma.vmem_to_hbm [thread:$0]  %s526, 2048, %s524, %s496, 128, 128, 8
        $region44: #{simple_gat_forward.5} parent=27 // pred_fallthru
          _
      $region28: #{simple_gat_forward.5} parent=5 // pred_fallthru
        _
      %p532 = scmp.le.s32.totalorder 2, %s20
      // Predicated region
      $region45: #{simple_gat_forward.5} parent=5 // pred_check
        %p533 = pneg %p532
      $region46: #{simple_gat_forward.5} parent=5 // pred_check_branch
        %535 = sbr.rel (%p533) target = $region48
      $region47: #{simple_gat_forward.5} parent=5 // pred_region
        %s536 = ssub.s32 %s20, 2
        // Predicated region
        $region49: #{simple_gat_forward.5} parent=47 // pred_check
          %p537 = pneg %p96
        $region50: #{simple_gat_forward.5} parent=47 // pred_check_branch
          %539 = sbr.rel (%p537) target = $region52
        $region51: #{simple_gat_forward.5} parent=47 // pred_region
          %s540 = sand.u32 %s81, 1
          %s541 = scalar_lea.sflag [#allocation4], %s540
          %s542 = sand.u32 %s81, 1
          %s543 = smul.addr %s542, 64
          %s544 = scalar_lea.vmem [#allocation7], %s543
          %545 = dma.done %s541, 1024
        $region52: #{simple_gat_forward.5} parent=47 // pred_fallthru
          _
        // Predicated region
        $region53: #{simple_gat_forward.5} parent=47 // pred_check
          %p546 = pneg %p122
        $region54: #{simple_gat_forward.5} parent=47 // pred_check_branch
          %548 = sbr.rel (%p546) target = $region56
        $region55: #{simple_gat_forward.5} parent=47 // pred_region
          %s549 = sand.u32 %s107, 1
          %s550 = scalar_lea.sflag [#allocation9], %s549
          %s551 = sand.u32 %s107, 1
          %s552 = smul.addr %s551, 128
          %s553 = scalar_lea.vmem [#allocation8], %s552
          %554 = dma.done %s550, 2048
        $region56: #{simple_gat_forward.5} parent=47 // pred_fallthru
          _
      $region48: #{simple_gat_forward.5} parent=5 // pred_fallthru
        _
    $region6: #{simple_gat_forward.5} parent=1 // loop_footer
      %s24 = sadd.s32 1, %s20
    $region7: #{simple_gat_forward.5} parent=1 // loop_footer_branch
      %19 = sbr.rel target = $region3
    $region8: #{simple_gat_forward.5} parent=1 // loop_exit
      _
    %555 = vsyncpa [#allocation3], 1
    %s556 = scalar_lea.sflag [#allocation3], 1
    %557 = vsyncpa %s556, 1
    %558 = vsyncpa [#allocation6], 1
    %559 = vsyncpa [#allocation4], 1
    %s560 = scalar_lea.sflag [#allocation4], 1
    %561 = vsyncpa %s560, 1
    %562 = vsyncpa [#allocation9], 1
    %s563 = scalar_lea.sflag [#allocation9], 1
    %564 = vsyncpa %s563, 1

// kernel: simple_gat_forward.7
$region0: #{simple_gat_forward.7}
  #allocation0 [shape = 'u32[]', space=smem, size = 0x4, offset = 0x4, fixed_abs, tag = 'smem constant byte address 0x4 - core index']
  #allocation1 [shape = 'u32[144,128]{1,0:T(1,128)}', space=vmem, size = 0x12000, scoped, tag = 'internal scratch']
  %s0 = inlined_call_operand.hbm [shape: bf16[512,128], index: 0, kind: input, shape index: {}]
  %s1 = inlined_call_operand.hbm [shape: bf16[128,136], index: 1, kind: input, shape index: {}]
  %s2 = inlined_call_operand.hbm [shape: bf16[512,128], index: 2, kind: output, shape index: {0}]
  %s3 = inlined_call_operand.hbm [shape: f32[512,8], index: 3, kind: output, shape index: {1}]
  %4 = xla_tuple %s2, %s3
  %s5 = sld [smem:[#allocation0]]
  $region57: #{simple_gat_forward.7} parent=0
    _
  %s7 = ssub.s32 1, %s5
  %s8 = scalar_select 0, %s7, %s5
  $region1: #{simple_gat_forward.7} parent=0
    #allocation2 [shape = 'u8[65536]{0}', space=vmem, size = 0x10000, scoped, tag = 'input window, operand 0']
    #allocation3 [shape = 's32[2]{0}', space=sflag, size = 0x8, scoped, tag = 'scoped memory for simple_gat_forward.7']
    #allocation4 [shape = 's32[2]{0}', space=sflag, size = 0x8, scoped, tag = 'scoped memory for simple_gat_forward.7']
    #allocation5 [shape = 'u8[65536]{0}', space=vmem, size = 0x10000, scoped, tag = 'input window, operand 1, single buffered']
    #allocation6 [shape = 's32[1]{0}', space=sflag, size = 0x4, scoped, tag = 'scoped memory for simple_gat_forward.7']
    #allocation7 [shape = 'u8[65536]{0}', space=vmem, size = 0x10000, scoped, tag = 'output window, operand 0']
    #allocation8 [shape = 'u8[131072]{0}', space=vmem, size = 0x20000, scoped, tag = 'output window, operand 1']
    #allocation9 [shape = 's32[2]{0}', space=sflag, size = 0x8, scoped, tag = 'scoped memory for simple_gat_forward.7']
    %9 = vsyncpa [#allocation3], 0
    %s10 = scalar_lea.sflag [#allocation3], 1
    %11 = vsyncpa %s10, 0
    %12 = vsyncpa [#allocation6], 0
    %13 = vsyncpa [#allocation4], 0
    %s14 = scalar_lea.sflag [#allocation4], 1
    %15 = vsyncpa %s14, 0
    %16 = vsyncpa [#allocation9], 0
    %s17 = scalar_lea.sflag [#allocation9], 1
    %18 = vsyncpa %s17, 0
    loop: start=0, step=1, limit=6
    $region2: #{simple_gat_forward.7} parent=1 // loop_pre_header
      _
    $region3: #{simple_gat_forward.7} parent=1 // loop_header
      %s20 = sphi 0, %s24
      %p21 = scmp.ge.s32.totalorder %s20, 6
      %s30 = sphi 0, %s32
      %s33 = sphi 0, %s30
      %s34 = sphi 0, %s33
      %s50 = sphi 0, %s34
      %s54 = sphi 0, %s54
      %s56 = sphi 0, %s54
      %s57 = sphi 0, %s56
      %s71 = sphi 0, %s57
      %s77 = sphi 0, %s79
      %s80 = sphi 0, %s77
      %s81 = sphi 0, %s80
      %s97 = sphi 0, %s81
      %s103 = sphi 0, %s105
      %s106 = sphi 0, %s103
      %s107 = sphi 0, %s106
      %s123 = sphi 0, %s107
    $region4: #{simple_gat_forward.7} parent=1 // loop_header_branch
      %23 = sbr.rel (%p21) target = $region8
    $region5: #{simple_gat_forward.7} parent=1 // loop_body
      %s25 = ssub.s32 %s20, 1
      %s26 = ssub.s32 %s20, 2
      %s27 = sadd.s32 %s20, 1
      %s28 = ssub.s32 %s20, %s27
      %p29 = scmp.eq.s32.totalorder %s28, 0
      %s31 = sadd.s32 %s30, 1
      %s32 = scalar_select %p29, %s30, %s31
      %p35 = pneg %p29
      %p36 = scmp.eq.s32.totalorder %s20, 3
      %p37 = por %p35, %p36
      %p38 = scmp.ne.s32.totalorder %s30, %s33
      %p39 = scmp.eq.s32.totalorder %s20, 0
      %p40 = por %p38, %p39
      %p41 = scmp.ne.s32.totalorder %s30, %s33
      %p42 = scmp.eq.s32.totalorder %s25, 3
      %p43 = por %p41, %p42
      %p44 = scmp.ne.s32.totalorder %s33, %s34
      %p45 = scmp.eq.s32.totalorder %s25, 0
      %p46 = por %p44, %p45
      %p47 = scmp.ne.s32.totalorder %s33, %s34
      %p48 = scmp.eq.s32.totalorder %s26, 3
      %p49 = por %p47, %p48
      %p51 = scmp.ne.s32.totalorder %s34, %s50
      %p52 = scmp.eq.s32.totalorder %s26, 0
      %p53 = por %p51, %p52
      %s55 = sadd.s32 %s54, 1
      %p58 = scmp.eq.s32.totalorder %s20, 3
      %p59 = scmp.ne.s32.totalorder %s54, %s56
      %p60 = scmp.eq.s32.totalorder %s20, 0
      %p61 = por %p59, %p60
      %p62 = scmp.ne.s32.totalorder %s54, %s56
      %p63 = scmp.eq.s32.totalorder %s25, 3
      %p64 = por %p62, %p63
      %p65 = scmp.ne.s32.totalorder %s56, %s57
      %p66 = scmp.eq.s32.totalorder %s25, 0
      %p67 = por %p65, %p66
      %p68 = scmp.ne.s32.totalorder %s56, %s57
      %p69 = scmp.eq.s32.totalorder %s26, 3
      %p70 = por %p68, %p69
      %p72 = scmp.ne.s32.totalorder %s57, %s71
      %p73 = scmp.eq.s32.totalorder %s26, 0
      %p74 = por %p72, %p73
      %s75 = ssub.s32 %s20, %s27
      %p76 = scmp.eq.s32.totalorder %s75, 0
      %s78 = sadd.s32 %s77, 1
      %s79 = scalar_select %p76, %s77, %s78
      %p82 = pneg %p76
      %p83 = scmp.eq.s32.totalorder %s20, 3
      %p84 = por %p82, %p83
      %p85 = scmp.ne.s32.totalorder %s77, %s80
      %p86 = scmp.eq.s32.totalorder %s20, 0
      %p87 = por %p85, %p86
      %p88 = scmp.ne.s32.totalorder %s77, %s80
      %p89 = scmp.eq.s32.totalorder %s25, 3
      %p90 = por %p88, %p89
      %p91 = scmp.ne.s32.totalorder %s80, %s81
      %p92 = scmp.eq.s32.totalorder %s25, 0
      %p93 = por %p91, %p92
      %p94 = scmp.ne.s32.totalorder %s80, %s81
      %p95 = scmp.eq.s32.totalorder %s26, 3
      %p96 = por %p94, %p95
      %p98 = scmp.ne.s32.totalorder %s81, %s97
      %p99 = scmp.eq.s32.totalorder %s26, 0
      %p100 = por %p98, %p99
      %s101 = ssub.s32 %s20, %s27
      %p102 = scmp.eq.s32.totalorder %s101, 0
      %s104 = sadd.s32 %s103, 1
      %s105 = scalar_select %p102, %s103, %s104
      %p108 = pneg %p102
      %p109 = scmp.eq.s32.totalorder %s20, 3
      %p110 = por %p108, %p109
      %p111 = scmp.ne.s32.totalorder %s103, %s106
      %p112 = scmp.eq.s32.totalorder %s20, 0
      %p113 = por %p111, %p112
      %p114 = scmp.ne.s32.totalorder %s103, %s106
      %p115 = scmp.eq.s32.totalorder %s25, 3
      %p116 = por %p114, %p115
      %p117 = scmp.ne.s32.totalorder %s106, %s107
      %p118 = scmp.eq.s32.totalorder %s25, 0
      %p119 = por %p117, %p118
      %p120 = scmp.ne.s32.totalorder %s106, %s107
      %p121 = scmp.eq.s32.totalorder %s26, 3
      %p122 = por %p120, %p121
      %p124 = scmp.ne.s32.totalorder %s107, %s123
      %p125 = scmp.eq.s32.totalorder %s26, 0
      %p126 = por %p124, %p125
      %p127 = scmp.le.s32.totalorder 1, %s20
      %p128 = scmp.lt.s32.totalorder %s20, 5
      %p129 = pnand %p127, %p128
      %p130 = pneg %p129
      // Predicated region
      $region9: #{simple_gat_forward.7} parent=5 // pred_check
        _
      $region10: #{simple_gat_forward.7} parent=5 // pred_check_branch
        %132 = sbr.rel (%p129) target = $region12
      $region11: #{simple_gat_forward.7} parent=5 // pred_region
        %s133 = ssub.s32 %s20, 1
        // Predicated region
        $region13: #{simple_gat_forward.7} parent=11 // pred_check
          %p134 = pneg %p67
        $region14: #{simple_gat_forward.7} parent=11 // pred_check_branch
          %136 = sbr.rel (%p134) target = $region16
        $region15: #{simple_gat_forward.7} parent=11 // pred_region
          %s138 = ssub.s32 2048, 2048
          %139 = vsyncadd [#allocation6], %s138
          %s140 = sshll.u32 [#allocation5], 4
          %s141 = int_to_ptr.vmem [resolvable:$true] %s140
          %146 = dma.hbm_to_vmem [thread:$0]  %s1, 2048, %s141, [#allocation6], 128, 128, 8
        $region16: #{simple_gat_forward.7} parent=11 // pred_fallthru
          _
      $region12: #{simple_gat_forward.7} parent=5 // pred_fallthru
        _
      %p147 = scmp.lt.s32.totalorder %s20, 4
      // Predicated region
      $region17: #{simple_gat_forward.7} parent=5 // pred_check
        %p148 = pneg %p147
      $region18: #{simple_gat_forward.7} parent=5 // pred_check_branch
        %150 = sbr.rel (%p148) target = $region20
      $region19: #{simple_gat_forward.7} parent=5 // pred_region
        // Predicated region
        $region21: #{simple_gat_forward.7} parent=19 // pred_check
          %p151 = pneg %p40
        $region22: #{simple_gat_forward.7} parent=19 // pred_check_branch
          %153 = sbr.rel (%p151) target = $region24
        $region23: #{simple_gat_forward.7} parent=19 // pred_region
          %s154 = sand.u32 %s30, 1
          %s155 = scalar_lea.sflag [#allocation3], %s154
          %s156 = sand.u32 %s30, 1
          %s157 = smul.addr %s156, 64
          %s158 = scalar_lea.vmem [#allocation2], %s157
          %s159 = smul.u32 16, %s20
          %s161 = ssub.s32 1024, 1024
          %162 = vsyncadd %s155, %s161
          %s163 = smul.addr %s159, 64
          %s164 = scalar_lea.hbm %s0, %s163
          %s165 = sshll.u32 %s158, 4
          %s166 = int_to_ptr.vmem [resolvable:$true] %s165
          %171 = dma.hbm_to_vmem [thread:$0]  %s164, 1024, %s166, %s155, 64, 64, 4
        $region24: #{simple_gat_forward.7} parent=19 // pred_fallthru
          _
      $region20: #{simple_gat_forward.7} parent=5 // pred_fallthru
        _
      %p172 = scmp.le.s32.totalorder 1, %s20
      %p173 = scmp.lt.s32.totalorder %s20, 5
      %p174 = pnand %p172, %p173
      %p175 = pneg %p174
      // Predicated region
      $region25: #{simple_gat_forward.7} parent=5 // pred_check
        _
      $region26: #{simple_gat_forward.7} parent=5 // pred_check_branch
        %177 = sbr.rel (%p174) target = $region28
      $region27: #{simple_gat_forward.7} parent=5 // pred_region
        %s178 = ssub.s32 %s20, 1
        %s179 = sand.u32 %s33, 1
        %s180 = scalar_lea.sflag [#allocation3], %s179
        %s181 = sand.u32 %s33, 1
        %s182 = smul.addr %s181, 64
        %s183 = scalar_lea.vmem [#allocation2], %s182
        // Predicated region
        $region29: #{simple_gat_forward.7} parent=27 // pred_check
          %p184 = pneg %p46
        $region30: #{simple_gat_forward.7} parent=27 // pred_check_branch
          %186 = sbr.rel (%p184) target = $region32
        $region31: #{simple_gat_forward.7} parent=27 // pred_region
          %187 = dma.done %s180, 1024
        $region32: #{simple_gat_forward.7} parent=27 // pred_fallthru
          _
        // Predicated region
        $region33: #{simple_gat_forward.7} parent=27 // pred_check
          %p188 = pneg %p67
        $region34: #{simple_gat_forward.7} parent=27 // pred_check_branch
          %190 = sbr.rel (%p188) target = $region36
        $region35: #{simple_gat_forward.7} parent=27 // pred_region
          %191 = dma.done [#allocation6], 2048
        $region36: #{simple_gat_forward.7} parent=27 // pred_fallthru
          _
        %s192 = sand.u32 %s33, 1
        %s193 = scalar_lea.sflag [#allocation3], %s192
        %s194 = sand.u32 %s33, 1
        %s195 = smul.addr %s194, 64
        %s196 = scalar_lea.vmem [#allocation2], %s195
        %p197 = pneg %p46
        %p198 = pneg %p43
        %p199 = pneg %p67
        %p200 = pneg %p64
        %p201 = pneg %p93
        %p202 = pneg %p90
        %s203 = sand.u32 %s80, 1
        %s204 = scalar_lea.sflag [#allocation4], %s203
        %s205 = sand.u32 %s80, 1
        %s206 = smul.addr %s205, 64
        %s207 = scalar_lea.vmem [#allocation7], %s206
        %p208 = pneg %p119
        %p209 = pneg %p116
        %s210 = sand.u32 %s106, 1
        %s211 = scalar_lea.sflag [#allocation9], %s210
        %s212 = sand.u32 %s106, 1
        %s213 = smul.addr %s212, 128
        %s214 = scalar_lea.vmem [#allocation8], %s213
        %s215 = smul.u32 16, %s25
        %s216 = smul.u32 16, %s25
        %s217 = smul.u32 16, %s25
        %v219 = vld [vmem:[%s183] sm:$0xf]
        %v220 = vld [vmem:[%s183 + $0x4] sm:$0xf]
        %v221 = vld [vmem:[%s183 + $0x8] sm:$0xf]
        %v222 = vld [vmem:[%s183 + $0xc] sm:$0xf]
        %v223 = vld [vmem:[%s183 + $0x10] sm:$0xf]
        %v224 = vld [vmem:[%s183 + $0x14] sm:$0xf]
        %v225 = vld [vmem:[%s183 + $0x18] sm:$0xf]
        %v226 = vld [vmem:[%s183 + $0x1c] sm:$0xf]
        %v227 = vld [vmem:[%s183 + $0x20] sm:$0xf]
        %v228 = vld [vmem:[%s183 + $0x24] sm:$0xf]
        %v229 = vld [vmem:[%s183 + $0x28] sm:$0xf]
        %v230 = vld [vmem:[%s183 + $0x2c] sm:$0xf]
        %v231 = vld [vmem:[%s183 + $0x30] sm:$0xf]
        %v232 = vld [vmem:[%s183 + $0x34] sm:$0xf]
        %v233 = vld [vmem:[%s183 + $0x38] sm:$0xf]
        %v234 = vld [vmem:[%s183 + $0x3c] sm:$0xf]
        %v235 = vld [vmem:[#allocation5] sm:$0xff]
        %v236 = vld [vmem:[#allocation5 + $0x8] sm:$0xff]
        %v237 = vld [vmem:[#allocation5 + $0x10] sm:$0xff]
        %v238 = vld [vmem:[#allocation5 + $0x18] sm:$0xff]
        %v239 = vld [vmem:[#allocation5 + $0x20] sm:$0xff]
        %v240 = vld [vmem:[#allocation5 + $0x28] sm:$0xff]
        %v241 = vld [vmem:[#allocation5 + $0x30] sm:$0xff]
        %v242 = vld [vmem:[#allocation5 + $0x38] sm:$0xff]
        %v243 = vld [vmem:[#allocation5 + $0x40] sm:$0xff]
        %v244 = vld [vmem:[#allocation5 + $0x48] sm:$0xff]
        %v245 = vld [vmem:[#allocation5 + $0x50] sm:$0xff]
        %v246 = vld [vmem:[#allocation5 + $0x58] sm:$0xff]
        %v247 = vld [vmem:[#allocation5 + $0x60] sm:$0xff]
        %v248 = vld [vmem:[#allocation5 + $0x68] sm:$0xff]
        %v249 = vld [vmem:[#allocation5 + $0x70] sm:$0xff]
        %v250 = vld [vmem:[#allocation5 + $0x78] sm:$0xff]
        %v267 = vunpack.c.l.b16 %v219
        %v268 = vunpack.c.l.b16 %v220
        %v269 = vunpack.c.l.b16 %v221
        %v270 = vunpack.c.l.b16 %v222
        %v271 = vunpack.c.l.b16 %v223
        %v272 = vunpack.c.l.b16 %v224
        %v273 = vunpack.c.l.b16 %v225
        %v274 = vunpack.c.l.b16 %v226
        %v275 = vunpack.c.l.b16 %v227
        %v276 = vunpack.c.l.b16 %v228
        %v277 = vunpack.c.l.b16 %v229
        %v278 = vunpack.c.l.b16 %v230
        %v279 = vunpack.c.l.b16 %v231
        %v280 = vunpack.c.l.b16 %v232
        %v281 = vunpack.c.l.b16 %v233
        %v282 = vunpack.c.l.b16 %v234
        %v283 = vpack.c.b16 %v268, %v267
        %v284 = vpack.c.b16 %v270, %v269
        %v285 = vpack.c.b16 %v272, %v271
        %v286 = vpack.c.b16 %v274, %v273
        %v287 = vpack.c.b16 %v276, %v275
        %v288 = vpack.c.b16 %v278, %v277
        %v289 = vpack.c.b16 %v280, %v279
        %v290 = vpack.c.b16 %v282, %v281
        %v315 = vunpack.c.l.b16 %v235
        %v316 = vunpack.c.h.b16 %v235
        %v317 = vunpack.c.l.b16 %v236
        %v318 = vunpack.c.h.b16 %v236
        %v319 = vunpack.c.l.b16 %v237
        %v320 = vunpack.c.h.b16 %v237
        %v321 = vunpack.c.l.b16 %v238
        %v322 = vunpack.c.h.b16 %v238
        %v323 = vunpack.c.l.b16 %v239
        %v324 = vunpack.c.h.b16 %v239
        %v325 = vunpack.c.l.b16 %v240
        %v326 = vunpack.c.h.b16 %v240
        %v327 = vunpack.c.l.b16 %v241
        %v328 = vunpack.c.h.b16 %v241
        %v329 = vunpack.c.l.b16 %v242
        %v330 = vunpack.c.h.b16 %v242
        %v331 = vunpack.c.l.b16 %v243
        %v332 = vunpack.c.h.b16 %v243
        %v333 = vunpack.c.l.b16 %v244
        %v334 = vunpack.c.h.b16 %v244
        %v335 = vunpack.c.l.b16 %v245
        %v336 = vunpack.c.h.b16 %v245
        %v337 = vunpack.c.l.b16 %v246
        %v338 = vunpack.c.h.b16 %v246
        %v339 = vunpack.c.l.b16 %v247
        %v340 = vunpack.c.h.b16 %v247
        %v341 = vunpack.c.l.b16 %v248
        %v342 = vunpack.c.h.b16 %v248
        %v343 = vunpack.c.l.b16 %v249
        %v344 = vunpack.c.h.b16 %v249
        %v345 = vunpack.c.l.b16 %v250
        %v346 = vunpack.c.h.b16 %v250
        %v347 = vpack.c.b16 %v317, %v315
        %v348 = vpack.c.b16 %v318, %v316
        %v349 = vpack.c.b16 %v321, %v319
        %v350 = vpack.c.b16 %v322, %v320
        %v351 = vpack.c.b16 %v325, %v323
        %v352 = vpack.c.b16 %v326, %v324
        %v353 = vpack.c.b16 %v329, %v327
        %v354 = vpack.c.b16 %v330, %v328
        %v355 = vpack.c.b16 %v333, %v331
        %v356 = vpack.c.b16 %v334, %v332
        %v357 = vpack.c.b16 %v337, %v335
        %v358 = vpack.c.b16 %v338, %v336
        %v359 = vpack.c.b16 %v341, %v339
        %v360 = vpack.c.b16 %v342, %v340
        %v361 = vpack.c.b16 %v345, %v343
        %v362 = vpack.c.b16 %v346, %v344
        %379 = vmatprep.subr.bf16.mxu0 %v348
        %380 = vmatpush1.bf16.msra.mxu0 %v347
        %381 = vmatprep.subr.bf16.mxu0 %v350
        %382 = vmatpush1.bf16.msra.mxu0 %v349
        %383 = vmatprep.subr.bf16.mxu0 %v352
        %384 = vmatpush1.bf16.msra.mxu0 %v351
        %385 = vmatprep.subr.bf16.mxu0 %v354
        %386 = vmatpush1.bf16.msra.mxu0 %v353
        %387 = vmatprep.subr.bf16.mxu0 %v356
        %388 = vmatpush1.bf16.msra.mxu0 %v355
        %389 = vmatprep.subr.bf16.mxu0 %v358
        %390 = vmatpush1.bf16.msra.mxu0 %v357
        %391 = vmatprep.subr.bf16.mxu0 %v360
        %392 = vmatpush1.bf16.msra.mxu0 %v359
        %393 = vmatprep.subr.bf16.mxu0 %v362
        %394 = vmatpush1.bf16.msra.mxu0 %v361
        %395 = vmatprep.subr.bf16.mxu0 0
        %396 = vmatpush1.bf16.msra.mxu0 0
        %397 = vmatprep.subr.bf16.mxu0 0
        %398 = vmatpush1.bf16.msra.mxu0 0
        %399 = vmatprep.subr.bf16.mxu0 0
        %400 = vmatpush1.bf16.msra.mxu0 0
        %401 = vmatprep.subr.bf16.mxu0 0
        %402 = vmatpush1.bf16.msra.mxu0 0
        %403 = vmatprep.subr.bf16.mxu0 0
        %404 = vmatpush1.bf16.msra.mxu0 0
        %405 = vmatprep.subr.bf16.mxu0 0
        %406 = vmatpush1.bf16.msra.mxu0 0
        %407 = vmatprep.subr.bf16.mxu0 0
        %408 = vmatpush1.bf16.msra.mxu0 0
        %409 = vmatprep.subr.bf16.mxu0 0
        %410 = vmatpush1.bf16.msra.mxu0 0
        %411 = vmatprep.mubr.bf16.mxu0 0
        %412 = vmatmul.mubr.bf16.gmra.mrb[0].mxu0 %v283
        %v413 = vpop.f32.mrb[0].mxu0
        %v414 = vadd.f32 0.0, %v413
        %v415 = vpop.f32.mrb[0].mxu0
        %v416 = vadd.f32 0.0, %v415
        %v417 = vpop.f32.mrb[0].mxu0
        %v418 = vadd.f32 0.0, %v417
        %v419 = vpop.f32.mrb[0].mxu0
        %v420 = vadd.f32 0.0, %v419
        %421 = vmatprep.mubr.bf16.mxu0 0
        %422 = vmatmul.mubr.bf16.gmra.mrb[0].mxu0 %v284
        %v423 = vpop.f32.mrb[0].mxu0
        %v424 = vadd.f32 0.0, %v423
        %v425 = vpop.f32.mrb[0].mxu0
        %v426 = vadd.f32 0.0, %v425
        %v427 = vpop.f32.mrb[0].mxu0
        %v428 = vadd.f32 0.0, %v427
        %v429 = vpop.f32.mrb[0].mxu0
        %v430 = vadd.f32 0.0, %v429
        %431 = vmatprep.mubr.bf16.mxu0 0
        %432 = vmatmul.mubr.bf16.gmra.mrb[0].mxu0 %v285
        %v433 = vpop.f32.mrb[0].mxu0
        %v434 = vadd.f32 0.0, %v433
        %v435 = vpop.f32.mrb[0].mxu0
        %v436 = vadd.f32 0.0, %v435
        %v437 = vpop.f32.mrb[0].mxu0
        %v438 = vadd.f32 0.0, %v437
        %v439 = vpop.f32.mrb[0].mxu0
        %v440 = vadd.f32 0.0, %v439
        %441 = vmatprep.mubr.bf16.mxu0 0
        %442 = vmatmul.mubr.bf16.gmra.mrb[0].mxu0 %v286
        %v443 = vpop.f32.mrb[0].mxu0
        %v444 = vadd.f32 0.0, %v443
        %v445 = vpop.f32.mrb[0].mxu0
        %v446 = vadd.f32 0.0, %v445
        %v447 = vpop.f32.mrb[0].mxu0
        %v448 = vadd.f32 0.0, %v447
        %v449 = vpop.f32.mrb[0].mxu0
        %v450 = vadd.f32 0.0, %v449
        %451 = vmatprep.mubr.bf16.mxu0 0
        %452 = vmatmul.mubr.bf16.gmra.mrb[0].mxu0 %v287
        %v453 = vpop.f32.mrb[0].mxu0
        %v454 = vadd.f32 0.0, %v453
        %v455 = vpop.f32.mrb[0].mxu0
        %v456 = vadd.f32 0.0, %v455
        %v457 = vpop.f32.mrb[0].mxu0
        %v458 = vadd.f32 0.0, %v457
        %v459 = vpop.f32.mrb[0].mxu0
        %v460 = vadd.f32 0.0, %v459
        %461 = vmatprep.mubr.bf16.mxu0 0
        %462 = vmatmul.mubr.bf16.gmra.mrb[0].mxu0 %v288
        %v463 = vpop.f32.mrb[0].mxu0
        %v464 = vadd.f32 0.0, %v463
        %v465 = vpop.f32.mrb[0].mxu0
        %v466 = vadd.f32 0.0, %v465
        %v467 = vpop.f32.mrb[0].mxu0
        %v468 = vadd.f32 0.0, %v467
        %v469 = vpop.f32.mrb[0].mxu0
        %v470 = vadd.f32 0.0, %v469
        %471 = vmatprep.mubr.bf16.mxu0 0
        %472 = vmatmul.mubr.bf16.gmra.mrb[0].mxu0 %v289
        %v473 = vpop.f32.mrb[0].mxu0
        %v474 = vadd.f32 0.0, %v473
        %v475 = vpop.f32.mrb[0].mxu0
        %v476 = vadd.f32 0.0, %v475
        %v477 = vpop.f32.mrb[0].mxu0
        %v478 = vadd.f32 0.0, %v477
        %v479 = vpop.f32.mrb[0].mxu0
        %v480 = vadd.f32 0.0, %v479
        %481 = vmatprep.mubr.bf16.mxu0 0
        %482 = vmatmul.mubr.bf16.gmra.mrb[0].mxu0 %v290
        %v483 = vpop.f32.mrb[0].mxu0
        %v484 = vadd.f32 0.0, %v483
        %v485 = vpop.f32.mrb[0].mxu0
        %v486 = vadd.f32 0.0, %v485
        %v487 = vpop.f32.mrb[0].mxu0
        %v488 = vadd.f32 0.0, %v487
        %v489 = vpop.f32.mrb[0].mxu0
        %v490 = vadd.f32 0.0, %v489
        %491 = vdwg.mxu0
        %v492 = vpack.c.bf16 %v418, %v414
        %v493 = vpack.c.bf16 %v428, %v424
        %v494 = vpack.c.bf16 %v438, %v434
        %v495 = vpack.c.bf16 %v448, %v444
        %v496 = vpack.c.bf16 %v458, %v454
        %v497 = vpack.c.bf16 %v468, %v464
        %v498 = vpack.c.bf16 %v478, %v474
        %v499 = vpack.c.bf16 %v488, %v484
        %v508 = vunpack.c.l.b16 %v492
        %v509 = vunpack.c.h.b16 %v492
        %v510 = vunpack.c.l.b16 %v493
        %v511 = vunpack.c.h.b16 %v493
        %v512 = vunpack.c.l.b16 %v494
        %v513 = vunpack.c.h.b16 %v494
        %v514 = vunpack.c.l.b16 %v495
        %v515 = vunpack.c.h.b16 %v495
        %v516 = vunpack.c.l.b16 %v496
        %v517 = vunpack.c.h.b16 %v496
        %v518 = vunpack.c.l.b16 %v497
        %v519 = vunpack.c.h.b16 %v497
        %v520 = vunpack.c.l.b16 %v498
        %v521 = vunpack.c.h.b16 %v498
        %v522 = vunpack.c.l.b16 %v499
        %v523 = vunpack.c.h.b16 %v499
        %v524 = vpack.c.b16 %v508, %v508
        %v525 = vpack.c.b16 %v509, %v509
        %v526 = vpack.c.b16 %v510, %v510
        %v527 = vpack.c.b16 %v511, %v511
        %v528 = vpack.c.b16 %v512, %v512
        %v529 = vpack.c.b16 %v513, %v513
        %v530 = vpack.c.b16 %v514, %v514
        %v531 = vpack.c.b16 %v515, %v515
        %v532 = vpack.c.b16 %v516, %v516
        %v533 = vpack.c.b16 %v517, %v517
        %v534 = vpack.c.b16 %v518, %v518
        %v535 = vpack.c.b16 %v519, %v519
        %v536 = vpack.c.b16 %v520, %v520
        %v537 = vpack.c.b16 %v521, %v521
        %v538 = vpack.c.b16 %v522, %v522
        %v539 = vpack.c.b16 %v523, %v523
        %556 = vst [vmem:[%s207] sm:$0xf] %v524
        %557 = vst [vmem:[%s207 + $0x4] sm:$0xf] %v525
        %558 = vst [vmem:[%s207 + $0x8] sm:$0xf] %v526
        %559 = vst [vmem:[%s207 + $0xc] sm:$0xf] %v527
        %560 = vst [vmem:[%s207 + $0x10] sm:$0xf] %v528
        %561 = vst [vmem:[%s207 + $0x14] sm:$0xf] %v529
        %562 = vst [vmem:[%s207 + $0x18] sm:$0xf] %v530
        %563 = vst [vmem:[%s207 + $0x1c] sm:$0xf] %v531
        %564 = vst [vmem:[%s207 + $0x20] sm:$0xf] %v532
        %565 = vst [vmem:[%s207 + $0x24] sm:$0xf] %v533
        %566 = vst [vmem:[%s207 + $0x28] sm:$0xf] %v534
        %567 = vst [vmem:[%s207 + $0x2c] sm:$0xf] %v535
        %568 = vst [vmem:[%s207 + $0x30] sm:$0xf] %v536
        %569 = vst [vmem:[%s207 + $0x34] sm:$0xf] %v537
        %570 = vst [vmem:[%s207 + $0x38] sm:$0xf] %v538
        %571 = vst [vmem:[%s207 + $0x3c] sm:$0xf] %v539
        %vm572 = vcmask 64512
        %573 = vst.msk [vmem:[%s214] sm:$0xff] %vm572, %v416
        %574 = vst.msk [vmem:[%s214 + $0x8] sm:$0xff] %vm572, %v420
        %575 = vst.msk [vmem:[%s214 + $0x10] sm:$0xff] %vm572, %v426
        %576 = vst.msk [vmem:[%s214 + $0x18] sm:$0xff] %vm572, %v430
        %577 = vst.msk [vmem:[%s214 + $0x20] sm:$0xff] %vm572, %v436
        %578 = vst.msk [vmem:[%s214 + $0x28] sm:$0xff] %vm572, %v440
        %579 = vst.msk [vmem:[%s214 + $0x30] sm:$0xff] %vm572, %v446
        %580 = vst.msk [vmem:[%s214 + $0x38] sm:$0xff] %vm572, %v450
        %581 = vst.msk [vmem:[%s214 + $0x40] sm:$0xff] %vm572, %v456
        %582 = vst.msk [vmem:[%s214 + $0x48] sm:$0xff] %vm572, %v460
        %583 = vst.msk [vmem:[%s214 + $0x50] sm:$0xff] %vm572, %v466
        %584 = vst.msk [vmem:[%s214 + $0x58] sm:$0xff] %vm572, %v470
        %585 = vst.msk [vmem:[%s214 + $0x60] sm:$0xff] %vm572, %v476
        %586 = vst.msk [vmem:[%s214 + $0x68] sm:$0xff] %vm572, %v480
        %587 = vst.msk [vmem:[%s214 + $0x70] sm:$0xff] %vm572, %v486
        %588 = vst.msk [vmem:[%s214 + $0x78] sm:$0xff] %vm572, %v490
        %s589 = sand.u32 %s80, 1
        %s590 = scalar_lea.sflag [#allocation4], %s589
        %s591 = sand.u32 %s80, 1
        %s592 = smul.addr %s591, 64
        %s593 = scalar_lea.vmem [#allocation7], %s592
        %s594 = sand.u32 %s106, 1
        %s595 = scalar_lea.sflag [#allocation9], %s594
        %s596 = sand.u32 %s106, 1
        %s597 = smul.addr %s596, 128
        %s598 = scalar_lea.vmem [#allocation8], %s597
        // Predicated region
        $region37: #{simple_gat_forward.7} parent=27 // pred_check
          %p599 = pneg %p90
        $region38: #{simple_gat_forward.7} parent=27 // pred_check_branch
          %601 = sbr.rel (%p599) target = $region40
        $region39: #{simple_gat_forward.7} parent=27 // pred_region
          %s602 = smul.u32 16, %s25
          %s604 = ssub.s32 1024, 1024
          %605 = vsyncadd %s590, %s604
          %s606 = smul.addr %s602, 64
          %s607 = scalar_lea.hbm %s2, %s606
          %s608 = sshll.u32 %s593, 4
          %s609 = int_to_ptr.vmem [resolvable:$true] %s608
          %614 = dma.vmem_to_hbm [thread:$0]  %s609, 1024, %s607, %s590, 64, 64, 4
        $region40: #{simple_gat_forward.7} parent=27 // pred_fallthru
          _
        // Predicated region
        $region41: #{simple_gat_forward.7} parent=27 // pred_check
          %p615 = pneg %p116
        $region42: #{simple_gat_forward.7} parent=27 // pred_check_branch
          %617 = sbr.rel (%p615) target = $region44
        $region43: #{simple_gat_forward.7} parent=27 // pred_region
          %s618 = smul.u32 16, %s25
          %s620 = ssub.s32 2048, 2048
          %621 = vsyncadd %s595, %s620
          %s622 = smul.addr %s618, 128
          %s623 = scalar_lea.hbm %s3, %s622
          %s624 = sshll.u32 %s598, 4
          %s625 = int_to_ptr.vmem [resolvable:$true] %s624
          %630 = dma.vmem_to_hbm [thread:$0]  %s625, 2048, %s623, %s595, 128, 128, 8
        $region44: #{simple_gat_forward.7} parent=27 // pred_fallthru
          _
      $region28: #{simple_gat_forward.7} parent=5 // pred_fallthru
        _
      %p631 = scmp.le.s32.totalorder 2, %s20
      // Predicated region
      $region45: #{simple_gat_forward.7} parent=5 // pred_check
        %p632 = pneg %p631
      $region46: #{simple_gat_forward.7} parent=5 // pred_check_branch
        %634 = sbr.rel (%p632) target = $region48
      $region47: #{simple_gat_forward.7} parent=5 // pred_region
        %s635 = ssub.s32 %s20, 2
        // Predicated region
        $region49: #{simple_gat_forward.7} parent=47 // pred_check
          %p636 = pneg %p96
        $region50: #{simple_gat_forward.7} parent=47 // pred_check_branch
          %638 = sbr.rel (%p636) target = $region52
        $region51: #{simple_gat_forward.7} parent=47 // pred_region
          %s639 = sand.u32 %s81, 1
          %s640 = scalar_lea.sflag [#allocation4], %s639
          %s641 = sand.u32 %s81, 1
          %s642 = smul.addr %s641, 64
          %s643 = scalar_lea.vmem [#allocation7], %s642
          %644 = dma.done %s640, 1024
        $region52: #{simple_gat_forward.7} parent=47 // pred_fallthru
          _
        // Predicated region
        $region53: #{simple_gat_forward.7} parent=47 // pred_check
          %p645 = pneg %p122
        $region54: #{simple_gat_forward.7} parent=47 // pred_check_branch
          %647 = sbr.rel (%p645) target = $region56
        $region55: #{simple_gat_forward.7} parent=47 // pred_region
          %s648 = sand.u32 %s107, 1
          %s649 = scalar_lea.sflag [#allocation9], %s648
          %s650 = sand.u32 %s107, 1
          %s651 = smul.addr %s650, 128
          %s652 = scalar_lea.vmem [#allocation8], %s651
          %653 = dma.done %s649, 2048
        $region56: #{simple_gat_forward.7} parent=47 // pred_fallthru
          _
      $region48: #{simple_gat_forward.7} parent=5 // pred_fallthru
        _
    $region6: #{simple_gat_forward.7} parent=1 // loop_footer
      %s24 = sadd.s32 1, %s20
    $region7: #{simple_gat_forward.7} parent=1 // loop_footer_branch
      %19 = sbr.rel target = $region3
    $region8: #{simple_gat_forward.7} parent=1 // loop_exit
      _
    %654 = vsyncpa [#allocation3], 1
    %s655 = scalar_lea.sflag [#allocation3], 1
    %656 = vsyncpa %s655, 1
    %657 = vsyncpa [#allocation6], 1
    %658 = vsyncpa [#allocation4], 1
    %s659 = scalar_lea.sflag [#allocation4], 1
    %660 = vsyncpa %s659, 1
    %661 = vsyncpa [#allocation9], 1
    %s662 = scalar_lea.sflag [#allocation9], 1
    %663 = vsyncpa %s662, 1

// kernel: simple_gat_forward.6
$region0: #{simple_gat_forward.6}
  #allocation0 [shape = 'u32[]', space=smem, size = 0x4, offset = 0x4, fixed_abs, tag = 'smem constant byte address 0x4 - core index']
  #allocation1 [shape = 'u32[144,128]{1,0:T(1,128)}', space=vmem, size = 0x12000, scoped, tag = 'internal scratch']
  #allocation12 [shape = 's32[]', space=sflag, size = 0x4, offset = 0, fixed_abs, tag = 'sflag constant byte address 0x0 - dummy sync flag']
  %s0 = inlined_call_operand.hbm [shape: f32[512,4], index: 0, kind: input, shape index: {}]
  %s1 = inlined_call_operand.hbm [shape: f32[4,512], index: 1, kind: input, shape index: {}]
  %s2 = inlined_call_operand.hbm [shape: bf16[4,512,32], index: 2, kind: input, shape index: {}]
  %s3 = inlined_call_operand.hbm [shape: bf16[512,512], index: 3, kind: input, shape index: {}]
  %s4 = inlined_call_operand.hbm [shape: f32[1,128], index: 4, kind: input, shape index: {}]
  %s5 = inlined_call_operand.hbm [shape: bf16[512,128], index: 5, kind: output, shape index: {}]
  %s6 = sld [smem:[#allocation0]]
  $region73: #{simple_gat_forward.6} parent=0
    _
  %s8 = ssub.s32 1, %s6
  %s9 = scalar_select 0, %s8, %s6
  $region1: #{simple_gat_forward.6} parent=0
    #allocation2 [shape = 'u8[131072]{0}', space=vmem, size = 0x20000, scoped, tag = 'input window, operand 0']
    #allocation3 [shape = 's32[2]{0}', space=sflag, size = 0x8, scoped, tag = 'scoped memory for simple_gat_forward.6']
    #allocation4 [shape = 's32[2]{0}', space=sflag, size = 0x8, scoped, tag = 'scoped memory for simple_gat_forward.6']
    #allocation5 [shape = 'u8[4096]{0}', space=vmem, size = 0x1000, scoped, tag = 'input window, operand 1']
    #allocation6 [shape = 's32[2]{0}', space=sflag, size = 0x8, scoped, tag = 'scoped memory for simple_gat_forward.6']
    #allocation7 [shape = 'u8[262144]{0}', space=vmem, size = 0x40000, scoped, tag = 'input window, operand 2']
    #allocation8 [shape = 'u8[65536]{0}', space=vmem, size = 0x10000, scoped, tag = 'input window, operand 3']
    #allocation9 [shape = 's32[2]{0}', space=sflag, size = 0x8, scoped, tag = 'scoped memory for simple_gat_forward.6']
    #allocation10 [shape = 'u8[512]{0}', space=vmem, size = 0x400, scoped, tag = 'input window, operand 4, single buffered']
    #allocation11 [shape = 'u8[65536]{0}', space=vmem, size = 0x10000, scoped, tag = 'output window, operand 0']
    %10 = vsyncpa [#allocation3], 0
    %s11 = scalar_lea.sflag [#allocation3], 1
    %12 = vsyncpa %s11, 0
    %13 = vsyncpa [#allocation6], 0
    %s14 = scalar_lea.sflag [#allocation6], 1
    %15 = vsyncpa %s14, 0
    %16 = vsyncpa [#allocation9], 0
    %s17 = scalar_lea.sflag [#allocation9], 1
    %18 = vsyncpa %s17, 0
    %19 = vsyncpa [#allocation4], 0
    %s20 = scalar_lea.sflag [#allocation4], 1
    %21 = vsyncpa %s20, 0
    loop: start=0, step=1, limit=6
    $region2: #{simple_gat_forward.6} parent=1 // loop_pre_header
      _
    $region3: #{simple_gat_forward.6} parent=1 // loop_header
      %s23 = sphi 0, %s27
      %p24 = scmp.ge.s32.totalorder %s23, 6
      %s33 = sphi 0, %s35
      %s36 = sphi 0, %s33
      %s37 = sphi 0, %s36
      %s53 = sphi 0, %s37
      %s59 = sphi 0, %s61
      %s62 = sphi 0, %s59
      %s63 = sphi 0, %s62
      %s79 = sphi 0, %s63
      %s85 = sphi 0, %s87
      %s88 = sphi 0, %s85
      %s89 = sphi 0, %s88
      %s105 = sphi 0, %s89
      %s113 = sphi 0, %s115
      %s116 = sphi 0, %s113
      %s117 = sphi 0, %s116
      %s133 = sphi 0, %s117
      %s137 = sphi 0, %s137
      %s139 = sphi 0, %s137
      %s140 = sphi 0, %s139
      %s154 = sphi 0, %s140
      %s160 = sphi 0, %s162
      %s163 = sphi 0, %s160
      %s164 = sphi 0, %s163
      %s180 = sphi 0, %s164
    $region4: #{simple_gat_forward.6} parent=1 // loop_header_branch
      %26 = sbr.rel (%p24) target = $region8
    $region5: #{simple_gat_forward.6} parent=1 // loop_body
      %s28 = ssub.s32 %s23, 1
      %s29 = ssub.s32 %s23, 2
      %s30 = sadd.s32 %s23, 1
      %s31 = ssub.s32 %s23, %s30
      %p32 = scmp.eq.s32.totalorder %s31, 0
      %s34 = sadd.s32 %s33, 1
      %s35 = scalar_select %p32, %s33, %s34
      %p38 = pneg %p32
      %p39 = scmp.eq.s32.totalorder %s23, 3
      %p40 = por %p38, %p39
      %p41 = scmp.ne.s32.totalorder %s33, %s36
      %p42 = scmp.eq.s32.totalorder %s23, 0
      %p43 = por %p41, %p42
      %p44 = scmp.ne.s32.totalorder %s33, %s36
      %p45 = scmp.eq.s32.totalorder %s28, 3
      %p46 = por %p44, %p45
      %p47 = scmp.ne.s32.totalorder %s36, %s37
      %p48 = scmp.eq.s32.totalorder %s28, 0
      %p49 = por %p47, %p48
      %p50 = scmp.ne.s32.totalorder %s36, %s37
      %p51 = scmp.eq.s32.totalorder %s29, 3
      %p52 = por %p50, %p51
      %p54 = scmp.ne.s32.totalorder %s37, %s53
      %p55 = scmp.eq.s32.totalorder %s29, 0
      %p56 = por %p54, %p55
      %s57 = ssub.s32 %s23, %s30
      %p58 = scmp.eq.s32.totalorder %s57, 0
      %s60 = sadd.s32 %s59, 1
      %s61 = scalar_select %p58, %s59, %s60
      %p64 = pneg %p58
      %p65 = scmp.eq.s32.totalorder %s23, 3
      %p66 = por %p64, %p65
      %p67 = scmp.ne.s32.totalorder %s59, %s62
      %p68 = scmp.eq.s32.totalorder %s23, 0
      %p69 = por %p67, %p68
      %p70 = scmp.ne.s32.totalorder %s59, %s62
      %p71 = scmp.eq.s32.totalorder %s28, 3
      %p72 = por %p70, %p71
      %p73 = scmp.ne.s32.totalorder %s62, %s63
      %p74 = scmp.eq.s32.totalorder %s28, 0
      %p75 = por %p73, %p74
      %p76 = scmp.ne.s32.totalorder %s62, %s63
      %p77 = scmp.eq.s32.totalorder %s29, 3
      %p78 = por %p76, %p77
      %p80 = scmp.ne.s32.totalorder %s63, %s79
      %p81 = scmp.eq.s32.totalorder %s29, 0
      %p82 = por %p80, %p81
      %s83 = ssub.s32 %s23, %s30
      %p84 = scmp.eq.s32.totalorder %s83, 0
      %s86 = sadd.s32 %s85, 1
      %s87 = scalar_select %p84, %s85, %s86
      %p90 = pneg %p84
      %p91 = scmp.eq.s32.totalorder %s23, 3
      %p92 = por %p90, %p91
      %p93 = scmp.ne.s32.totalorder %s85, %s88
      %p94 = scmp.eq.s32.totalorder %s23, 0
      %p95 = por %p93, %p94
      %p96 = scmp.ne.s32.totalorder %s85, %s88
      %p97 = scmp.eq.s32.totalorder %s28, 3
      %p98 = por %p96, %p97
      %p99 = scmp.ne.s32.totalorder %s88, %s89
      %p100 = scmp.eq.s32.totalorder %s28, 0
      %p101 = por %p99, %p100
      %p102 = scmp.ne.s32.totalorder %s88, %s89
      %p103 = scmp.eq.s32.totalorder %s29, 3
      %p104 = por %p102, %p103
      %p106 = scmp.ne.s32.totalorder %s89, %s105
      %p107 = scmp.eq.s32.totalorder %s29, 0
      %p108 = por %p106, %p107
      %s109 = ssub.s32 %s23, %s30
      %s110 = ssub.s32 %s23, %s30
      %s111 = sor.u32 %s109, %s110
      %p112 = scmp.eq.s32.totalorder %s111, 0
      %s114 = sadd.s32 %s113, 1
      %s115 = scalar_select %p112, %s113, %s114
      %p118 = pneg %p112
      %p119 = scmp.eq.s32.totalorder %s23, 3
      %p120 = por %p118, %p119
      %p121 = scmp.ne.s32.totalorder %s113, %s116
      %p122 = scmp.eq.s32.totalorder %s23, 0
      %p123 = por %p121, %p122
      %p124 = scmp.ne.s32.totalorder %s113, %s116
      %p125 = scmp.eq.s32.totalorder %s28, 3
      %p126 = por %p124, %p125
      %p127 = scmp.ne.s32.totalorder %s116, %s117
      %p128 = scmp.eq.s32.totalorder %s28, 0
      %p129 = por %p127, %p128
      %p130 = scmp.ne.s32.totalorder %s116, %s117
      %p131 = scmp.eq.s32.totalorder %s29, 3
      %p132 = por %p130, %p131
      %p134 = scmp.ne.s32.totalorder %s117, %s133
      %p135 = scmp.eq.s32.totalorder %s29, 0
      %p136 = por %p134, %p135
      %s138 = sadd.s32 %s137, 1
      %p141 = scmp.eq.s32.totalorder %s23, 3
      %p142 = scmp.ne.s32.totalorder %s137, %s139
      %p143 = scmp.eq.s32.totalorder %s23, 0
      %p144 = por %p142, %p143
      %p145 = scmp.ne.s32.totalorder %s137, %s139
      %p146 = scmp.eq.s32.totalorder %s28, 3
      %p147 = por %p145, %p146
      %p148 = scmp.ne.s32.totalorder %s139, %s140
      %p149 = scmp.eq.s32.totalorder %s28, 0
      %p150 = por %p148, %p149
      %p151 = scmp.ne.s32.totalorder %s139, %s140
      %p152 = scmp.eq.s32.totalorder %s29, 3
      %p153 = por %p151, %p152
      %p155 = scmp.ne.s32.totalorder %s140, %s154
      %p156 = scmp.eq.s32.totalorder %s29, 0
      %p157 = por %p155, %p156
      %s158 = ssub.s32 %s23, %s30
      %p159 = scmp.eq.s32.totalorder %s158, 0
      %s161 = sadd.s32 %s160, 1
      %s162 = scalar_select %p159, %s160, %s161
      %p165 = pneg %p159
      %p166 = scmp.eq.s32.totalorder %s23, 3
      %p167 = por %p165, %p166
      %p168 = scmp.ne.s32.totalorder %s160, %s163
      %p169 = scmp.eq.s32.totalorder %s23, 0
      %p170 = por %p168, %p169
      %p171 = scmp.ne.s32.totalorder %s160, %s163
      %p172 = scmp.eq.s32.totalorder %s28, 3
      %p173 = por %p171, %p172
      %p174 = scmp.ne.s32.totalorder %s163, %s164
      %p175 = scmp.eq.s32.totalorder %s28, 0
      %p176 = por %p174, %p175
      %p177 = scmp.ne.s32.totalorder %s163, %s164
      %p178 = scmp.eq.s32.totalorder %s29, 3
      %p179 = por %p177, %p178
      %p181 = scmp.ne.s32.totalorder %s164, %s180
      %p182 = scmp.eq.s32.totalorder %s29, 0
      %p183 = por %p181, %p182
      %p184 = scmp.le.s32.totalorder 1, %s23
      %p185 = scmp.lt.s32.totalorder %s23, 5
      %p186 = pnand %p184, %p185
      %p187 = pneg %p186
      // Predicated region
      $region9: #{simple_gat_forward.6} parent=5 // pred_check
        _
      $region10: #{simple_gat_forward.6} parent=5 // pred_check_branch
        %189 = sbr.rel (%p186) target = $region12
      $region11: #{simple_gat_forward.6} parent=5 // pred_region
        %s190 = ssub.s32 %s23, 1
        // Predicated region
        $region13: #{simple_gat_forward.6} parent=11 // pred_check
          %p191 = pneg %p150
        $region14: #{simple_gat_forward.6} parent=11 // pred_check_branch
          %193 = sbr.rel (%p191) target = $region16
        $region15: #{simple_gat_forward.6} parent=11 // pred_region
          %s195 = ssub.s32 16, 16
          %196 = vsyncadd [#allocation9], %s195
          %s198 = sshll.u32 [#allocation10], 4
          %s199 = int_to_ptr.vmem [resolvable:$true] %s198
          %201 = dma.hbm_to_vmem [thread:$0]  %s4, 16, %s199, [#allocation9]
        $region16: #{simple_gat_forward.6} parent=11 // pred_fallthru
          _
      $region12: #{simple_gat_forward.6} parent=5 // pred_fallthru
        _
      %p202 = scmp.lt.s32.totalorder %s23, 4
      // Predicated region
      $region17: #{simple_gat_forward.6} parent=5 // pred_check
        %p203 = pneg %p202
      $region18: #{simple_gat_forward.6} parent=5 // pred_check_branch
        %205 = sbr.rel (%p203) target = $region20
      $region19: #{simple_gat_forward.6} parent=5 // pred_region
        // Predicated region
        $region21: #{simple_gat_forward.6} parent=19 // pred_check
          %p206 = pneg %p43
        $region22: #{simple_gat_forward.6} parent=19 // pred_check_branch
          %208 = sbr.rel (%p206) target = $region24
        $region23: #{simple_gat_forward.6} parent=19 // pred_region
          %s209 = sand.u32 %s33, 1
          %s210 = scalar_lea.sflag [#allocation3], %s209
          %s211 = sand.u32 %s33, 1
          %s212 = smul.addr %s211, 128
          %s213 = scalar_lea.vmem [#allocation2], %s212
          %s214 = smul.u32 16, %s23
          %s216 = ssub.s32 2048, 2048
          %217 = vsyncadd %s210, %s216
          %s218 = smul.addr %s214, 128
          %s219 = scalar_lea.hbm %s0, %s218
          %s220 = sshll.u32 %s213, 4
          %s221 = int_to_ptr.vmem [resolvable:$true] %s220
          %226 = dma.hbm_to_vmem [thread:$0]  %s219, 2048, %s221, %s210, 128, 128, 8
        $region24: #{simple_gat_forward.6} parent=19 // pred_fallthru
          _
        // Predicated region
        $region25: #{simple_gat_forward.6} parent=19 // pred_check
          %p227 = pneg %p69
        $region26: #{simple_gat_forward.6} parent=19 // pred_check_branch
          %229 = sbr.rel (%p227) target = $region28
        $region27: #{simple_gat_forward.6} parent=19 // pred_region
          %s230 = sand.u32 %s23, 1
          %s231 = scalar_lea.sflag [#allocation6], %s230
          %s232 = sand.u32 %s59, 1
          %s233 = smul.addr %s232, 4
          %s234 = scalar_lea.vmem [#allocation5], %s233
          %s236 = ssub.s32 64, 64
          %237 = vsyncadd %s231, %s236
          %s238 = smul.addr %s23, 64
          %s239 = scalar_lea.hbm %s1, %s238
          %s241 = sshll.u32 %s234, 4
          %s242 = int_to_ptr.vmem [resolvable:$true] %s241
          %244 = dma.hbm_to_vmem [thread:$0]  %s239, 64, %s242, %s231
        $region28: #{simple_gat_forward.6} parent=19 // pred_fallthru
          _
        // Predicated region
        $region29: #{simple_gat_forward.6} parent=19 // pred_check
          %p245 = pneg %p95
        $region30: #{simple_gat_forward.6} parent=19 // pred_check_branch
          %247 = sbr.rel (%p245) target = $region32
        $region31: #{simple_gat_forward.6} parent=19 // pred_region
          #allocation13 [shape = 'u32[6]{0}', space=smem, size = 0x18, scoped, tag = 'DMA stride descriptor']
          %s248 = sand.u32 %s23, 1
          %s249 = scalar_lea.sflag [#allocation6], %s248
          %s250 = sand.u32 %s85, 1
          %s251 = smul.addr %s250, 256
          %s252 = scalar_lea.vmem [#allocation7], %s251
          %s253 = smul.u32 16, %s23
          %s255 = ssub.s32 4096, 4096
          %256 = vsyncadd %s249, %s255
          %s257 = smul.addr %s253, 64
          %s258 = scalar_lea.hbm %s2, %s257
          %s260 = sshll.u32 1, 14
          %s261 = sxor.u32 4294967295, %s260
          %s263 = sld [smem:[#allocation0]]
          %s264 = sadd.s32 2, %s263
          %s266 = sshll.u32 7, 26
          %s267 = sxor.u32 4294967295, %s266
          %s268 = sand.u32 0, %s267
          %s269 = sshll.u32 %s264, 26
          %s270 = sor.u32 %s268, %s269
          %s271 = sshll.u32 %s252, 4
          %s272 = int_to_ptr.vmem [resolvable:$true] %s271
          %278 = sst [smem:[#allocation13]] 4096
          %s279 = scalar_lea.smem [#allocation13], 1
          %280 = sst [smem:[%s279]] 1024
          %s281 = scalar_lea.smem [#allocation13], 2
          %282 = sst [smem:[%s281]] 16
          %s283 = scalar_lea.smem [#allocation13], 3
          %284 = sst [smem:[%s283]] 64
          %s285 = scalar_lea.smem [#allocation13], 4
          %286 = sst [smem:[%s285]] 64
          %s287 = scalar_lea.smem [#allocation13], 5
          %288 = sst [smem:[%s287]] 4
          %290 = dma.general %s258, 4096, %s272, %s249, [#allocation12], [#allocation13], %s270, 0
        $region32: #{simple_gat_forward.6} parent=19 // pred_fallthru
          _
        // Predicated region
        $region33: #{simple_gat_forward.6} parent=19 // pred_check
          %p291 = pneg %p123
        $region34: #{simple_gat_forward.6} parent=19 // pred_check_branch
          %293 = sbr.rel (%p291) target = $region36
        $region35: #{simple_gat_forward.6} parent=19 // pred_region
          %s294 = sand.u32 %s23, 1
          %s295 = scalar_lea.sflag [#allocation9], %s294
          %s296 = sand.u32 %s113, 1
          %s297 = smul.addr %s296, 64
          %s298 = scalar_lea.vmem [#allocation8], %s297
          %s299 = smul.u32 16, %s23
          %s301 = ssub.s32 1024, 1024
          %302 = vsyncadd %s295, %s301
          %s303 = smul.addr %s299, 4
          %s304 = sadd.s32 %s23, %s303
          %s305 = smul.addr %s304, 64
          %s306 = scalar_lea.hbm %s3, %s305
          %s307 = sshll.u32 %s298, 4
          %s308 = int_to_ptr.vmem [resolvable:$true] %s307
          %313 = dma.hbm_to_vmem [thread:$0]  %s306, 1024, %s308, %s295, 256, 64, 4
        $region36: #{simple_gat_forward.6} parent=19 // pred_fallthru
          _
      $region20: #{simple_gat_forward.6} parent=5 // pred_fallthru
        _
      %p314 = scmp.le.s32.totalorder 1, %s23
      %p315 = scmp.lt.s32.totalorder %s23, 5
      %p316 = pnand %p314, %p315
      %p317 = pneg %p316
      // Predicated region
      $region37: #{simple_gat_forward.6} parent=5 // pred_check
        _
      $region38: #{simple_gat_forward.6} parent=5 // pred_check_branch
        %319 = sbr.rel (%p316) target = $region40
      $region39: #{simple_gat_forward.6} parent=5 // pred_region
        %s320 = ssub.s32 %s23, 1
        %s321 = sand.u32 %s36, 1
        %s322 = scalar_lea.sflag [#allocation3], %s321
        %s323 = sand.u32 %s36, 1
        %s324 = smul.addr %s323, 128
        %s325 = scalar_lea.vmem [#allocation2], %s324
        // Predicated region
        $region41: #{simple_gat_forward.6} parent=39 // pred_check
          %p326 = pneg %p49
        $region42: #{simple_gat_forward.6} parent=39 // pred_check_branch
          %328 = sbr.rel (%p326) target = $region44
        $region43: #{simple_gat_forward.6} parent=39 // pred_region
          %329 = dma.done %s322, 2048
        $region44: #{simple_gat_forward.6} parent=39 // pred_fallthru
          _
        %s330 = sand.u32 %s28, 1
        %s331 = scalar_lea.sflag [#allocation6], %s330
        %s332 = sand.u32 %s62, 1
        %s333 = smul.addr %s332, 4
        %s334 = scalar_lea.vmem [#allocation5], %s333
        // Predicated region
        $region45: #{simple_gat_forward.6} parent=39 // pred_check
          %p335 = pneg %p75
        $region46: #{simple_gat_forward.6} parent=39 // pred_check_branch
          %337 = sbr.rel (%p335) target = $region48
        $region47: #{simple_gat_forward.6} parent=39 // pred_region
          %338 = dma.done %s331, 64
        $region48: #{simple_gat_forward.6} parent=39 // pred_fallthru
          _
        %s339 = sand.u32 %s28, 1
        %s340 = scalar_lea.sflag [#allocation6], %s339
        %s341 = sand.u32 %s88, 1
        %s342 = smul.addr %s341, 256
        %s343 = scalar_lea.vmem [#allocation7], %s342
        // Predicated region
        $region49: #{simple_gat_forward.6} parent=39 // pred_check
          %p344 = pneg %p101
        $region50: #{simple_gat_forward.6} parent=39 // pred_check_branch
          %346 = sbr.rel (%p344) target = $region52
        $region51: #{simple_gat_forward.6} parent=39 // pred_region
          %347 = dma.done %s340, 4096
        $region52: #{simple_gat_forward.6} parent=39 // pred_fallthru
          _
        %s348 = sand.u32 %s28, 1
        %s349 = scalar_lea.sflag [#allocation9], %s348
        %s350 = sand.u32 %s116, 1
        %s351 = smul.addr %s350, 64
        %s352 = scalar_lea.vmem [#allocation8], %s351
        // Predicated region
        $region53: #{simple_gat_forward.6} parent=39 // pred_check
          %p353 = pneg %p129
        $region54: #{simple_gat_forward.6} parent=39 // pred_check_branch
          %355 = sbr.rel (%p353) target = $region56
        $region55: #{simple_gat_forward.6} parent=39 // pred_region
          %356 = dma.done %s349, 1024
        $region56: #{simple_gat_forward.6} parent=39 // pred_fallthru
          _
        // Predicated region
        $region57: #{simple_gat_forward.6} parent=39 // pred_check
          %p357 = pneg %p150
        $region58: #{simple_gat_forward.6} parent=39 // pred_check_branch
          %359 = sbr.rel (%p357) target = $region60
        $region59: #{simple_gat_forward.6} parent=39 // pred_region
          %360 = dma.done [#allocation9], 16
        $region60: #{simple_gat_forward.6} parent=39 // pred_fallthru
          _
        %s361 = sand.u32 %s36, 1
        %s362 = scalar_lea.sflag [#allocation3], %s361
        %s363 = sand.u32 %s36, 1
        %s364 = smul.addr %s363, 128
        %s365 = scalar_lea.vmem [#allocation2], %s364
        %p366 = pneg %p49
        %p367 = pneg %p46
        %s368 = sand.u32 %s28, 1
        %s369 = scalar_lea.sflag [#allocation6], %s368
        %s370 = sand.u32 %s62, 1
        %s371 = smul.addr %s370, 4
        %s372 = scalar_lea.vmem [#allocation5], %s371
        %p373 = pneg %p75
        %p374 = pneg %p72
        %s375 = sand.u32 %s28, 1
        %s376 = scalar_lea.sflag [#allocation6], %s375
        %s377 = sand.u32 %s88, 1
        %s378 = smul.addr %s377, 256
        %s379 = scalar_lea.vmem [#allocation7], %s378
        %p380 = pneg %p101
        %p381 = pneg %p98
        %s382 = sand.u32 %s28, 1
        %s383 = scalar_lea.sflag [#allocation9], %s382
        %s384 = sand.u32 %s116, 1
        %s385 = smul.addr %s384, 64
        %s386 = scalar_lea.vmem [#allocation8], %s385
        %p387 = pneg %p129
        %p388 = pneg %p126
        %p389 = pneg %p150
        %p390 = pneg %p147
        %p391 = pneg %p176
        %p392 = pneg %p173
        %s393 = sand.u32 %s163, 1
        %s394 = scalar_lea.sflag [#allocation4], %s393
        %s395 = sand.u32 %s163, 1
        %s396 = smul.addr %s395, 64
        %s397 = scalar_lea.vmem [#allocation11], %s396
        %s398 = smul.u32 16, %s28
        %s399 = smul.u32 16, %s28
        %s400 = smul.u32 16, %s28
        %s401 = smul.u32 16, %s28
        %v403 = vld [vmem:[%s352] sm:$0xf]
        %v404 = vld [vmem:[%s352 + $0x4] sm:$0xf]
        %v405 = vld [vmem:[%s352 + $0x8] sm:$0xf]
        %v406 = vld [vmem:[%s352 + $0xc] sm:$0xf]
        %v407 = vld [vmem:[%s352 + $0x10] sm:$0xf]
        %v408 = vld [vmem:[%s352 + $0x14] sm:$0xf]
        %v409 = vld [vmem:[%s352 + $0x18] sm:$0xf]
        %v410 = vld [vmem:[%s352 + $0x1c] sm:$0xf]
        %v411 = vld [vmem:[%s352 + $0x20] sm:$0xf]
        %v412 = vld [vmem:[%s352 + $0x24] sm:$0xf]
        %v413 = vld [vmem:[%s352 + $0x28] sm:$0xf]
        %v414 = vld [vmem:[%s352 + $0x2c] sm:$0xf]
        %v415 = vld [vmem:[%s352 + $0x30] sm:$0xf]
        %v416 = vld [vmem:[%s352 + $0x34] sm:$0xf]
        %v417 = vld [vmem:[%s352 + $0x38] sm:$0xf]
        %v418 = vld [vmem:[%s352 + $0x3c] sm:$0xf]
        %v419 = vunpack.c.l.bf16 %v403
        %v420 = vunpack.c.l.bf16 %v404
        %v421 = vunpack.c.l.bf16 %v405
        %v422 = vunpack.c.l.bf16 %v406
        %v423 = vunpack.c.l.bf16 %v407
        %v424 = vunpack.c.l.bf16 %v408
        %v425 = vunpack.c.l.bf16 %v409
        %v426 = vunpack.c.l.bf16 %v410
        %v427 = vunpack.c.l.bf16 %v411
        %v428 = vunpack.c.l.bf16 %v412
        %v429 = vunpack.c.l.bf16 %v413
        %v430 = vunpack.c.l.bf16 %v414
        %v431 = vunpack.c.l.bf16 %v415
        %v432 = vunpack.c.l.bf16 %v416
        %v433 = vunpack.c.l.bf16 %v417
        %v434 = vunpack.c.l.bf16 %v418
        %v435 = vld [vmem:[%s325] sm:$0xff]
        %v436 = vld [vmem:[%s325 + $0x8] sm:$0xff]
        %v437 = vld [vmem:[%s325 + $0x10] sm:$0xff]
        %v438 = vld [vmem:[%s325 + $0x18] sm:$0xff]
        %v439 = vld [vmem:[%s325 + $0x20] sm:$0xff]
        %v440 = vld [vmem:[%s325 + $0x28] sm:$0xff]
        %v441 = vld [vmem:[%s325 + $0x30] sm:$0xff]
        %v442 = vld [vmem:[%s325 + $0x38] sm:$0xff]
        %v443 = vld [vmem:[%s325 + $0x40] sm:$0xff]
        %v444 = vld [vmem:[%s325 + $0x48] sm:$0xff]
        %v445 = vld [vmem:[%s325 + $0x50] sm:$0xff]
        %v446 = vld [vmem:[%s325 + $0x58] sm:$0xff]
        %v447 = vld [vmem:[%s325 + $0x60] sm:$0xff]
        %v448 = vld [vmem:[%s325 + $0x68] sm:$0xff]
        %v449 = vld [vmem:[%s325 + $0x70] sm:$0xff]
        %v450 = vld [vmem:[%s325 + $0x78] sm:$0xff]
        %v451 = vld [vmem:[%s334] sm:$0xf]
        %453 = vset.pattern.permute.xlu0 0
        %454 = vperm.xlu0 %453, %v435
        %v455 = vpop.permute.xlu0 %454
        %458 = vset.pattern.permute.xlu0 0
        %459 = vperm.xlu0 %458, %v436
        %v460 = vpop.permute.xlu0 %459
        %463 = vset.pattern.permute.xlu0 0
        %464 = vperm.xlu0 %463, %v437
        %v465 = vpop.permute.xlu0 %464
        %468 = vset.pattern.permute.xlu0 0
        %469 = vperm.xlu0 %468, %v438
        %v470 = vpop.permute.xlu0 %469
        %473 = vset.pattern.permute.xlu0 0
        %474 = vperm.xlu0 %473, %v439
        %v475 = vpop.permute.xlu0 %474
        %478 = vset.pattern.permute.xlu0 0
        %479 = vperm.xlu0 %478, %v440
        %v480 = vpop.permute.xlu0 %479
        %483 = vset.pattern.permute.xlu0 0
        %484 = vperm.xlu0 %483, %v441
        %v485 = vpop.permute.xlu0 %484
        %488 = vset.pattern.permute.xlu0 0
        %489 = vperm.xlu0 %488, %v442
        %v490 = vpop.permute.xlu0 %489
        %493 = vset.pattern.permute.xlu0 0
        %494 = vperm.xlu0 %493, %v443
        %v495 = vpop.permute.xlu0 %494
        %498 = vset.pattern.permute.xlu0 0
        %499 = vperm.xlu0 %498, %v444
        %v500 = vpop.permute.xlu0 %499
        %503 = vset.pattern.permute.xlu0 0
        %504 = vperm.xlu0 %503, %v445
        %v505 = vpop.permute.xlu0 %504
        %508 = vset.pattern.permute.xlu0 0
        %509 = vperm.xlu0 %508, %v446
        %v510 = vpop.permute.xlu0 %509
        %513 = vset.pattern.permute.xlu0 0
        %514 = vperm.xlu0 %513, %v447
        %v515 = vpop.permute.xlu0 %514
        %518 = vset.pattern.permute.xlu0 0
        %519 = vperm.xlu0 %518, %v448
        %v520 = vpop.permute.xlu0 %519
        %523 = vset.pattern.permute.xlu0 0
        %524 = vperm.xlu0 %523, %v449
        %v525 = vpop.permute.xlu0 %524
        %528 = vset.pattern.permute.xlu0 0
        %529 = vperm.xlu0 %528, %v450
        %v530 = vpop.permute.xlu0 %529
        %v532 = vlaneseq
        %v533 = vshrl.u32 %v532, 7
        %v534 = vsub.s32 0, %v533
        %v535 = vrot.slane %v451, %v534
        %v536 = vadd.f32 %v455, %v535
        %v537 = vadd.f32 %v460, %v535
        %v538 = vadd.f32 %v465, %v535
        %v539 = vadd.f32 %v470, %v535
        %v540 = vadd.f32 %v475, %v535
        %v541 = vadd.f32 %v480, %v535
        %v542 = vadd.f32 %v485, %v535
        %v543 = vadd.f32 %v490, %v535
        %v544 = vadd.f32 %v495, %v535
        %v545 = vadd.f32 %v500, %v535
        %v546 = vadd.f32 %v505, %v535
        %v547 = vadd.f32 %v510, %v535
        %v548 = vadd.f32 %v515, %v535
        %v549 = vadd.f32 %v520, %v535
        %v550 = vadd.f32 %v525, %v535
        %v551 = vadd.f32 %v530, %v535
        %v552 = vmul.f32 %v536, 0.2
        %v553 = vmul.f32 %v537, 0.2
        %v554 = vmul.f32 %v538, 0.2
        %v555 = vmul.f32 %v539, 0.2
        %v556 = vmul.f32 %v540, 0.2
        %v557 = vmul.f32 %v541, 0.2
        %v558 = vmul.f32 %v542, 0.2
        %v559 = vmul.f32 %v543, 0.2
        %v560 = vmul.f32 %v544, 0.2
        %v561 = vmul.f32 %v545, 0.2
        %v562 = vmul.f32 %v546, 0.2
        %v563 = vmul.f32 %v547, 0.2
        %v564 = vmul.f32 %v548, 0.2
        %v565 = vmul.f32 %v549, 0.2
        %v566 = vmul.f32 %v550, 0.2
        %v567 = vmul.f32 %v551, 0.2
        %v568 = vmax.f32 %v536, %v552
        %v569 = vmax.f32 %v537, %v553
        %v570 = vmax.f32 %v538, %v554
        %v571 = vmax.f32 %v539, %v555
        %v572 = vmax.f32 %v540, %v556
        %v573 = vmax.f32 %v541, %v557
        %v574 = vmax.f32 %v542, %v558
        %v575 = vmax.f32 %v543, %v559
        %v576 = vmax.f32 %v544, %v560
        %v577 = vmax.f32 %v545, %v561
        %v578 = vmax.f32 %v546, %v562
        %v579 = vmax.f32 %v547, %v563
        %v580 = vmax.f32 %v548, %v564
        %v581 = vmax.f32 %v549, %v565
        %v582 = vmax.f32 %v550, %v566
        %v583 = vmax.f32 %v551, %v567
        %v584 = vadd.f32 %v568, %v419
        %v585 = vadd.f32 %v569, %v420
        %v586 = vadd.f32 %v570, %v421
        %v587 = vadd.f32 %v571, %v422
        %v588 = vadd.f32 %v572, %v423
        %v589 = vadd.f32 %v573, %v424
        %v590 = vadd.f32 %v574, %v425
        %v591 = vadd.f32 %v575, %v426
        %v592 = vadd.f32 %v576, %v427
        %v593 = vadd.f32 %v577, %v428
        %v594 = vadd.f32 %v578, %v429
        %v595 = vadd.f32 %v579, %v430
        %v596 = vadd.f32 %v580, %v431
        %v597 = vadd.f32 %v581, %v432
        %v598 = vadd.f32 %v582, %v433
        %v599 = vadd.f32 %v583, %v434
        %600 = vmax.xlane.f32.xlu0 %v584
        %v601 = vpop.xlane.xlu0 %600
        %602 = vmax.xlane.f32.xlu0 %v585
        %v603 = vpop.xlane.xlu0 %602
        %604 = vmax.xlane.f32.xlu0 %v586
        %v605 = vpop.xlane.xlu0 %604
        %606 = vmax.xlane.f32.xlu0 %v587
        %v607 = vpop.xlane.xlu0 %606
        %608 = vmax.xlane.f32.xlu0 %v588
        %v609 = vpop.xlane.xlu0 %608
        %610 = vmax.xlane.f32.xlu0 %v589
        %v611 = vpop.xlane.xlu0 %610
        %612 = vmax.xlane.f32.xlu0 %v590
        %v613 = vpop.xlane.xlu0 %612
        %614 = vmax.xlane.f32.xlu0 %v591
        %v615 = vpop.xlane.xlu0 %614
        %616 = vmax.xlane.f32.xlu0 %v592
        %v617 = vpop.xlane.xlu0 %616
        %618 = vmax.xlane.f32.xlu0 %v593
        %v619 = vpop.xlane.xlu0 %618
        %620 = vmax.xlane.f32.xlu0 %v594
        %v621 = vpop.xlane.xlu0 %620
        %622 = vmax.xlane.f32.xlu0 %v595
        %v623 = vpop.xlane.xlu0 %622
        %624 = vmax.xlane.f32.xlu0 %v596
        %v625 = vpop.xlane.xlu0 %624
        %626 = vmax.xlane.f32.xlu0 %v597
        %v627 = vpop.xlane.xlu0 %626
        %628 = vmax.xlane.f32.xlu0 %v598
        %v629 = vpop.xlane.xlu0 %628
        %630 = vmax.xlane.f32.xlu0 %v599
        %v631 = vpop.xlane.xlu0 %630
        %v632 = vsub.f32 %v584, %v601
        %v633 = vsub.f32 %v585, %v603
        %v634 = vsub.f32 %v586, %v605
        %v635 = vsub.f32 %v587, %v607
        %v636 = vsub.f32 %v588, %v609
        %v637 = vsub.f32 %v589, %v611
        %v638 = vsub.f32 %v590, %v613
        %v639 = vsub.f32 %v591, %v615
        %v640 = vsub.f32 %v592, %v617
        %v641 = vsub.f32 %v593, %v619
        %v642 = vsub.f32 %v594, %v621
        %v643 = vsub.f32 %v595, %v623
        %v644 = vsub.f32 %v596, %v625
        %v645 = vsub.f32 %v597, %v627
        %v646 = vsub.f32 %v598, %v629
        %v647 = vsub.f32 %v599, %v631
        %v648 = vmul.f32 %v632, 1.442695
        %v649 = vpow.pop %v648
        %v650 = vmul.f32 %v633, 1.442695
        %v651 = vpow.pop %v650
        %v652 = vmul.f32 %v634, 1.442695
        %v653 = vpow.pop %v652
        %v654 = vmul.f32 %v635, 1.442695
        %v655 = vpow.pop %v654
        %v656 = vmul.f32 %v636, 1.442695
        %v657 = vpow.pop %v656
        %v658 = vmul.f32 %v637, 1.442695
        %v659 = vpow.pop %v658
        %v660 = vmul.f32 %v638, 1.442695
        %v661 = vpow.pop %v660
        %v662 = vmul.f32 %v639, 1.442695
        %v663 = vpow.pop %v662
        %v664 = vmul.f32 %v640, 1.442695
        %v665 = vpow.pop %v664
        %v666 = vmul.f32 %v641, 1.442695
        %v667 = vpow.pop %v666
        %v668 = vmul.f32 %v642, 1.442695
        %v669 = vpow.pop %v668
        %v670 = vmul.f32 %v643, 1.442695
        %v671 = vpow.pop %v670
        %v672 = vmul.f32 %v644, 1.442695
        %v673 = vpow.pop %v672
        %v674 = vmul.f32 %v645, 1.442695
        %v675 = vpow.pop %v674
        %v676 = vmul.f32 %v646, 1.442695
        %v677 = vpow.pop %v676
        %v678 = vmul.f32 %v647, 1.442695
        %v679 = vpow.pop %v678
        %680 = vadd.xlane.f32.xlu0 %v649
        %v681 = vpop.xlane.xlu0 %680
        %682 = vadd.xlane.f32.xlu0 %v651
        %v683 = vpop.xlane.xlu0 %682
        %684 = vadd.xlane.f32.xlu0 %v653
        %v685 = vpop.xlane.xlu0 %684
        %686 = vadd.xlane.f32.xlu0 %v655
        %v687 = vpop.xlane.xlu0 %686
        %688 = vadd.xlane.f32.xlu0 %v657
        %v689 = vpop.xlane.xlu0 %688
        %690 = vadd.xlane.f32.xlu0 %v659
        %v691 = vpop.xlane.xlu0 %690
        %692 = vadd.xlane.f32.xlu0 %v661
        %v693 = vpop.xlane.xlu0 %692
        %694 = vadd.xlane.f32.xlu0 %v663
        %v695 = vpop.xlane.xlu0 %694
        %696 = vadd.xlane.f32.xlu0 %v665
        %v697 = vpop.xlane.xlu0 %696
        %698 = vadd.xlane.f32.xlu0 %v667
        %v699 = vpop.xlane.xlu0 %698
        %700 = vadd.xlane.f32.xlu0 %v669
        %v701 = vpop.xlane.xlu0 %700
        %702 = vadd.xlane.f32.xlu0 %v671
        %v703 = vpop.xlane.xlu0 %702
        %704 = vadd.xlane.f32.xlu0 %v673
        %v705 = vpop.xlane.xlu0 %704
        %706 = vadd.xlane.f32.xlu0 %v675
        %v707 = vpop.xlane.xlu0 %706
        %708 = vadd.xlane.f32.xlu0 %v677
        %v709 = vpop.xlane.xlu0 %708
        %710 = vadd.xlane.f32.xlu0 %v679
        %v711 = vpop.xlane.xlu0 %710
        %v712 = vrcp.pop %v681
        %v713 = vrcp.pop %v683
        %v714 = vrcp.pop %v685
        %v715 = vrcp.pop %v687
        %v716 = vrcp.pop %v689
        %v717 = vrcp.pop %v691
        %v718 = vrcp.pop %v693
        %v719 = vrcp.pop %v695
        %v720 = vrcp.pop %v697
        %v721 = vrcp.pop %v699
        %v722 = vrcp.pop %v701
        %v723 = vrcp.pop %v703
        %v724 = vrcp.pop %v705
        %v725 = vrcp.pop %v707
        %v726 = vrcp.pop %v709
        %v727 = vrcp.pop %v711
        %v728 = vmul.f32 %v649, %v712
        %v729 = vmul.f32 %v651, %v713
        %v730 = vmul.f32 %v653, %v714
        %v731 = vmul.f32 %v655, %v715
        %v732 = vmul.f32 %v657, %v716
        %v733 = vmul.f32 %v659, %v717
        %v734 = vmul.f32 %v661, %v718
        %v735 = vmul.f32 %v663, %v719
        %v736 = vmul.f32 %v665, %v720
        %v737 = vmul.f32 %v667, %v721
        %v738 = vmul.f32 %v669, %v722
        %v739 = vmul.f32 %v671, %v723
        %v740 = vmul.f32 %v673, %v724
        %v741 = vmul.f32 %v675, %v725
        %v742 = vmul.f32 %v677, %v726
        %v743 = vmul.f32 %v679, %v727
        %v744 = vpack.c.bf16 %v729, %v728
        %v745 = vpack.c.bf16 %v731, %v730
        %v746 = vpack.c.bf16 %v733, %v732
        %v747 = vpack.c.bf16 %v735, %v734
        %v748 = vpack.c.bf16 %v737, %v736
        %v749 = vpack.c.bf16 %v739, %v738
        %v750 = vpack.c.bf16 %v741, %v740
        %v751 = vpack.c.bf16 %v743, %v742
        %v752 = vld [vmem:[%s343] sm:$0xf]
        %v753 = vld [vmem:[%s343 + $0x4] sm:$0xf]
        %v754 = vld [vmem:[%s343 + $0x8] sm:$0xf]
        %v755 = vld [vmem:[%s343 + $0xc] sm:$0xf]
        %v756 = vld [vmem:[%s343 + $0x10] sm:$0xf]
        %v757 = vld [vmem:[%s343 + $0x14] sm:$0xf]
        %v758 = vld [vmem:[%s343 + $0x18] sm:$0xf]
        %v759 = vld [vmem:[%s343 + $0x1c] sm:$0xf]
        %v760 = vld [vmem:[%s343 + $0x20] sm:$0xf]
        %v761 = vld [vmem:[%s343 + $0x24] sm:$0xf]
        %v762 = vld [vmem:[%s343 + $0x28] sm:$0xf]
        %v763 = vld [vmem:[%s343 + $0x2c] sm:$0xf]
        %v764 = vld [vmem:[%s343 + $0x30] sm:$0xf]
        %v765 = vld [vmem:[%s343 + $0x34] sm:$0xf]
        %v766 = vld [vmem:[%s343 + $0x38] sm:$0xf]
        %v767 = vld [vmem:[%s343 + $0x3c] sm:$0xf]
        %v784 = vunpack.c.l.b16 %v752
        %v785 = vunpack.c.l.b16 %v753
        %v786 = vunpack.c.l.b16 %v754
        %v787 = vunpack.c.l.b16 %v755
        %v788 = vunpack.c.l.b16 %v756
        %v789 = vunpack.c.l.b16 %v757
        %v790 = vunpack.c.l.b16 %v758
        %v791 = vunpack.c.l.b16 %v759
        %v792 = vunpack.c.l.b16 %v760
        %v793 = vunpack.c.l.b16 %v761
        %v794 = vunpack.c.l.b16 %v762
        %v795 = vunpack.c.l.b16 %v763
        %v796 = vunpack.c.l.b16 %v764
        %v797 = vunpack.c.l.b16 %v765
        %v798 = vunpack.c.l.b16 %v766
        %v799 = vunpack.c.l.b16 %v767
        %v800 = vpack.c.b16 %v785, %v784
        %v801 = vpack.c.b16 %v787, %v786
        %v802 = vpack.c.b16 %v789, %v788
        %v803 = vpack.c.b16 %v791, %v790
        %v804 = vpack.c.b16 %v793, %v792
        %v805 = vpack.c.b16 %v795, %v794
        %v806 = vpack.c.b16 %v797, %v796
        %v807 = vpack.c.b16 %v799, %v798
        %816 = vmatprep.subr.bf16.mxu0 0
        %817 = vmatpush1.bf16.msra.mxu0 %v800
        %818 = vmatprep.subr.bf16.mxu0 0
        %819 = vmatpush1.bf16.msra.mxu0 %v801
        %820 = vmatprep.subr.bf16.mxu0 0
        %821 = vmatpush1.bf16.msra.mxu0 %v802
        %822 = vmatprep.subr.bf16.mxu0 0
        %823 = vmatpush1.bf16.msra.mxu0 %v803
        %824 = vmatprep.subr.bf16.mxu0 0
        %825 = vmatpush1.bf16.msra.mxu0 %v804
        %826 = vmatprep.subr.bf16.mxu0 0
        %827 = vmatpush1.bf16.msra.mxu0 %v805
        %828 = vmatprep.subr.bf16.mxu0 0
        %829 = vmatpush1.bf16.msra.mxu0 %v806
        %830 = vmatprep.subr.bf16.mxu0 0
        %831 = vmatpush1.bf16.msra.mxu0 %v807
        %832 = vmatprep.subr.bf16.mxu0 0
        %833 = vmatpush1.bf16.msra.mxu0 0
        %834 = vmatprep.subr.bf16.mxu0 0
        %835 = vmatpush1.bf16.msra.mxu0 0
        %836 = vmatprep.subr.bf16.mxu0 0
        %837 = vmatpush1.bf16.msra.mxu0 0
        %838 = vmatprep.subr.bf16.mxu0 0
        %839 = vmatpush1.bf16.msra.mxu0 0
        %840 = vmatprep.subr.bf16.mxu0 0
        %841 = vmatpush1.bf16.msra.mxu0 0
        %842 = vmatprep.subr.bf16.mxu0 0
        %843 = vmatpush1.bf16.msra.mxu0 0
        %844 = vmatprep.subr.bf16.mxu0 0
        %845 = vmatpush1.bf16.msra.mxu0 0
        %846 = vmatprep.subr.bf16.mxu0 0
        %847 = vmatpush1.bf16.msra.mxu0 0
        %848 = vmatprep.mubr.bf16.mxu0 0
        %849 = vmatmul.mubr.bf16.gmra.mrb[0].mxu0 %v744
        %v850 = vpop.f32.mrb[0].mxu0
        %v851 = vadd.f32 0.0, %v850
        %v852 = vpop.f32.mrb[0].mxu0
        %v853 = vpop.f32.mrb[0].mxu0
        %v854 = vadd.f32 0.0, %v853
        %v855 = vpop.f32.mrb[0].mxu0
        %856 = vmatprep.mubr.bf16.mxu0 0
        %857 = vmatmul.mubr.bf16.gmra.mrb[0].mxu0 %v745
        %v858 = vpop.f32.mrb[0].mxu0
        %v859 = vadd.f32 0.0, %v858
        %v860 = vpop.f32.mrb[0].mxu0
        %v861 = vpop.f32.mrb[0].mxu0
        %v862 = vadd.f32 0.0, %v861
        %v863 = vpop.f32.mrb[0].mxu0
        %864 = vmatprep.mubr.bf16.mxu0 0
        %865 = vmatmul.mubr.bf16.gmra.mrb[0].mxu0 %v746
        %v866 = vpop.f32.mrb[0].mxu0
        %v867 = vadd.f32 0.0, %v866
        %v868 = vpop.f32.mrb[0].mxu0
        %v869 = vpop.f32.mrb[0].mxu0
        %v870 = vadd.f32 0.0, %v869
        %v871 = vpop.f32.mrb[0].mxu0
        %872 = vmatprep.mubr.bf16.mxu0 0
        %873 = vmatmul.mubr.bf16.gmra.mrb[0].mxu0 %v747
        %v874 = vpop.f32.mrb[0].mxu0
        %v875 = vadd.f32 0.0, %v874
        %v876 = vpop.f32.mrb[0].mxu0
        %v877 = vpop.f32.mrb[0].mxu0
        %v878 = vadd.f32 0.0, %v877
        %v879 = vpop.f32.mrb[0].mxu0
        %880 = vmatprep.mubr.bf16.mxu0 0
        %881 = vmatmul.mubr.bf16.gmra.mrb[0].mxu0 %v748
        %v882 = vpop.f32.mrb[0].mxu0
        %v883 = vadd.f32 0.0, %v882
        %v884 = vpop.f32.mrb[0].mxu0
        %v885 = vpop.f32.mrb[0].mxu0
        %v886 = vadd.f32 0.0, %v885
        %v887 = vpop.f32.mrb[0].mxu0
        %888 = vmatprep.mubr.bf16.mxu0 0
        %889 = vmatmul.mubr.bf16.gmra.mrb[0].mxu0 %v749
        %v890 = vpop.f32.mrb[0].mxu0
        %v891 = vadd.f32 0.0, %v890
        %v892 = vpop.f32.mrb[0].mxu0
        %v893 = vpop.f32.mrb[0].mxu0
        %v894 = vadd.f32 0.0, %v893
        %v895 = vpop.f32.mrb[0].mxu0
        %896 = vmatprep.mubr.bf16.mxu0 0
        %897 = vmatmul.mubr.bf16.gmra.mrb[0].mxu0 %v750
        %v898 = vpop.f32.mrb[0].mxu0
        %v899 = vadd.f32 0.0, %v898
        %v900 = vpop.f32.mrb[0].mxu0
        %v901 = vpop.f32.mrb[0].mxu0
        %v902 = vadd.f32 0.0, %v901
        %v903 = vpop.f32.mrb[0].mxu0
        %904 = vmatprep.mubr.bf16.mxu0 0
        %905 = vmatmul.mubr.bf16.gmra.mrb[0].mxu0 %v751
        %v906 = vpop.f32.mrb[0].mxu0
        %v907 = vadd.f32 0.0, %v906
        %v908 = vpop.f32.mrb[0].mxu0
        %v909 = vpop.f32.mrb[0].mxu0
        %v910 = vadd.f32 0.0, %v909
        %v911 = vpop.f32.mrb[0].mxu0
        %912 = vdwg.mxu0
        %913 = vset.pattern.permute.xlu0 1
        %914 = vperm.xlu0 %913, %v435
        %v915 = vpop.permute.xlu0 %914
        %917 = vset.pattern.permute.xlu0 1
        %918 = vperm.xlu0 %917, %v436
        %v919 = vpop.permute.xlu0 %918
        %921 = vset.pattern.permute.xlu0 1
        %922 = vperm.xlu0 %921, %v437
        %v923 = vpop.permute.xlu0 %922
        %925 = vset.pattern.permute.xlu0 1
        %926 = vperm.xlu0 %925, %v438
        %v927 = vpop.permute.xlu0 %926
        %929 = vset.pattern.permute.xlu0 1
        %930 = vperm.xlu0 %929, %v439
        %v931 = vpop.permute.xlu0 %930
        %933 = vset.pattern.permute.xlu0 1
        %934 = vperm.xlu0 %933, %v440
        %v935 = vpop.permute.xlu0 %934
        %937 = vset.pattern.permute.xlu0 1
        %938 = vperm.xlu0 %937, %v441
        %v939 = vpop.permute.xlu0 %938
        %941 = vset.pattern.permute.xlu0 1
        %942 = vperm.xlu0 %941, %v442
        %v943 = vpop.permute.xlu0 %942
        %945 = vset.pattern.permute.xlu0 1
        %946 = vperm.xlu0 %945, %v443
        %v947 = vpop.permute.xlu0 %946
        %949 = vset.pattern.permute.xlu0 1
        %950 = vperm.xlu0 %949, %v444
        %v951 = vpop.permute.xlu0 %950
        %953 = vset.pattern.permute.xlu0 1
        %954 = vperm.xlu0 %953, %v445
        %v955 = vpop.permute.xlu0 %954
        %957 = vset.pattern.permute.xlu0 1
        %958 = vperm.xlu0 %957, %v446
        %v959 = vpop.permute.xlu0 %958
        %961 = vset.pattern.permute.xlu0 1
        %962 = vperm.xlu0 %961, %v447
        %v963 = vpop.permute.xlu0 %962
        %965 = vset.pattern.permute.xlu0 1
        %966 = vperm.xlu0 %965, %v448
        %v967 = vpop.permute.xlu0 %966
        %969 = vset.pattern.permute.xlu0 1
        %970 = vperm.xlu0 %969, %v449
        %v971 = vpop.permute.xlu0 %970
        %973 = vset.pattern.permute.xlu0 1
        %974 = vperm.xlu0 %973, %v450
        %v975 = vpop.permute.xlu0 %974
        %v977 = vlaneseq
        %v978 = vshrl.u32 %v977, 7
        %v979 = vsub.s32 1, %v978
        %v980 = vrot.slane %v451, %v979
        %v981 = vadd.f32 %v915, %v980
        %v982 = vadd.f32 %v919, %v980
        %v983 = vadd.f32 %v923, %v980
        %v984 = vadd.f32 %v927, %v980
        %v985 = vadd.f32 %v931, %v980
        %v986 = vadd.f32 %v935, %v980
        %v987 = vadd.f32 %v939, %v980
        %v988 = vadd.f32 %v943, %v980
        %v989 = vadd.f32 %v947, %v980
        %v990 = vadd.f32 %v951, %v980
        %v991 = vadd.f32 %v955, %v980
        %v992 = vadd.f32 %v959, %v980
        %v993 = vadd.f32 %v963, %v980
        %v994 = vadd.f32 %v967, %v980
        %v995 = vadd.f32 %v971, %v980
        %v996 = vadd.f32 %v975, %v980
        %v997 = vmul.f32 %v981, 0.2
        %v998 = vmul.f32 %v982, 0.2
        %v999 = vmul.f32 %v983, 0.2
        %v1000 = vmul.f32 %v984, 0.2
        %v1001 = vmul.f32 %v985, 0.2
        %v1002 = vmul.f32 %v986, 0.2
        %v1003 = vmul.f32 %v987, 0.2
        %v1004 = vmul.f32 %v988, 0.2
        %v1005 = vmul.f32 %v989, 0.2
        %v1006 = vmul.f32 %v990, 0.2
        %v1007 = vmul.f32 %v991, 0.2
        %v1008 = vmul.f32 %v992, 0.2
        %v1009 = vmul.f32 %v993, 0.2
        %v1010 = vmul.f32 %v994, 0.2
        %v1011 = vmul.f32 %v995, 0.2
        %v1012 = vmul.f32 %v996, 0.2
        %v1013 = vmax.f32 %v981, %v997
        %v1014 = vmax.f32 %v982, %v998
        %v1015 = vmax.f32 %v983, %v999
        %v1016 = vmax.f32 %v984, %v1000
        %v1017 = vmax.f32 %v985, %v1001
        %v1018 = vmax.f32 %v986, %v1002
        %v1019 = vmax.f32 %v987, %v1003
        %v1020 = vmax.f32 %v988, %v1004
        %v1021 = vmax.f32 %v989, %v1005
        %v1022 = vmax.f32 %v990, %v1006
        %v1023 = vmax.f32 %v991, %v1007
        %v1024 = vmax.f32 %v992, %v1008
        %v1025 = vmax.f32 %v993, %v1009
        %v1026 = vmax.f32 %v994, %v1010
        %v1027 = vmax.f32 %v995, %v1011
        %v1028 = vmax.f32 %v996, %v1012
        %v1029 = vadd.f32 %v1013, %v419
        %v1030 = vadd.f32 %v1014, %v420
        %v1031 = vadd.f32 %v1015, %v421
        %v1032 = vadd.f32 %v1016, %v422
        %v1033 = vadd.f32 %v1017, %v423
        %v1034 = vadd.f32 %v1018, %v424
        %v1035 = vadd.f32 %v1019, %v425
        %v1036 = vadd.f32 %v1020, %v426
        %v1037 = vadd.f32 %v1021, %v427
        %v1038 = vadd.f32 %v1022, %v428
        %v1039 = vadd.f32 %v1023, %v429
        %v1040 = vadd.f32 %v1024, %v430
        %v1041 = vadd.f32 %v1025, %v431
        %v1042 = vadd.f32 %v1026, %v432
        %v1043 = vadd.f32 %v1027, %v433
        %v1044 = vadd.f32 %v1028, %v434
        %1045 = vmax.xlane.f32.xlu0 %v1029
        %v1046 = vpop.xlane.xlu0 %1045
        %1047 = vmax.xlane.f32.xlu0 %v1030
        %v1048 = vpop.xlane.xlu0 %1047
        %1049 = vmax.xlane.f32.xlu0 %v1031
        %v1050 = vpop.xlane.xlu0 %1049
        %1051 = vmax.xlane.f32.xlu0 %v1032
        %v1052 = vpop.xlane.xlu0 %1051
        %1053 = vmax.xlane.f32.xlu0 %v1033
        %v1054 = vpop.xlane.xlu0 %1053
        %1055 = vmax.xlane.f32.xlu0 %v1034
        %v1056 = vpop.xlane.xlu0 %1055
        %1057 = vmax.xlane.f32.xlu0 %v1035
        %v1058 = vpop.xlane.xlu0 %1057
        %1059 = vmax.xlane.f32.xlu0 %v1036
        %v1060 = vpop.xlane.xlu0 %1059
        %1061 = vmax.xlane.f32.xlu0 %v1037
        %v1062 = vpop.xlane.xlu0 %1061
        %1063 = vmax.xlane.f32.xlu0 %v1038
        %v1064 = vpop.xlane.xlu0 %1063
        %1065 = vmax.xlane.f32.xlu0 %v1039
        %v1066 = vpop.xlane.xlu0 %1065
        %1067 = vmax.xlane.f32.xlu0 %v1040
        %v1068 = vpop.xlane.xlu0 %1067
        %1069 = vmax.xlane.f32.xlu0 %v1041
        %v1070 = vpop.xlane.xlu0 %1069
        %1071 = vmax.xlane.f32.xlu0 %v1042
        %v1072 = vpop.xlane.xlu0 %1071
        %1073 = vmax.xlane.f32.xlu0 %v1043
        %v1074 = vpop.xlane.xlu0 %1073
        %1075 = vmax.xlane.f32.xlu0 %v1044
        %v1076 = vpop.xlane.xlu0 %1075
        %v1077 = vsub.f32 %v1029, %v1046
        %v1078 = vsub.f32 %v1030, %v1048
        %v1079 = vsub.f32 %v1031, %v1050
        %v1080 = vsub.f32 %v1032, %v1052
        %v1081 = vsub.f32 %v1033, %v1054
        %v1082 = vsub.f32 %v1034, %v1056
        %v1083 = vsub.f32 %v1035, %v1058
        %v1084 = vsub.f32 %v1036, %v1060
        %v1085 = vsub.f32 %v1037, %v1062
        %v1086 = vsub.f32 %v1038, %v1064
        %v1087 = vsub.f32 %v1039, %v1066
        %v1088 = vsub.f32 %v1040, %v1068
        %v1089 = vsub.f32 %v1041, %v1070
        %v1090 = vsub.f32 %v1042, %v1072
        %v1091 = vsub.f32 %v1043, %v1074
        %v1092 = vsub.f32 %v1044, %v1076
        %v1093 = vmul.f32 %v1077, 1.442695
        %v1094 = vpow.pop %v1093
        %v1095 = vmul.f32 %v1078, 1.442695
        %v1096 = vpow.pop %v1095
        %v1097 = vmul.f32 %v1079, 1.442695
        %v1098 = vpow.pop %v1097
        %v1099 = vmul.f32 %v1080, 1.442695
        %v1100 = vpow.pop %v1099
        %v1101 = vmul.f32 %v1081, 1.442695
        %v1102 = vpow.pop %v1101
        %v1103 = vmul.f32 %v1082, 1.442695
        %v1104 = vpow.pop %v1103
        %v1105 = vmul.f32 %v1083, 1.442695
        %v1106 = vpow.pop %v1105
        %v1107 = vmul.f32 %v1084, 1.442695
        %v1108 = vpow.pop %v1107
        %v1109 = vmul.f32 %v1085, 1.442695
        %v1110 = vpow.pop %v1109
        %v1111 = vmul.f32 %v1086, 1.442695
        %v1112 = vpow.pop %v1111
        %v1113 = vmul.f32 %v1087, 1.442695
        %v1114 = vpow.pop %v1113
        %v1115 = vmul.f32 %v1088, 1.442695
        %v1116 = vpow.pop %v1115
        %v1117 = vmul.f32 %v1089, 1.442695
        %v1118 = vpow.pop %v1117
        %v1119 = vmul.f32 %v1090, 1.442695
        %v1120 = vpow.pop %v1119
        %v1121 = vmul.f32 %v1091, 1.442695
        %v1122 = vpow.pop %v1121
        %v1123 = vmul.f32 %v1092, 1.442695
        %v1124 = vpow.pop %v1123
        %1125 = vadd.xlane.f32.xlu0 %v1094
        %v1126 = vpop.xlane.xlu0 %1125
        %1127 = vadd.xlane.f32.xlu0 %v1096
        %v1128 = vpop.xlane.xlu0 %1127
        %1129 = vadd.xlane.f32.xlu0 %v1098
        %v1130 = vpop.xlane.xlu0 %1129
        %1131 = vadd.xlane.f32.xlu0 %v1100
        %v1132 = vpop.xlane.xlu0 %1131
        %1133 = vadd.xlane.f32.xlu0 %v1102
        %v1134 = vpop.xlane.xlu0 %1133
        %1135 = vadd.xlane.f32.xlu0 %v1104
        %v1136 = vpop.xlane.xlu0 %1135
        %1137 = vadd.xlane.f32.xlu0 %v1106
        %v1138 = vpop.xlane.xlu0 %1137
        %1139 = vadd.xlane.f32.xlu0 %v1108
        %v1140 = vpop.xlane.xlu0 %1139
        %1141 = vadd.xlane.f32.xlu0 %v1110
        %v1142 = vpop.xlane.xlu0 %1141
        %1143 = vadd.xlane.f32.xlu0 %v1112
        %v1144 = vpop.xlane.xlu0 %1143
        %1145 = vadd.xlane.f32.xlu0 %v1114
        %v1146 = vpop.xlane.xlu0 %1145
        %1147 = vadd.xlane.f32.xlu0 %v1116
        %v1148 = vpop.xlane.xlu0 %1147
        %1149 = vadd.xlane.f32.xlu0 %v1118
        %v1150 = vpop.xlane.xlu0 %1149
        %1151 = vadd.xlane.f32.xlu0 %v1120
        %v1152 = vpop.xlane.xlu0 %1151
        %1153 = vadd.xlane.f32.xlu0 %v1122
        %v1154 = vpop.xlane.xlu0 %1153
        %1155 = vadd.xlane.f32.xlu0 %v1124
        %v1156 = vpop.xlane.xlu0 %1155
        %v1157 = vrcp.pop %v1126
        %v1158 = vrcp.pop %v1128
        %v1159 = vrcp.pop %v1130
        %v1160 = vrcp.pop %v1132
        %v1161 = vrcp.pop %v1134
        %v1162 = vrcp.pop %v1136
        %v1163 = vrcp.pop %v1138
        %v1164 = vrcp.pop %v1140
        %v1165 = vrcp.pop %v1142
        %v1166 = vrcp.pop %v1144
        %v1167 = vrcp.pop %v1146
        %v1168 = vrcp.pop %v1148
        %v1169 = vrcp.pop %v1150
        %v1170 = vrcp.pop %v1152
        %v1171 = vrcp.pop %v1154
        %v1172 = vrcp.pop %v1156
        %v1173 = vmul.f32 %v1094, %v1157
        %v1174 = vmul.f32 %v1096, %v1158
        %v1175 = vmul.f32 %v1098, %v1159
        %v1176 = vmul.f32 %v1100, %v1160
        %v1177 = vmul.f32 %v1102, %v1161
        %v1178 = vmul.f32 %v1104, %v1162
        %v1179 = vmul.f32 %v1106, %v1163
        %v1180 = vmul.f32 %v1108, %v1164
        %v1181 = vmul.f32 %v1110, %v1165
        %v1182 = vmul.f32 %v1112, %v1166
        %v1183 = vmul.f32 %v1114, %v1167
        %v1184 = vmul.f32 %v1116, %v1168
        %v1185 = vmul.f32 %v1118, %v1169
        %v1186 = vmul.f32 %v1120, %v1170
        %v1187 = vmul.f32 %v1122, %v1171
        %v1188 = vmul.f32 %v1124, %v1172
        %v1189 = vpack.c.bf16 %v1174, %v1173
        %v1190 = vpack.c.bf16 %v1176, %v1175
        %v1191 = vpack.c.bf16 %v1178, %v1177
        %v1192 = vpack.c.bf16 %v1180, %v1179
        %v1193 = vpack.c.bf16 %v1182, %v1181
        %v1194 = vpack.c.bf16 %v1184, %v1183
        %v1195 = vpack.c.bf16 %v1186, %v1185
        %v1196 = vpack.c.bf16 %v1188, %v1187
        %s1197 = scalar_lea.vmem %s343, 64 [#allocation7]
        %v1198 = vld [vmem:[%s1197] sm:$0xf]
        %v1199 = vld [vmem:[%s1197 + $0x4] sm:$0xf]
        %v1200 = vld [vmem:[%s1197 + $0x8] sm:$0xf]
        %v1201 = vld [vmem:[%s1197 + $0xc] sm:$0xf]
        %v1202 = vld [vmem:[%s1197 + $0x10] sm:$0xf]
        %v1203 = vld [vmem:[%s1197 + $0x14] sm:$0xf]
        %v1204 = vld [vmem:[%s1197 + $0x18] sm:$0xf]
        %v1205 = vld [vmem:[%s1197 + $0x1c] sm:$0xf]
        %v1206 = vld [vmem:[%s1197 + $0x20] sm:$0xf]
        %v1207 = vld [vmem:[%s1197 + $0x24] sm:$0xf]
        %v1208 = vld [vmem:[%s1197 + $0x28] sm:$0xf]
        %v1209 = vld [vmem:[%s1197 + $0x2c] sm:$0xf]
        %v1210 = vld [vmem:[%s1197 + $0x30] sm:$0xf]
        %v1211 = vld [vmem:[%s1197 + $0x34] sm:$0xf]
        %v1212 = vld [vmem:[%s1197 + $0x38] sm:$0xf]
        %v1213 = vld [vmem:[%s1197 + $0x3c] sm:$0xf]
        %v1230 = vunpack.c.l.b16 %v1198
        %v1231 = vunpack.c.l.b16 %v1199
        %v1232 = vunpack.c.l.b16 %v1200
        %v1233 = vunpack.c.l.b16 %v1201
        %v1234 = vunpack.c.l.b16 %v1202
        %v1235 = vunpack.c.l.b16 %v1203
        %v1236 = vunpack.c.l.b16 %v1204
        %v1237 = vunpack.c.l.b16 %v1205
        %v1238 = vunpack.c.l.b16 %v1206
        %v1239 = vunpack.c.l.b16 %v1207
        %v1240 = vunpack.c.l.b16 %v1208
        %v1241 = vunpack.c.l.b16 %v1209
        %v1242 = vunpack.c.l.b16 %v1210
        %v1243 = vunpack.c.l.b16 %v1211
        %v1244 = vunpack.c.l.b16 %v1212
        %v1245 = vunpack.c.l.b16 %v1213
        %v1246 = vpack.c.b16 %v1231, %v1230
        %v1247 = vpack.c.b16 %v1233, %v1232
        %v1248 = vpack.c.b16 %v1235, %v1234
        %v1249 = vpack.c.b16 %v1237, %v1236
        %v1250 = vpack.c.b16 %v1239, %v1238
        %v1251 = vpack.c.b16 %v1241, %v1240
        %v1252 = vpack.c.b16 %v1243, %v1242
        %v1253 = vpack.c.b16 %v1245, %v1244
        %1262 = vmatprep.subr.bf16.mxu0 0
        %1263 = vmatpush1.bf16.msra.mxu0 %v1246
        %1264 = vmatprep.subr.bf16.mxu0 0
        %1265 = vmatpush1.bf16.msra.mxu0 %v1247
        %1266 = vmatprep.subr.bf16.mxu0 0
        %1267 = vmatpush1.bf16.msra.mxu0 %v1248
        %1268 = vmatprep.subr.bf16.mxu0 0
        %1269 = vmatpush1.bf16.msra.mxu0 %v1249
        %1270 = vmatprep.subr.bf16.mxu0 0
        %1271 = vmatpush1.bf16.msra.mxu0 %v1250
        %1272 = vmatprep.subr.bf16.mxu0 0
        %1273 = vmatpush1.bf16.msra.mxu0 %v1251
        %1274 = vmatprep.subr.bf16.mxu0 0
        %1275 = vmatpush1.bf16.msra.mxu0 %v1252
        %1276 = vmatprep.subr.bf16.mxu0 0
        %1277 = vmatpush1.bf16.msra.mxu0 %v1253
        %1278 = vmatprep.subr.bf16.mxu0 0
        %1279 = vmatpush1.bf16.msra.mxu0 0
        %1280 = vmatprep.subr.bf16.mxu0 0
        %1281 = vmatpush1.bf16.msra.mxu0 0
        %1282 = vmatprep.subr.bf16.mxu0 0
        %1283 = vmatpush1.bf16.msra.mxu0 0
        %1284 = vmatprep.subr.bf16.mxu0 0
        %1285 = vmatpush1.bf16.msra.mxu0 0
        %1286 = vmatprep.subr.bf16.mxu0 0
        %1287 = vmatpush1.bf16.msra.mxu0 0
        %1288 = vmatprep.subr.bf16.mxu0 0
        %1289 = vmatpush1.bf16.msra.mxu0 0
        %1290 = vmatprep.subr.bf16.mxu0 0
        %1291 = vmatpush1.bf16.msra.mxu0 0
        %1292 = vmatprep.subr.bf16.mxu0 0
        %1293 = vmatpush1.bf16.msra.mxu0 0
        %1294 = vmatprep.mubr.bf16.mxu0 0
        %1295 = vmatmul.mubr.bf16.gmra.mrb[0].mxu0 %v1189
        %v1296 = vpop.f32.mrb[0].mxu0
        %v1297 = vadd.f32 0.0, %v1296
        %v1298 = vpop.f32.mrb[0].mxu0
        %v1299 = vpop.f32.mrb[0].mxu0
        %v1300 = vadd.f32 0.0, %v1299
        %v1301 = vpop.f32.mrb[0].mxu0
        %1302 = vmatprep.mubr.bf16.mxu0 0
        %1303 = vmatmul.mubr.bf16.gmra.mrb[0].mxu0 %v1190
        %v1304 = vpop.f32.mrb[0].mxu0
        %v1305 = vadd.f32 0.0, %v1304
        %v1306 = vpop.f32.mrb[0].mxu0
        %v1307 = vpop.f32.mrb[0].mxu0
        %v1308 = vadd.f32 0.0, %v1307
        %v1309 = vpop.f32.mrb[0].mxu0
        %1310 = vmatprep.mubr.bf16.mxu0 0
        %1311 = vmatmul.mubr.bf16.gmra.mrb[0].mxu0 %v1191
        %v1312 = vpop.f32.mrb[0].mxu0
        %v1313 = vadd.f32 0.0, %v1312
        %v1314 = vpop.f32.mrb[0].mxu0
        %v1315 = vpop.f32.mrb[0].mxu0
        %v1316 = vadd.f32 0.0, %v1315
        %v1317 = vpop.f32.mrb[0].mxu0
        %1318 = vmatprep.mubr.bf16.mxu0 0
        %1319 = vmatmul.mubr.bf16.gmra.mrb[0].mxu0 %v1192
        %v1320 = vpop.f32.mrb[0].mxu0
        %v1321 = vadd.f32 0.0, %v1320
        %v1322 = vpop.f32.mrb[0].mxu0
        %v1323 = vpop.f32.mrb[0].mxu0
        %v1324 = vadd.f32 0.0, %v1323
        %v1325 = vpop.f32.mrb[0].mxu0
        %1326 = vmatprep.mubr.bf16.mxu0 0
        %1327 = vmatmul.mubr.bf16.gmra.mrb[0].mxu0 %v1193
        %v1328 = vpop.f32.mrb[0].mxu0
        %v1329 = vadd.f32 0.0, %v1328
        %v1330 = vpop.f32.mrb[0].mxu0
        %v1331 = vpop.f32.mrb[0].mxu0
        %v1332 = vadd.f32 0.0, %v1331
        %v1333 = vpop.f32.mrb[0].mxu0
        %1334 = vmatprep.mubr.bf16.mxu0 0
        %1335 = vmatmul.mubr.bf16.gmra.mrb[0].mxu0 %v1194
        %v1336 = vpop.f32.mrb[0].mxu0
        %v1337 = vadd.f32 0.0, %v1336
        %v1338 = vpop.f32.mrb[0].mxu0
        %v1339 = vpop.f32.mrb[0].mxu0
        %v1340 = vadd.f32 0.0, %v1339
        %v1341 = vpop.f32.mrb[0].mxu0
        %1342 = vmatprep.mubr.bf16.mxu0 0
        %1343 = vmatmul.mubr.bf16.gmra.mrb[0].mxu0 %v1195
        %v1344 = vpop.f32.mrb[0].mxu0
        %v1345 = vadd.f32 0.0, %v1344
        %v1346 = vpop.f32.mrb[0].mxu0
        %v1347 = vpop.f32.mrb[0].mxu0
        %v1348 = vadd.f32 0.0, %v1347
        %v1349 = vpop.f32.mrb[0].mxu0
        %1350 = vmatprep.mubr.bf16.mxu0 0
        %1351 = vmatmul.mubr.bf16.gmra.mrb[0].mxu0 %v1196
        %v1352 = vpop.f32.mrb[0].mxu0
        %v1353 = vadd.f32 0.0, %v1352
        %v1354 = vpop.f32.mrb[0].mxu0
        %v1355 = vpop.f32.mrb[0].mxu0
        %v1356 = vadd.f32 0.0, %v1355
        %v1357 = vpop.f32.mrb[0].mxu0
        %1358 = vdwg.mxu0
        %1359 = vset.pattern.permute.xlu0 2
        %1360 = vperm.xlu0 %1359, %v435
        %v1361 = vpop.permute.xlu0 %1360
        %1363 = vset.pattern.permute.xlu0 2
        %1364 = vperm.xlu0 %1363, %v436
        %v1365 = vpop.permute.xlu0 %1364
        %1367 = vset.pattern.permute.xlu0 2
        %1368 = vperm.xlu0 %1367, %v437
        %v1369 = vpop.permute.xlu0 %1368
        %1371 = vset.pattern.permute.xlu0 2
        %1372 = vperm.xlu0 %1371, %v438
        %v1373 = vpop.permute.xlu0 %1372
        %1375 = vset.pattern.permute.xlu0 2
        %1376 = vperm.xlu0 %1375, %v439
        %v1377 = vpop.permute.xlu0 %1376
        %1379 = vset.pattern.permute.xlu0 2
        %1380 = vperm.xlu0 %1379, %v440
        %v1381 = vpop.permute.xlu0 %1380
        %1383 = vset.pattern.permute.xlu0 2
        %1384 = vperm.xlu0 %1383, %v441
        %v1385 = vpop.permute.xlu0 %1384
        %1387 = vset.pattern.permute.xlu0 2
        %1388 = vperm.xlu0 %1387, %v442
        %v1389 = vpop.permute.xlu0 %1388
        %1391 = vset.pattern.permute.xlu0 2
        %1392 = vperm.xlu0 %1391, %v443
        %v1393 = vpop.permute.xlu0 %1392
        %1395 = vset.pattern.permute.xlu0 2
        %1396 = vperm.xlu0 %1395, %v444
        %v1397 = vpop.permute.xlu0 %1396
        %1399 = vset.pattern.permute.xlu0 2
        %1400 = vperm.xlu0 %1399, %v445
        %v1401 = vpop.permute.xlu0 %1400
        %1403 = vset.pattern.permute.xlu0 2
        %1404 = vperm.xlu0 %1403, %v446
        %v1405 = vpop.permute.xlu0 %1404
        %1407 = vset.pattern.permute.xlu0 2
        %1408 = vperm.xlu0 %1407, %v447
        %v1409 = vpop.permute.xlu0 %1408
        %1411 = vset.pattern.permute.xlu0 2
        %1412 = vperm.xlu0 %1411, %v448
        %v1413 = vpop.permute.xlu0 %1412
        %1415 = vset.pattern.permute.xlu0 2
        %1416 = vperm.xlu0 %1415, %v449
        %v1417 = vpop.permute.xlu0 %1416
        %1419 = vset.pattern.permute.xlu0 2
        %1420 = vperm.xlu0 %1419, %v450
        %v1421 = vpop.permute.xlu0 %1420
        %v1423 = vlaneseq
        %v1424 = vshrl.u32 %v1423, 7
        %v1425 = vsub.s32 2, %v1424
        %v1426 = vrot.slane %v451, %v1425
        %v1427 = vadd.f32 %v1361, %v1426
        %v1428 = vadd.f32 %v1365, %v1426
        %v1429 = vadd.f32 %v1369, %v1426
        %v1430 = vadd.f32 %v1373, %v1426
        %v1431 = vadd.f32 %v1377, %v1426
        %v1432 = vadd.f32 %v1381, %v1426
        %v1433 = vadd.f32 %v1385, %v1426
        %v1434 = vadd.f32 %v1389, %v1426
        %v1435 = vadd.f32 %v1393, %v1426
        %v1436 = vadd.f32 %v1397, %v1426
        %v1437 = vadd.f32 %v1401, %v1426
        %v1438 = vadd.f32 %v1405, %v1426
        %v1439 = vadd.f32 %v1409, %v1426
        %v1440 = vadd.f32 %v1413, %v1426
        %v1441 = vadd.f32 %v1417, %v1426
        %v1442 = vadd.f32 %v1421, %v1426
        %v1443 = vmul.f32 %v1427, 0.2
        %v1444 = vmul.f32 %v1428, 0.2
        %v1445 = vmul.f32 %v1429, 0.2
        %v1446 = vmul.f32 %v1430, 0.2
        %v1447 = vmul.f32 %v1431, 0.2
        %v1448 = vmul.f32 %v1432, 0.2
        %v1449 = vmul.f32 %v1433, 0.2
        %v1450 = vmul.f32 %v1434, 0.2
        %v1451 = vmul.f32 %v1435, 0.2
        %v1452 = vmul.f32 %v1436, 0.2
        %v1453 = vmul.f32 %v1437, 0.2
        %v1454 = vmul.f32 %v1438, 0.2
        %v1455 = vmul.f32 %v1439, 0.2
        %v1456 = vmul.f32 %v1440, 0.2
        %v1457 = vmul.f32 %v1441, 0.2
        %v1458 = vmul.f32 %v1442, 0.2
        %v1459 = vmax.f32 %v1427, %v1443
        %v1460 = vmax.f32 %v1428, %v1444
        %v1461 = vmax.f32 %v1429, %v1445
        %v1462 = vmax.f32 %v1430, %v1446
        %v1463 = vmax.f32 %v1431, %v1447
        %v1464 = vmax.f32 %v1432, %v1448
        %v1465 = vmax.f32 %v1433, %v1449
        %v1466 = vmax.f32 %v1434, %v1450
        %v1467 = vmax.f32 %v1435, %v1451
        %v1468 = vmax.f32 %v1436, %v1452
        %v1469 = vmax.f32 %v1437, %v1453
        %v1470 = vmax.f32 %v1438, %v1454
        %v1471 = vmax.f32 %v1439, %v1455
        %v1472 = vmax.f32 %v1440, %v1456
        %v1473 = vmax.f32 %v1441, %v1457
        %v1474 = vmax.f32 %v1442, %v1458
        %v1475 = vadd.f32 %v1459, %v419
        %v1476 = vadd.f32 %v1460, %v420
        %v1477 = vadd.f32 %v1461, %v421
        %v1478 = vadd.f32 %v1462, %v422
        %v1479 = vadd.f32 %v1463, %v423
        %v1480 = vadd.f32 %v1464, %v424
        %v1481 = vadd.f32 %v1465, %v425
        %v1482 = vadd.f32 %v1466, %v426
        %v1483 = vadd.f32 %v1467, %v427
        %v1484 = vadd.f32 %v1468, %v428
        %v1485 = vadd.f32 %v1469, %v429
        %v1486 = vadd.f32 %v1470, %v430
        %v1487 = vadd.f32 %v1471, %v431
        %v1488 = vadd.f32 %v1472, %v432
        %v1489 = vadd.f32 %v1473, %v433
        %v1490 = vadd.f32 %v1474, %v434
        %1491 = vmax.xlane.f32.xlu0 %v1475
        %v1492 = vpop.xlane.xlu0 %1491
        %1493 = vmax.xlane.f32.xlu0 %v1476
        %v1494 = vpop.xlane.xlu0 %1493
        %1495 = vmax.xlane.f32.xlu0 %v1477
        %v1496 = vpop.xlane.xlu0 %1495
        %1497 = vmax.xlane.f32.xlu0 %v1478
        %v1498 = vpop.xlane.xlu0 %1497
        %1499 = vmax.xlane.f32.xlu0 %v1479
        %v1500 = vpop.xlane.xlu0 %1499
        %1501 = vmax.xlane.f32.xlu0 %v1480
        %v1502 = vpop.xlane.xlu0 %1501
        %1503 = vmax.xlane.f32.xlu0 %v1481
        %v1504 = vpop.xlane.xlu0 %1503
        %1505 = vmax.xlane.f32.xlu0 %v1482
        %v1506 = vpop.xlane.xlu0 %1505
        %1507 = vmax.xlane.f32.xlu0 %v1483
        %v1508 = vpop.xlane.xlu0 %1507
        %1509 = vmax.xlane.f32.xlu0 %v1484
        %v1510 = vpop.xlane.xlu0 %1509
        %1511 = vmax.xlane.f32.xlu0 %v1485
        %v1512 = vpop.xlane.xlu0 %1511
        %1513 = vmax.xlane.f32.xlu0 %v1486
        %v1514 = vpop.xlane.xlu0 %1513
        %1515 = vmax.xlane.f32.xlu0 %v1487
        %v1516 = vpop.xlane.xlu0 %1515
        %1517 = vmax.xlane.f32.xlu0 %v1488
        %v1518 = vpop.xlane.xlu0 %1517
        %1519 = vmax.xlane.f32.xlu0 %v1489
        %v1520 = vpop.xlane.xlu0 %1519
        %1521 = vmax.xlane.f32.xlu0 %v1490
        %v1522 = vpop.xlane.xlu0 %1521
        %v1523 = vsub.f32 %v1475, %v1492
        %v1524 = vsub.f32 %v1476, %v1494
        %v1525 = vsub.f32 %v1477, %v1496
        %v1526 = vsub.f32 %v1478, %v1498
        %v1527 = vsub.f32 %v1479, %v1500
        %v1528 = vsub.f32 %v1480, %v1502
        %v1529 = vsub.f32 %v1481, %v1504
        %v1530 = vsub.f32 %v1482, %v1506
        %v1531 = vsub.f32 %v1483, %v1508
        %v1532 = vsub.f32 %v1484, %v1510
        %v1533 = vsub.f32 %v1485, %v1512
        %v1534 = vsub.f32 %v1486, %v1514
        %v1535 = vsub.f32 %v1487, %v1516
        %v1536 = vsub.f32 %v1488, %v1518
        %v1537 = vsub.f32 %v1489, %v1520
        %v1538 = vsub.f32 %v1490, %v1522
        %v1539 = vmul.f32 %v1523, 1.442695
        %v1540 = vpow.pop %v1539
        %v1541 = vmul.f32 %v1524, 1.442695
        %v1542 = vpow.pop %v1541
        %v1543 = vmul.f32 %v1525, 1.442695
        %v1544 = vpow.pop %v1543
        %v1545 = vmul.f32 %v1526, 1.442695
        %v1546 = vpow.pop %v1545
        %v1547 = vmul.f32 %v1527, 1.442695
        %v1548 = vpow.pop %v1547
        %v1549 = vmul.f32 %v1528, 1.442695
        %v1550 = vpow.pop %v1549
        %v1551 = vmul.f32 %v1529, 1.442695
        %v1552 = vpow.pop %v1551
        %v1553 = vmul.f32 %v1530, 1.442695
        %v1554 = vpow.pop %v1553
        %v1555 = vmul.f32 %v1531, 1.442695
        %v1556 = vpow.pop %v1555
        %v1557 = vmul.f32 %v1532, 1.442695
        %v1558 = vpow.pop %v1557
        %v1559 = vmul.f32 %v1533, 1.442695
        %v1560 = vpow.pop %v1559
        %v1561 = vmul.f32 %v1534, 1.442695
        %v1562 = vpow.pop %v1561
        %v1563 = vmul.f32 %v1535, 1.442695
        %v1564 = vpow.pop %v1563
        %v1565 = vmul.f32 %v1536, 1.442695
        %v1566 = vpow.pop %v1565
        %v1567 = vmul.f32 %v1537, 1.442695
        %v1568 = vpow.pop %v1567
        %v1569 = vmul.f32 %v1538, 1.442695
        %v1570 = vpow.pop %v1569
        %1571 = vadd.xlane.f32.xlu0 %v1540
        %v1572 = vpop.xlane.xlu0 %1571
        %1573 = vadd.xlane.f32.xlu0 %v1542
        %v1574 = vpop.xlane.xlu0 %1573
        %1575 = vadd.xlane.f32.xlu0 %v1544
        %v1576 = vpop.xlane.xlu0 %1575
        %1577 = vadd.xlane.f32.xlu0 %v1546
        %v1578 = vpop.xlane.xlu0 %1577
        %1579 = vadd.xlane.f32.xlu0 %v1548
        %v1580 = vpop.xlane.xlu0 %1579
        %1581 = vadd.xlane.f32.xlu0 %v1550
        %v1582 = vpop.xlane.xlu0 %1581
        %1583 = vadd.xlane.f32.xlu0 %v1552
        %v1584 = vpop.xlane.xlu0 %1583
        %1585 = vadd.xlane.f32.xlu0 %v1554
        %v1586 = vpop.xlane.xlu0 %1585
        %1587 = vadd.xlane.f32.xlu0 %v1556
        %v1588 = vpop.xlane.xlu0 %1587
        %1589 = vadd.xlane.f32.xlu0 %v1558
        %v1590 = vpop.xlane.xlu0 %1589
        %1591 = vadd.xlane.f32.xlu0 %v1560
        %v1592 = vpop.xlane.xlu0 %1591
        %1593 = vadd.xlane.f32.xlu0 %v1562
        %v1594 = vpop.xlane.xlu0 %1593
        %1595 = vadd.xlane.f32.xlu0 %v1564
        %v1596 = vpop.xlane.xlu0 %1595
        %1597 = vadd.xlane.f32.xlu0 %v1566
        %v1598 = vpop.xlane.xlu0 %1597
        %1599 = vadd.xlane.f32.xlu0 %v1568
        %v1600 = vpop.xlane.xlu0 %1599
        %1601 = vadd.xlane.f32.xlu0 %v1570
        %v1602 = vpop.xlane.xlu0 %1601
        %v1603 = vrcp.pop %v1572
        %v1604 = vrcp.pop %v1574
        %v1605 = vrcp.pop %v1576
        %v1606 = vrcp.pop %v1578
        %v1607 = vrcp.pop %v1580
        %v1608 = vrcp.pop %v1582
        %v1609 = vrcp.pop %v1584
        %v1610 = vrcp.pop %v1586
        %v1611 = vrcp.pop %v1588
        %v1612 = vrcp.pop %v1590
        %v1613 = vrcp.pop %v1592
        %v1614 = vrcp.pop %v1594
        %v1615 = vrcp.pop %v1596
        %v1616 = vrcp.pop %v1598
        %v1617 = vrcp.pop %v1600
        %v1618 = vrcp.pop %v1602
        %v1619 = vmul.f32 %v1540, %v1603
        %v1620 = vmul.f32 %v1542, %v1604
        %v1621 = vmul.f32 %v1544, %v1605
        %v1622 = vmul.f32 %v1546, %v1606
        %v1623 = vmul.f32 %v1548, %v1607
        %v1624 = vmul.f32 %v1550, %v1608
        %v1625 = vmul.f32 %v1552, %v1609
        %v1626 = vmul.f32 %v1554, %v1610
        %v1627 = vmul.f32 %v1556, %v1611
        %v1628 = vmul.f32 %v1558, %v1612
        %v1629 = vmul.f32 %v1560, %v1613
        %v1630 = vmul.f32 %v1562, %v1614
        %v1631 = vmul.f32 %v1564, %v1615
        %v1632 = vmul.f32 %v1566, %v1616
        %v1633 = vmul.f32 %v1568, %v1617
        %v1634 = vmul.f32 %v1570, %v1618
        %v1635 = vpack.c.bf16 %v1620, %v1619
        %v1636 = vpack.c.bf16 %v1622, %v1621
        %v1637 = vpack.c.bf16 %v1624, %v1623
        %v1638 = vpack.c.bf16 %v1626, %v1625
        %v1639 = vpack.c.bf16 %v1628, %v1627
        %v1640 = vpack.c.bf16 %v1630, %v1629
        %v1641 = vpack.c.bf16 %v1632, %v1631
        %v1642 = vpack.c.bf16 %v1634, %v1633
        %s1643 = scalar_lea.vmem %s343, 128 [#allocation7]
        %v1644 = vld [vmem:[%s1643] sm:$0xf]
        %v1645 = vld [vmem:[%s1643 + $0x4] sm:$0xf]
        %v1646 = vld [vmem:[%s1643 + $0x8] sm:$0xf]
        %v1647 = vld [vmem:[%s1643 + $0xc] sm:$0xf]
        %v1648 = vld [vmem:[%s1643 + $0x10] sm:$0xf]
        %v1649 = vld [vmem:[%s1643 + $0x14] sm:$0xf]
        %v1650 = vld [vmem:[%s1643 + $0x18] sm:$0xf]
        %v1651 = vld [vmem:[%s1643 + $0x1c] sm:$0xf]
        %v1652 = vld [vmem:[%s1643 + $0x20] sm:$0xf]
        %v1653 = vld [vmem:[%s1643 + $0x24] sm:$0xf]
        %v1654 = vld [vmem:[%s1643 + $0x28] sm:$0xf]
        %v1655 = vld [vmem:[%s1643 + $0x2c] sm:$0xf]
        %v1656 = vld [vmem:[%s1643 + $0x30] sm:$0xf]
        %v1657 = vld [vmem:[%s1643 + $0x34] sm:$0xf]
        %v1658 = vld [vmem:[%s1643 + $0x38] sm:$0xf]
        %v1659 = vld [vmem:[%s1643 + $0x3c] sm:$0xf]
        %v1676 = vunpack.c.l.b16 %v1644
        %v1677 = vunpack.c.l.b16 %v1645
        %v1678 = vunpack.c.l.b16 %v1646
        %v1679 = vunpack.c.l.b16 %v1647
        %v1680 = vunpack.c.l.b16 %v1648
        %v1681 = vunpack.c.l.b16 %v1649
        %v1682 = vunpack.c.l.b16 %v1650
        %v1683 = vunpack.c.l.b16 %v1651
        %v1684 = vunpack.c.l.b16 %v1652
        %v1685 = vunpack.c.l.b16 %v1653
        %v1686 = vunpack.c.l.b16 %v1654
        %v1687 = vunpack.c.l.b16 %v1655
        %v1688 = vunpack.c.l.b16 %v1656
        %v1689 = vunpack.c.l.b16 %v1657
        %v1690 = vunpack.c.l.b16 %v1658
        %v1691 = vunpack.c.l.b16 %v1659
        %v1692 = vpack.c.b16 %v1677, %v1676
        %v1693 = vpack.c.b16 %v1679, %v1678
        %v1694 = vpack.c.b16 %v1681, %v1680
        %v1695 = vpack.c.b16 %v1683, %v1682
        %v1696 = vpack.c.b16 %v1685, %v1684
        %v1697 = vpack.c.b16 %v1687, %v1686
        %v1698 = vpack.c.b16 %v1689, %v1688
        %v1699 = vpack.c.b16 %v1691, %v1690
        %1708 = vmatprep.subr.bf16.mxu0 0
        %1709 = vmatpush1.bf16.msra.mxu0 %v1692
        %1710 = vmatprep.subr.bf16.mxu0 0
        %1711 = vmatpush1.bf16.msra.mxu0 %v1693
        %1712 = vmatprep.subr.bf16.mxu0 0
        %1713 = vmatpush1.bf16.msra.mxu0 %v1694
        %1714 = vmatprep.subr.bf16.mxu0 0
        %1715 = vmatpush1.bf16.msra.mxu0 %v1695
        %1716 = vmatprep.subr.bf16.mxu0 0
        %1717 = vmatpush1.bf16.msra.mxu0 %v1696
        %1718 = vmatprep.subr.bf16.mxu0 0
        %1719 = vmatpush1.bf16.msra.mxu0 %v1697
        %1720 = vmatprep.subr.bf16.mxu0 0
        %1721 = vmatpush1.bf16.msra.mxu0 %v1698
        %1722 = vmatprep.subr.bf16.mxu0 0
        %1723 = vmatpush1.bf16.msra.mxu0 %v1699
        %1724 = vmatprep.subr.bf16.mxu0 0
        %1725 = vmatpush1.bf16.msra.mxu0 0
        %1726 = vmatprep.subr.bf16.mxu0 0
        %1727 = vmatpush1.bf16.msra.mxu0 0
        %1728 = vmatprep.subr.bf16.mxu0 0
        %1729 = vmatpush1.bf16.msra.mxu0 0
        %1730 = vmatprep.subr.bf16.mxu0 0
        %1731 = vmatpush1.bf16.msra.mxu0 0
        %1732 = vmatprep.subr.bf16.mxu0 0
        %1733 = vmatpush1.bf16.msra.mxu0 0
        %1734 = vmatprep.subr.bf16.mxu0 0
        %1735 = vmatpush1.bf16.msra.mxu0 0
        %1736 = vmatprep.subr.bf16.mxu0 0
        %1737 = vmatpush1.bf16.msra.mxu0 0
        %1738 = vmatprep.subr.bf16.mxu0 0
        %1739 = vmatpush1.bf16.msra.mxu0 0
        %1740 = vmatprep.mubr.bf16.mxu0 0
        %1741 = vmatmul.mubr.bf16.gmra.mrb[0].mxu0 %v1635
        %v1742 = vpop.f32.mrb[0].mxu0
        %v1743 = vadd.f32 0.0, %v1742
        %v1744 = vpop.f32.mrb[0].mxu0
        %v1745 = vpop.f32.mrb[0].mxu0
        %v1746 = vadd.f32 0.0, %v1745
        %v1747 = vpop.f32.mrb[0].mxu0
        %1748 = vmatprep.mubr.bf16.mxu0 0
        %1749 = vmatmul.mubr.bf16.gmra.mrb[0].mxu0 %v1636
        %v1750 = vpop.f32.mrb[0].mxu0
        %v1751 = vadd.f32 0.0, %v1750
        %v1752 = vpop.f32.mrb[0].mxu0
        %v1753 = vpop.f32.mrb[0].mxu0
        %v1754 = vadd.f32 0.0, %v1753
        %v1755 = vpop.f32.mrb[0].mxu0
        %1756 = vmatprep.mubr.bf16.mxu0 0
        %1757 = vmatmul.mubr.bf16.gmra.mrb[0].mxu0 %v1637
        %v1758 = vpop.f32.mrb[0].mxu0
        %v1759 = vadd.f32 0.0, %v1758
        %v1760 = vpop.f32.mrb[0].mxu0
        %v1761 = vpop.f32.mrb[0].mxu0
        %v1762 = vadd.f32 0.0, %v1761
        %v1763 = vpop.f32.mrb[0].mxu0
        %1764 = vmatprep.mubr.bf16.mxu0 0
        %1765 = vmatmul.mubr.bf16.gmra.mrb[0].mxu0 %v1638
        %v1766 = vpop.f32.mrb[0].mxu0
        %v1767 = vadd.f32 0.0, %v1766
        %v1768 = vpop.f32.mrb[0].mxu0
        %v1769 = vpop.f32.mrb[0].mxu0
        %v1770 = vadd.f32 0.0, %v1769
        %v1771 = vpop.f32.mrb[0].mxu0
        %1772 = vmatprep.mubr.bf16.mxu0 0
        %1773 = vmatmul.mubr.bf16.gmra.mrb[0].mxu0 %v1639
        %v1774 = vpop.f32.mrb[0].mxu0
        %v1775 = vadd.f32 0.0, %v1774
        %v1776 = vpop.f32.mrb[0].mxu0
        %v1777 = vpop.f32.mrb[0].mxu0
        %v1778 = vadd.f32 0.0, %v1777
        %v1779 = vpop.f32.mrb[0].mxu0
        %1780 = vmatprep.mubr.bf16.mxu0 0
        %1781 = vmatmul.mubr.bf16.gmra.mrb[0].mxu0 %v1640
        %v1782 = vpop.f32.mrb[0].mxu0
        %v1783 = vadd.f32 0.0, %v1782
        %v1784 = vpop.f32.mrb[0].mxu0
        %v1785 = vpop.f32.mrb[0].mxu0
        %v1786 = vadd.f32 0.0, %v1785
        %v1787 = vpop.f32.mrb[0].mxu0
        %1788 = vmatprep.mubr.bf16.mxu0 0
        %1789 = vmatmul.mubr.bf16.gmra.mrb[0].mxu0 %v1641
        %v1790 = vpop.f32.mrb[0].mxu0
        %v1791 = vadd.f32 0.0, %v1790
        %v1792 = vpop.f32.mrb[0].mxu0
        %v1793 = vpop.f32.mrb[0].mxu0
        %v1794 = vadd.f32 0.0, %v1793
        %v1795 = vpop.f32.mrb[0].mxu0
        %1796 = vmatprep.mubr.bf16.mxu0 0
        %1797 = vmatmul.mubr.bf16.gmra.mrb[0].mxu0 %v1642
        %v1798 = vpop.f32.mrb[0].mxu0
        %v1799 = vadd.f32 0.0, %v1798
        %v1800 = vpop.f32.mrb[0].mxu0
        %v1801 = vpop.f32.mrb[0].mxu0
        %v1802 = vadd.f32 0.0, %v1801
        %v1803 = vpop.f32.mrb[0].mxu0
        %1804 = vdwg.mxu0
        %1805 = vset.pattern.permute.xlu0 3
        %1806 = vperm.xlu0 %1805, %v435
        %v1807 = vpop.permute.xlu0 %1806
        %1809 = vset.pattern.permute.xlu0 3
        %1810 = vperm.xlu0 %1809, %v436
        %v1811 = vpop.permute.xlu0 %1810
        %1813 = vset.pattern.permute.xlu0 3
        %1814 = vperm.xlu0 %1813, %v437
        %v1815 = vpop.permute.xlu0 %1814
        %1817 = vset.pattern.permute.xlu0 3
        %1818 = vperm.xlu0 %1817, %v438
        %v1819 = vpop.permute.xlu0 %1818
        %1821 = vset.pattern.permute.xlu0 3
        %1822 = vperm.xlu0 %1821, %v439
        %v1823 = vpop.permute.xlu0 %1822
        %1825 = vset.pattern.permute.xlu0 3
        %1826 = vperm.xlu0 %1825, %v440
        %v1827 = vpop.permute.xlu0 %1826
        %1829 = vset.pattern.permute.xlu0 3
        %1830 = vperm.xlu0 %1829, %v441
        %v1831 = vpop.permute.xlu0 %1830
        %1833 = vset.pattern.permute.xlu0 3
        %1834 = vperm.xlu0 %1833, %v442
        %v1835 = vpop.permute.xlu0 %1834
        %1837 = vset.pattern.permute.xlu0 3
        %1838 = vperm.xlu0 %1837, %v443
        %v1839 = vpop.permute.xlu0 %1838
        %1841 = vset.pattern.permute.xlu0 3
        %1842 = vperm.xlu0 %1841, %v444
        %v1843 = vpop.permute.xlu0 %1842
        %1845 = vset.pattern.permute.xlu0 3
        %1846 = vperm.xlu0 %1845, %v445
        %v1847 = vpop.permute.xlu0 %1846
        %1849 = vset.pattern.permute.xlu0 3
        %1850 = vperm.xlu0 %1849, %v446
        %v1851 = vpop.permute.xlu0 %1850
        %1853 = vset.pattern.permute.xlu0 3
        %1854 = vperm.xlu0 %1853, %v447
        %v1855 = vpop.permute.xlu0 %1854
        %1857 = vset.pattern.permute.xlu0 3
        %1858 = vperm.xlu0 %1857, %v448
        %v1859 = vpop.permute.xlu0 %1858
        %1861 = vset.pattern.permute.xlu0 3
        %1862 = vperm.xlu0 %1861, %v449
        %v1863 = vpop.permute.xlu0 %1862
        %1865 = vset.pattern.permute.xlu0 3
        %1866 = vperm.xlu0 %1865, %v450
        %v1867 = vpop.permute.xlu0 %1866
        %v1869 = vlaneseq
        %v1870 = vshrl.u32 %v1869, 7
        %v1871 = vsub.s32 3, %v1870
        %v1872 = vrot.slane %v451, %v1871
        %v1873 = vadd.f32 %v1807, %v1872
        %v1874 = vadd.f32 %v1811, %v1872
        %v1875 = vadd.f32 %v1815, %v1872
        %v1876 = vadd.f32 %v1819, %v1872
        %v1877 = vadd.f32 %v1823, %v1872
        %v1878 = vadd.f32 %v1827, %v1872
        %v1879 = vadd.f32 %v1831, %v1872
        %v1880 = vadd.f32 %v1835, %v1872
        %v1881 = vadd.f32 %v1839, %v1872
        %v1882 = vadd.f32 %v1843, %v1872
        %v1883 = vadd.f32 %v1847, %v1872
        %v1884 = vadd.f32 %v1851, %v1872
        %v1885 = vadd.f32 %v1855, %v1872
        %v1886 = vadd.f32 %v1859, %v1872
        %v1887 = vadd.f32 %v1863, %v1872
        %v1888 = vadd.f32 %v1867, %v1872
        %v1889 = vmul.f32 %v1873, 0.2
        %v1890 = vmul.f32 %v1874, 0.2
        %v1891 = vmul.f32 %v1875, 0.2
        %v1892 = vmul.f32 %v1876, 0.2
        %v1893 = vmul.f32 %v1877, 0.2
        %v1894 = vmul.f32 %v1878, 0.2
        %v1895 = vmul.f32 %v1879, 0.2
        %v1896 = vmul.f32 %v1880, 0.2
        %v1897 = vmul.f32 %v1881, 0.2
        %v1898 = vmul.f32 %v1882, 0.2
        %v1899 = vmul.f32 %v1883, 0.2
        %v1900 = vmul.f32 %v1884, 0.2
        %v1901 = vmul.f32 %v1885, 0.2
        %v1902 = vmul.f32 %v1886, 0.2
        %v1903 = vmul.f32 %v1887, 0.2
        %v1904 = vmul.f32 %v1888, 0.2
        %v1905 = vmax.f32 %v1873, %v1889
        %v1906 = vmax.f32 %v1874, %v1890
        %v1907 = vmax.f32 %v1875, %v1891
        %v1908 = vmax.f32 %v1876, %v1892
        %v1909 = vmax.f32 %v1877, %v1893
        %v1910 = vmax.f32 %v1878, %v1894
        %v1911 = vmax.f32 %v1879, %v1895
        %v1912 = vmax.f32 %v1880, %v1896
        %v1913 = vmax.f32 %v1881, %v1897
        %v1914 = vmax.f32 %v1882, %v1898
        %v1915 = vmax.f32 %v1883, %v1899
        %v1916 = vmax.f32 %v1884, %v1900
        %v1917 = vmax.f32 %v1885, %v1901
        %v1918 = vmax.f32 %v1886, %v1902
        %v1919 = vmax.f32 %v1887, %v1903
        %v1920 = vmax.f32 %v1888, %v1904
        %v1921 = vadd.f32 %v1905, %v419
        %v1922 = vadd.f32 %v1906, %v420
        %v1923 = vadd.f32 %v1907, %v421
        %v1924 = vadd.f32 %v1908, %v422
        %v1925 = vadd.f32 %v1909, %v423
        %v1926 = vadd.f32 %v1910, %v424
        %v1927 = vadd.f32 %v1911, %v425
        %v1928 = vadd.f32 %v1912, %v426
        %v1929 = vadd.f32 %v1913, %v427
        %v1930 = vadd.f32 %v1914, %v428
        %v1931 = vadd.f32 %v1915, %v429
        %v1932 = vadd.f32 %v1916, %v430
        %v1933 = vadd.f32 %v1917, %v431
        %v1934 = vadd.f32 %v1918, %v432
        %v1935 = vadd.f32 %v1919, %v433
        %v1936 = vadd.f32 %v1920, %v434
        %1937 = vmax.xlane.f32.xlu0 %v1921
        %v1938 = vpop.xlane.xlu0 %1937
        %1939 = vmax.xlane.f32.xlu0 %v1922
        %v1940 = vpop.xlane.xlu0 %1939
        %1941 = vmax.xlane.f32.xlu0 %v1923
        %v1942 = vpop.xlane.xlu0 %1941
        %1943 = vmax.xlane.f32.xlu0 %v1924
        %v1944 = vpop.xlane.xlu0 %1943
        %1945 = vmax.xlane.f32.xlu0 %v1925
        %v1946 = vpop.xlane.xlu0 %1945
        %1947 = vmax.xlane.f32.xlu0 %v1926
        %v1948 = vpop.xlane.xlu0 %1947
        %1949 = vmax.xlane.f32.xlu0 %v1927
        %v1950 = vpop.xlane.xlu0 %1949
        %1951 = vmax.xlane.f32.xlu0 %v1928
        %v1952 = vpop.xlane.xlu0 %1951
        %1953 = vmax.xlane.f32.xlu0 %v1929
        %v1954 = vpop.xlane.xlu0 %1953
        %1955 = vmax.xlane.f32.xlu0 %v1930
        %v1956 = vpop.xlane.xlu0 %1955
        %1957 = vmax.xlane.f32.xlu0 %v1931
        %v1958 = vpop.xlane.xlu0 %1957
        %1959 = vmax.xlane.f32.xlu0 %v1932
        %v1960 = vpop.xlane.xlu0 %1959
        %1961 = vmax.xlane.f32.xlu0 %v1933
        %v1962 = vpop.xlane.xlu0 %1961
        %1963 = vmax.xlane.f32.xlu0 %v1934
        %v1964 = vpop.xlane.xlu0 %1963
        %1965 = vmax.xlane.f32.xlu0 %v1935
        %v1966 = vpop.xlane.xlu0 %1965
        %1967 = vmax.xlane.f32.xlu0 %v1936
        %v1968 = vpop.xlane.xlu0 %1967
        %v1969 = vsub.f32 %v1921, %v1938
        %v1970 = vsub.f32 %v1922, %v1940
        %v1971 = vsub.f32 %v1923, %v1942
        %v1972 = vsub.f32 %v1924, %v1944
        %v1973 = vsub.f32 %v1925, %v1946
        %v1974 = vsub.f32 %v1926, %v1948
        %v1975 = vsub.f32 %v1927, %v1950
        %v1976 = vsub.f32 %v1928, %v1952
        %v1977 = vsub.f32 %v1929, %v1954
        %v1978 = vsub.f32 %v1930, %v1956
        %v1979 = vsub.f32 %v1931, %v1958
        %v1980 = vsub.f32 %v1932, %v1960
        %v1981 = vsub.f32 %v1933, %v1962
        %v1982 = vsub.f32 %v1934, %v1964
        %v1983 = vsub.f32 %v1935, %v1966
        %v1984 = vsub.f32 %v1936, %v1968
        %v1985 = vmul.f32 %v1969, 1.442695
        %v1986 = vpow.pop %v1985
        %v1987 = vmul.f32 %v1970, 1.442695
        %v1988 = vpow.pop %v1987
        %v1989 = vmul.f32 %v1971, 1.442695
        %v1990 = vpow.pop %v1989
        %v1991 = vmul.f32 %v1972, 1.442695
        %v1992 = vpow.pop %v1991
        %v1993 = vmul.f32 %v1973, 1.442695
        %v1994 = vpow.pop %v1993
        %v1995 = vmul.f32 %v1974, 1.442695
        %v1996 = vpow.pop %v1995
        %v1997 = vmul.f32 %v1975, 1.442695
        %v1998 = vpow.pop %v1997
        %v1999 = vmul.f32 %v1976, 1.442695
        %v2000 = vpow.pop %v1999
        %v2001 = vmul.f32 %v1977, 1.442695
        %v2002 = vpow.pop %v2001
        %v2003 = vmul.f32 %v1978, 1.442695
        %v2004 = vpow.pop %v2003
        %v2005 = vmul.f32 %v1979, 1.442695
        %v2006 = vpow.pop %v2005
        %v2007 = vmul.f32 %v1980, 1.442695
        %v2008 = vpow.pop %v2007
        %v2009 = vmul.f32 %v1981, 1.442695
        %v2010 = vpow.pop %v2009
        %v2011 = vmul.f32 %v1982, 1.442695
        %v2012 = vpow.pop %v2011
        %v2013 = vmul.f32 %v1983, 1.442695
        %v2014 = vpow.pop %v2013
        %v2015 = vmul.f32 %v1984, 1.442695
        %v2016 = vpow.pop %v2015
        %2017 = vadd.xlane.f32.xlu0 %v1986
        %v2018 = vpop.xlane.xlu0 %2017
        %2019 = vadd.xlane.f32.xlu0 %v1988
        %v2020 = vpop.xlane.xlu0 %2019
        %2021 = vadd.xlane.f32.xlu0 %v1990
        %v2022 = vpop.xlane.xlu0 %2021
        %2023 = vadd.xlane.f32.xlu0 %v1992
        %v2024 = vpop.xlane.xlu0 %2023
        %2025 = vadd.xlane.f32.xlu0 %v1994
        %v2026 = vpop.xlane.xlu0 %2025
        %2027 = vadd.xlane.f32.xlu0 %v1996
        %v2028 = vpop.xlane.xlu0 %2027
        %2029 = vadd.xlane.f32.xlu0 %v1998
        %v2030 = vpop.xlane.xlu0 %2029
        %2031 = vadd.xlane.f32.xlu0 %v2000
        %v2032 = vpop.xlane.xlu0 %2031
        %2033 = vadd.xlane.f32.xlu0 %v2002
        %v2034 = vpop.xlane.xlu0 %2033
        %2035 = vadd.xlane.f32.xlu0 %v2004
        %v2036 = vpop.xlane.xlu0 %2035
        %2037 = vadd.xlane.f32.xlu0 %v2006
        %v2038 = vpop.xlane.xlu0 %2037
        %2039 = vadd.xlane.f32.xlu0 %v2008
        %v2040 = vpop.xlane.xlu0 %2039
        %2041 = vadd.xlane.f32.xlu0 %v2010
        %v2042 = vpop.xlane.xlu0 %2041
        %2043 = vadd.xlane.f32.xlu0 %v2012
        %v2044 = vpop.xlane.xlu0 %2043
        %2045 = vadd.xlane.f32.xlu0 %v2014
        %v2046 = vpop.xlane.xlu0 %2045
        %2047 = vadd.xlane.f32.xlu0 %v2016
        %v2048 = vpop.xlane.xlu0 %2047
        %v2049 = vrcp.pop %v2018
        %v2050 = vrcp.pop %v2020
        %v2051 = vrcp.pop %v2022
        %v2052 = vrcp.pop %v2024
        %v2053 = vrcp.pop %v2026
        %v2054 = vrcp.pop %v2028
        %v2055 = vrcp.pop %v2030
        %v2056 = vrcp.pop %v2032
        %v2057 = vrcp.pop %v2034
        %v2058 = vrcp.pop %v2036
        %v2059 = vrcp.pop %v2038
        %v2060 = vrcp.pop %v2040
        %v2061 = vrcp.pop %v2042
        %v2062 = vrcp.pop %v2044
        %v2063 = vrcp.pop %v2046
        %v2064 = vrcp.pop %v2048
        %v2065 = vmul.f32 %v1986, %v2049
        %v2066 = vmul.f32 %v1988, %v2050
        %v2067 = vmul.f32 %v1990, %v2051
        %v2068 = vmul.f32 %v1992, %v2052
        %v2069 = vmul.f32 %v1994, %v2053
        %v2070 = vmul.f32 %v1996, %v2054
        %v2071 = vmul.f32 %v1998, %v2055
        %v2072 = vmul.f32 %v2000, %v2056
        %v2073 = vmul.f32 %v2002, %v2057
        %v2074 = vmul.f32 %v2004, %v2058
        %v2075 = vmul.f32 %v2006, %v2059
        %v2076 = vmul.f32 %v2008, %v2060
        %v2077 = vmul.f32 %v2010, %v2061
        %v2078 = vmul.f32 %v2012, %v2062
        %v2079 = vmul.f32 %v2014, %v2063
        %v2080 = vmul.f32 %v2016, %v2064
        %v2081 = vpack.c.bf16 %v2066, %v2065
        %v2082 = vpack.c.bf16 %v2068, %v2067
        %v2083 = vpack.c.bf16 %v2070, %v2069
        %v2084 = vpack.c.bf16 %v2072, %v2071
        %v2085 = vpack.c.bf16 %v2074, %v2073
        %v2086 = vpack.c.bf16 %v2076, %v2075
        %v2087 = vpack.c.bf16 %v2078, %v2077
        %v2088 = vpack.c.bf16 %v2080, %v2079
        %s2089 = scalar_lea.vmem %s343, 192 [#allocation7]
        %v2090 = vld [vmem:[%s2089] sm:$0xf]
        %v2091 = vld [vmem:[%s2089 + $0x4] sm:$0xf]
        %v2092 = vld [vmem:[%s2089 + $0x8] sm:$0xf]
        %v2093 = vld [vmem:[%s2089 + $0xc] sm:$0xf]
        %v2094 = vld [vmem:[%s2089 + $0x10] sm:$0xf]
        %v2095 = vld [vmem:[%s2089 + $0x14] sm:$0xf]
        %v2096 = vld [vmem:[%s2089 + $0x18] sm:$0xf]
        %v2097 = vld [vmem:[%s2089 + $0x1c] sm:$0xf]
        %v2098 = vld [vmem:[%s2089 + $0x20] sm:$0xf]
        %v2099 = vld [vmem:[%s2089 + $0x24] sm:$0xf]
        %v2100 = vld [vmem:[%s2089 + $0x28] sm:$0xf]
        %v2101 = vld [vmem:[%s2089 + $0x2c] sm:$0xf]
        %v2102 = vld [vmem:[%s2089 + $0x30] sm:$0xf]
        %v2103 = vld [vmem:[%s2089 + $0x34] sm:$0xf]
        %v2104 = vld [vmem:[%s2089 + $0x38] sm:$0xf]
        %v2105 = vld [vmem:[%s2089 + $0x3c] sm:$0xf]
        %v2122 = vunpack.c.l.b16 %v2090
        %v2123 = vunpack.c.l.b16 %v2091
        %v2124 = vunpack.c.l.b16 %v2092
        %v2125 = vunpack.c.l.b16 %v2093
        %v2126 = vunpack.c.l.b16 %v2094
        %v2127 = vunpack.c.l.b16 %v2095
        %v2128 = vunpack.c.l.b16 %v2096
        %v2129 = vunpack.c.l.b16 %v2097
        %v2130 = vunpack.c.l.b16 %v2098
        %v2131 = vunpack.c.l.b16 %v2099
        %v2132 = vunpack.c.l.b16 %v2100
        %v2133 = vunpack.c.l.b16 %v2101
        %v2134 = vunpack.c.l.b16 %v2102
        %v2135 = vunpack.c.l.b16 %v2103
        %v2136 = vunpack.c.l.b16 %v2104
        %v2137 = vunpack.c.l.b16 %v2105
        %v2138 = vpack.c.b16 %v2123, %v2122
        %v2139 = vpack.c.b16 %v2125, %v2124
        %v2140 = vpack.c.b16 %v2127, %v2126
        %v2141 = vpack.c.b16 %v2129, %v2128
        %v2142 = vpack.c.b16 %v2131, %v2130
        %v2143 = vpack.c.b16 %v2133, %v2132
        %v2144 = vpack.c.b16 %v2135, %v2134
        %v2145 = vpack.c.b16 %v2137, %v2136
        %2154 = vmatprep.subr.bf16.mxu0 0
        %2155 = vmatpush1.bf16.msra.mxu0 %v2138
        %2156 = vmatprep.subr.bf16.mxu0 0
        %2157 = vmatpush1.bf16.msra.mxu0 %v2139
        %2158 = vmatprep.subr.bf16.mxu0 0
        %2159 = vmatpush1.bf16.msra.mxu0 %v2140
        %2160 = vmatprep.subr.bf16.mxu0 0
        %2161 = vmatpush1.bf16.msra.mxu0 %v2141
        %2162 = vmatprep.subr.bf16.mxu0 0
        %2163 = vmatpush1.bf16.msra.mxu0 %v2142
        %2164 = vmatprep.subr.bf16.mxu0 0
        %2165 = vmatpush1.bf16.msra.mxu0 %v2143
        %2166 = vmatprep.subr.bf16.mxu0 0
        %2167 = vmatpush1.bf16.msra.mxu0 %v2144
        %2168 = vmatprep.subr.bf16.mxu0 0
        %2169 = vmatpush1.bf16.msra.mxu0 %v2145
        %2170 = vmatprep.subr.bf16.mxu0 0
        %2171 = vmatpush1.bf16.msra.mxu0 0
        %2172 = vmatprep.subr.bf16.mxu0 0
        %2173 = vmatpush1.bf16.msra.mxu0 0
        %2174 = vmatprep.subr.bf16.mxu0 0
        %2175 = vmatpush1.bf16.msra.mxu0 0
        %2176 = vmatprep.subr.bf16.mxu0 0
        %2177 = vmatpush1.bf16.msra.mxu0 0
        %2178 = vmatprep.subr.bf16.mxu0 0
        %2179 = vmatpush1.bf16.msra.mxu0 0
        %2180 = vmatprep.subr.bf16.mxu0 0
        %2181 = vmatpush1.bf16.msra.mxu0 0
        %2182 = vmatprep.subr.bf16.mxu0 0
        %2183 = vmatpush1.bf16.msra.mxu0 0
        %2184 = vmatprep.subr.bf16.mxu0 0
        %2185 = vmatpush1.bf16.msra.mxu0 0
        %2186 = vmatprep.mubr.bf16.mxu0 0
        %2187 = vmatmul.mubr.bf16.gmra.mrb[0].mxu0 %v2081
        %v2188 = vpop.f32.mrb[0].mxu0
        %v2189 = vadd.f32 0.0, %v2188
        %v2190 = vpop.f32.mrb[0].mxu0
        %v2191 = vpop.f32.mrb[0].mxu0
        %v2192 = vadd.f32 0.0, %v2191
        %v2193 = vpop.f32.mrb[0].mxu0
        %2194 = vmatprep.mubr.bf16.mxu0 0
        %2195 = vmatmul.mubr.bf16.gmra.mrb[0].mxu0 %v2082
        %v2196 = vpop.f32.mrb[0].mxu0
        %v2197 = vadd.f32 0.0, %v2196
        %v2198 = vpop.f32.mrb[0].mxu0
        %v2199 = vpop.f32.mrb[0].mxu0
        %v2200 = vadd.f32 0.0, %v2199
        %v2201 = vpop.f32.mrb[0].mxu0
        %2202 = vmatprep.mubr.bf16.mxu0 0
        %2203 = vmatmul.mubr.bf16.gmra.mrb[0].mxu0 %v2083
        %v2204 = vpop.f32.mrb[0].mxu0
        %v2205 = vadd.f32 0.0, %v2204
        %v2206 = vpop.f32.mrb[0].mxu0
        %v2207 = vpop.f32.mrb[0].mxu0
        %v2208 = vadd.f32 0.0, %v2207
        %v2209 = vpop.f32.mrb[0].mxu0
        %2210 = vmatprep.mubr.bf16.mxu0 0
        %2211 = vmatmul.mubr.bf16.gmra.mrb[0].mxu0 %v2084
        %v2212 = vpop.f32.mrb[0].mxu0
        %v2213 = vadd.f32 0.0, %v2212
        %v2214 = vpop.f32.mrb[0].mxu0
        %v2215 = vpop.f32.mrb[0].mxu0
        %v2216 = vadd.f32 0.0, %v2215
        %v2217 = vpop.f32.mrb[0].mxu0
        %2218 = vmatprep.mubr.bf16.mxu0 0
        %2219 = vmatmul.mubr.bf16.gmra.mrb[0].mxu0 %v2085
        %v2220 = vpop.f32.mrb[0].mxu0
        %v2221 = vadd.f32 0.0, %v2220
        %v2222 = vpop.f32.mrb[0].mxu0
        %v2223 = vpop.f32.mrb[0].mxu0
        %v2224 = vadd.f32 0.0, %v2223
        %v2225 = vpop.f32.mrb[0].mxu0
        %2226 = vmatprep.mubr.bf16.mxu0 0
        %2227 = vmatmul.mubr.bf16.gmra.mrb[0].mxu0 %v2086
        %v2228 = vpop.f32.mrb[0].mxu0
        %v2229 = vadd.f32 0.0, %v2228
        %v2230 = vpop.f32.mrb[0].mxu0
        %v2231 = vpop.f32.mrb[0].mxu0
        %v2232 = vadd.f32 0.0, %v2231
        %v2233 = vpop.f32.mrb[0].mxu0
        %2234 = vmatprep.mubr.bf16.mxu0 0
        %2235 = vmatmul.mubr.bf16.gmra.mrb[0].mxu0 %v2087
        %v2236 = vpop.f32.mrb[0].mxu0
        %v2237 = vadd.f32 0.0, %v2236
        %v2238 = vpop.f32.mrb[0].mxu0
        %v2239 = vpop.f32.mrb[0].mxu0
        %v2240 = vadd.f32 0.0, %v2239
        %v2241 = vpop.f32.mrb[0].mxu0
        %2242 = vmatprep.mubr.bf16.mxu0 0
        %2243 = vmatmul.mubr.bf16.gmra.mrb[0].mxu0 %v2088
        %v2244 = vpop.f32.mrb[0].mxu0
        %v2245 = vadd.f32 0.0, %v2244
        %v2246 = vpop.f32.mrb[0].mxu0
        %v2247 = vpop.f32.mrb[0].mxu0
        %v2248 = vadd.f32 0.0, %v2247
        %v2249 = vpop.f32.mrb[0].mxu0
        %2250 = vdwg.mxu0
        %2267 = vrot.lane.b32.xlu0 %v1297, 32
        %v2268 = vpop.permute.xlu0 %2267
        %2269 = vrot.lane.b32.xlu0 %v1300, 32
        %v2270 = vpop.permute.xlu0 %2269
        %2271 = vrot.lane.b32.xlu0 %v1305, 32
        %v2272 = vpop.permute.xlu0 %2271
        %2273 = vrot.lane.b32.xlu0 %v1308, 32
        %v2274 = vpop.permute.xlu0 %2273
        %2275 = vrot.lane.b32.xlu0 %v1313, 32
        %v2276 = vpop.permute.xlu0 %2275
        %2277 = vrot.lane.b32.xlu0 %v1316, 32
        %v2278 = vpop.permute.xlu0 %2277
        %2279 = vrot.lane.b32.xlu0 %v1321, 32
        %v2280 = vpop.permute.xlu0 %2279
        %2281 = vrot.lane.b32.xlu0 %v1324, 32
        %v2282 = vpop.permute.xlu0 %2281
        %2283 = vrot.lane.b32.xlu0 %v1329, 32
        %v2284 = vpop.permute.xlu0 %2283
        %2285 = vrot.lane.b32.xlu0 %v1332, 32
        %v2286 = vpop.permute.xlu0 %2285
        %2287 = vrot.lane.b32.xlu0 %v1337, 32
        %v2288 = vpop.permute.xlu0 %2287
        %2289 = vrot.lane.b32.xlu0 %v1340, 32
        %v2290 = vpop.permute.xlu0 %2289
        %2291 = vrot.lane.b32.xlu0 %v1345, 32
        %v2292 = vpop.permute.xlu0 %2291
        %2293 = vrot.lane.b32.xlu0 %v1348, 32
        %v2294 = vpop.permute.xlu0 %2293
        %2295 = vrot.lane.b32.xlu0 %v1353, 32
        %v2296 = vpop.permute.xlu0 %2295
        %2297 = vrot.lane.b32.xlu0 %v1356, 32
        %v2298 = vpop.permute.xlu0 %2297
        %2331 = vrot.lane.b32.xlu0 %v1743, 64
        %v2332 = vpop.permute.xlu0 %2331
        %2333 = vrot.lane.b32.xlu0 %v1746, 64
        %v2334 = vpop.permute.xlu0 %2333
        %2335 = vrot.lane.b32.xlu0 %v1751, 64
        %v2336 = vpop.permute.xlu0 %2335
        %2337 = vrot.lane.b32.xlu0 %v1754, 64
        %v2338 = vpop.permute.xlu0 %2337
        %2339 = vrot.lane.b32.xlu0 %v1759, 64
        %v2340 = vpop.permute.xlu0 %2339
        %2341 = vrot.lane.b32.xlu0 %v1762, 64
        %v2342 = vpop.permute.xlu0 %2341
        %2343 = vrot.lane.b32.xlu0 %v1767, 64
        %v2344 = vpop.permute.xlu0 %2343
        %2345 = vrot.lane.b32.xlu0 %v1770, 64
        %v2346 = vpop.permute.xlu0 %2345
        %2347 = vrot.lane.b32.xlu0 %v1775, 64
        %v2348 = vpop.permute.xlu0 %2347
        %2349 = vrot.lane.b32.xlu0 %v1778, 64
        %v2350 = vpop.permute.xlu0 %2349
        %2351 = vrot.lane.b32.xlu0 %v1783, 64
        %v2352 = vpop.permute.xlu0 %2351
        %2353 = vrot.lane.b32.xlu0 %v1786, 64
        %v2354 = vpop.permute.xlu0 %2353
        %2355 = vrot.lane.b32.xlu0 %v1791, 64
        %v2356 = vpop.permute.xlu0 %2355
        %2357 = vrot.lane.b32.xlu0 %v1794, 64
        %v2358 = vpop.permute.xlu0 %2357
        %2359 = vrot.lane.b32.xlu0 %v1799, 64
        %v2360 = vpop.permute.xlu0 %2359
        %2361 = vrot.lane.b32.xlu0 %v1802, 64
        %v2362 = vpop.permute.xlu0 %2361
        %2395 = vrot.lane.b32.xlu0 %v2189, 96
        %v2396 = vpop.permute.xlu0 %2395
        %2397 = vrot.lane.b32.xlu0 %v2192, 96
        %v2398 = vpop.permute.xlu0 %2397
        %2399 = vrot.lane.b32.xlu0 %v2197, 96
        %v2400 = vpop.permute.xlu0 %2399
        %2401 = vrot.lane.b32.xlu0 %v2200, 96
        %v2402 = vpop.permute.xlu0 %2401
        %2403 = vrot.lane.b32.xlu0 %v2205, 96
        %v2404 = vpop.permute.xlu0 %2403
        %2405 = vrot.lane.b32.xlu0 %v2208, 96
        %v2406 = vpop.permute.xlu0 %2405
        %2407 = vrot.lane.b32.xlu0 %v2213, 96
        %v2408 = vpop.permute.xlu0 %2407
        %2409 = vrot.lane.b32.xlu0 %v2216, 96
        %v2410 = vpop.permute.xlu0 %2409
        %2411 = vrot.lane.b32.xlu0 %v2221, 96
        %v2412 = vpop.permute.xlu0 %2411
        %2413 = vrot.lane.b32.xlu0 %v2224, 96
        %v2414 = vpop.permute.xlu0 %2413
        %2415 = vrot.lane.b32.xlu0 %v2229, 96
        %v2416 = vpop.permute.xlu0 %2415
        %2417 = vrot.lane.b32.xlu0 %v2232, 96
        %v2418 = vpop.permute.xlu0 %2417
        %2419 = vrot.lane.b32.xlu0 %v2237, 96
        %v2420 = vpop.permute.xlu0 %2419
        %2421 = vrot.lane.b32.xlu0 %v2240, 96
        %v2422 = vpop.permute.xlu0 %2421
        %2423 = vrot.lane.b32.xlu0 %v2245, 96
        %v2424 = vpop.permute.xlu0 %2423
        %2425 = vrot.lane.b32.xlu0 %v2248, 96
        %v2426 = vpop.permute.xlu0 %2425
        %vm2443 = vcmask 261120
        %v2444 = vsel %vm2443, %v851, %v2268
        %v2445 = vsel %vm2443, %v854, %v2270
        %v2446 = vsel %vm2443, %v859, %v2272
        %v2447 = vsel %vm2443, %v862, %v2274
        %v2448 = vsel %vm2443, %v867, %v2276
        %v2449 = vsel %vm2443, %v870, %v2278
        %v2450 = vsel %vm2443, %v875, %v2280
        %v2451 = vsel %vm2443, %v878, %v2282
        %v2452 = vsel %vm2443, %v883, %v2284
        %v2453 = vsel %vm2443, %v886, %v2286
        %v2454 = vsel %vm2443, %v891, %v2288
        %v2455 = vsel %vm2443, %v894, %v2290
        %v2456 = vsel %vm2443, %v899, %v2292
        %v2457 = vsel %vm2443, %v902, %v2294
        %v2458 = vsel %vm2443, %v907, %v2296
        %v2459 = vsel %vm2443, %v910, %v2298
        %vm2460 = vcmask 523264
        %v2461 = vsel %vm2460, %v2444, %v2332
        %v2462 = vsel %vm2460, %v2445, %v2334
        %v2463 = vsel %vm2460, %v2446, %v2336
        %v2464 = vsel %vm2460, %v2447, %v2338
        %v2465 = vsel %vm2460, %v2448, %v2340
        %v2466 = vsel %vm2460, %v2449, %v2342
        %v2467 = vsel %vm2460, %v2450, %v2344
        %v2468 = vsel %vm2460, %v2451, %v2346
        %v2469 = vsel %vm2460, %v2452, %v2348
        %v2470 = vsel %vm2460, %v2453, %v2350
        %v2471 = vsel %vm2460, %v2454, %v2352
        %v2472 = vsel %vm2460, %v2455, %v2354
        %v2473 = vsel %vm2460, %v2456, %v2356
        %v2474 = vsel %vm2460, %v2457, %v2358
        %v2475 = vsel %vm2460, %v2458, %v2360
        %v2476 = vsel %vm2460, %v2459, %v2362
        %vm2477 = vcmask 785408
        %v2478 = vsel %vm2477, %v2461, %v2396
        %v2479 = vsel %vm2477, %v2462, %v2398
        %v2480 = vsel %vm2477, %v2463, %v2400
        %v2481 = vsel %vm2477, %v2464, %v2402
        %v2482 = vsel %vm2477, %v2465, %v2404
        %v2483 = vsel %vm2477, %v2466, %v2406
        %v2484 = vsel %vm2477, %v2467, %v2408
        %v2485 = vsel %vm2477, %v2468, %v2410
        %v2486 = vsel %vm2477, %v2469, %v2412
        %v2487 = vsel %vm2477, %v2470, %v2414
        %v2488 = vsel %vm2477, %v2471, %v2416
        %v2489 = vsel %vm2477, %v2472, %v2418
        %v2490 = vsel %vm2477, %v2473, %v2420
        %v2491 = vsel %vm2477, %v2474, %v2422
        %v2492 = vsel %vm2477, %v2475, %v2424
        %v2493 = vsel %vm2477, %v2476, %v2426
        %v2494 = vld [vmem:[#allocation10] sm:$0x1]
        %v2496 = vlaneseq
        %v2497 = vshrl.u32 %v2496, 7
        %v2498 = vsub.s32 0, %v2497
        %v2499 = vrot.slane %v2494, %v2498
        %v2501 = vadd.f32 %v2478, %v2499
        %v2502 = vadd.f32 %v2479, %v2499
        %v2503 = vadd.f32 %v2480, %v2499
        %v2504 = vadd.f32 %v2481, %v2499
        %v2505 = vadd.f32 %v2482, %v2499
        %v2506 = vadd.f32 %v2483, %v2499
        %v2507 = vadd.f32 %v2484, %v2499
        %v2508 = vadd.f32 %v2485, %v2499
        %v2509 = vadd.f32 %v2486, %v2499
        %v2510 = vadd.f32 %v2487, %v2499
        %v2511 = vadd.f32 %v2488, %v2499
        %v2512 = vadd.f32 %v2489, %v2499
        %v2513 = vadd.f32 %v2490, %v2499
        %v2514 = vadd.f32 %v2491, %v2499
        %v2515 = vadd.f32 %v2492, %v2499
        %v2516 = vadd.f32 %v2493, %v2499
        %v2517 = vmax.f32 %v2501, 0.0
        %v2518 = vmax.f32 %v2502, 0.0
        %v2519 = vmax.f32 %v2503, 0.0
        %v2520 = vmax.f32 %v2504, 0.0
        %v2521 = vmax.f32 %v2505, 0.0
        %v2522 = vmax.f32 %v2506, 0.0
        %v2523 = vmax.f32 %v2507, 0.0
        %v2524 = vmax.f32 %v2508, 0.0
        %v2525 = vmax.f32 %v2509, 0.0
        %v2526 = vmax.f32 %v2510, 0.0
        %v2527 = vmax.f32 %v2511, 0.0
        %v2528 = vmax.f32 %v2512, 0.0
        %v2529 = vmax.f32 %v2513, 0.0
        %v2530 = vmax.f32 %v2514, 0.0
        %v2531 = vmax.f32 %v2515, 0.0
        %v2532 = vmax.f32 %v2516, 0.0
        %v2533 = vpack.c.bf16 %v2518, %v2517
        %v2534 = vpack.c.bf16 %v2520, %v2519
        %v2535 = vpack.c.bf16 %v2522, %v2521
        %v2536 = vpack.c.bf16 %v2524, %v2523
        %v2537 = vpack.c.bf16 %v2526, %v2525
        %v2538 = vpack.c.bf16 %v2528, %v2527
        %v2539 = vpack.c.bf16 %v2530, %v2529
        %v2540 = vpack.c.bf16 %v2532, %v2531
        %v2549 = vunpack.c.l.b16 %v2533
        %v2550 = vunpack.c.h.b16 %v2533
        %v2551 = vunpack.c.l.b16 %v2534
        %v2552 = vunpack.c.h.b16 %v2534
        %v2553 = vunpack.c.l.b16 %v2535
        %v2554 = vunpack.c.h.b16 %v2535
        %v2555 = vunpack.c.l.b16 %v2536
        %v2556 = vunpack.c.h.b16 %v2536
        %v2557 = vunpack.c.l.b16 %v2537
        %v2558 = vunpack.c.h.b16 %v2537
        %v2559 = vunpack.c.l.b16 %v2538
        %v2560 = vunpack.c.h.b16 %v2538
        %v2561 = vunpack.c.l.b16 %v2539
        %v2562 = vunpack.c.h.b16 %v2539
        %v2563 = vunpack.c.l.b16 %v2540
        %v2564 = vunpack.c.h.b16 %v2540
        %v2565 = vpack.c.b16 %v2549, %v2549
        %v2566 = vpack.c.b16 %v2550, %v2550
        %v2567 = vpack.c.b16 %v2551, %v2551
        %v2568 = vpack.c.b16 %v2552, %v2552
        %v2569 = vpack.c.b16 %v2553, %v2553
        %v2570 = vpack.c.b16 %v2554, %v2554
        %v2571 = vpack.c.b16 %v2555, %v2555
        %v2572 = vpack.c.b16 %v2556, %v2556
        %v2573 = vpack.c.b16 %v2557, %v2557
        %v2574 = vpack.c.b16 %v2558, %v2558
        %v2575 = vpack.c.b16 %v2559, %v2559
        %v2576 = vpack.c.b16 %v2560, %v2560
        %v2577 = vpack.c.b16 %v2561, %v2561
        %v2578 = vpack.c.b16 %v2562, %v2562
        %v2579 = vpack.c.b16 %v2563, %v2563
        %v2580 = vpack.c.b16 %v2564, %v2564
        %2597 = vst [vmem:[%s397] sm:$0xf] %v2565
        %2598 = vst [vmem:[%s397 + $0x4] sm:$0xf] %v2566
        %2599 = vst [vmem:[%s397 + $0x8] sm:$0xf] %v2567
        %2600 = vst [vmem:[%s397 + $0xc] sm:$0xf] %v2568
        %2601 = vst [vmem:[%s397 + $0x10] sm:$0xf] %v2569
        %2602 = vst [vmem:[%s397 + $0x14] sm:$0xf] %v2570
        %2603 = vst [vmem:[%s397 + $0x18] sm:$0xf] %v2571
        %2604 = vst [vmem:[%s397 + $0x1c] sm:$0xf] %v2572
        %2605 = vst [vmem:[%s397 + $0x20] sm:$0xf] %v2573
        %2606 = vst [vmem:[%s397 + $0x24] sm:$0xf] %v2574
        %2607 = vst [vmem:[%s397 + $0x28] sm:$0xf] %v2575
        %2608 = vst [vmem:[%s397 + $0x2c] sm:$0xf] %v2576
        %2609 = vst [vmem:[%s397 + $0x30] sm:$0xf] %v2577
        %2610 = vst [vmem:[%s397 + $0x34] sm:$0xf] %v2578
        %2611 = vst [vmem:[%s397 + $0x38] sm:$0xf] %v2579
        %2612 = vst [vmem:[%s397 + $0x3c] sm:$0xf] %v2580
        %s2613 = sand.u32 %s163, 1
        %s2614 = scalar_lea.sflag [#allocation4], %s2613
        %s2615 = sand.u32 %s163, 1
        %s2616 = smul.addr %s2615, 64
        %s2617 = scalar_lea.vmem [#allocation11], %s2616
        // Predicated region
        $region61: #{simple_gat_forward.6} parent=39 // pred_check
          %p2618 = pneg %p173
        $region62: #{simple_gat_forward.6} parent=39 // pred_check_branch
          %2620 = sbr.rel (%p2618) target = $region64
        $region63: #{simple_gat_forward.6} parent=39 // pred_region
          %s2621 = smul.u32 16, %s28
          %s2623 = ssub.s32 1024, 1024
          %2624 = vsyncadd %s2614, %s2623
          %s2625 = smul.addr %s2621, 64
          %s2626 = scalar_lea.hbm %s5, %s2625
          %s2627 = sshll.u32 %s2617, 4
          %s2628 = int_to_ptr.vmem [resolvable:$true] %s2627
          %2633 = dma.vmem_to_hbm [thread:$0]  %s2628, 1024, %s2626, %s2614, 64, 64, 4
        $region64: #{simple_gat_forward.6} parent=39 // pred_fallthru
          _
      $region40: #{simple_gat_forward.6} parent=5 // pred_fallthru
        _
      %p2634 = scmp.le.s32.totalorder 2, %s23
      // Predicated region
      $region65: #{simple_gat_forward.6} parent=5 // pred_check
        %p2635 = pneg %p2634
      $region66: #{simple_gat_forward.6} parent=5 // pred_check_branch
        %2637 = sbr.rel (%p2635) target = $region68
      $region67: #{simple_gat_forward.6} parent=5 // pred_region
        %s2638 = ssub.s32 %s23, 2
        // Predicated region
        $region69: #{simple_gat_forward.6} parent=67 // pred_check
          %p2639 = pneg %p179
        $region70: #{simple_gat_forward.6} parent=67 // pred_check_branch
          %2641 = sbr.rel (%p2639) target = $region72
        $region71: #{simple_gat_forward.6} parent=67 // pred_region
          %s2642 = sand.u32 %s164, 1
          %s2643 = scalar_lea.sflag [#allocation4], %s2642
          %s2644 = sand.u32 %s164, 1
          %s2645 = smul.addr %s2644, 64
          %s2646 = scalar_lea.vmem [#allocation11], %s2645
          %2647 = dma.done %s2643, 1024
        $region72: #{simple_gat_forward.6} parent=67 // pred_fallthru
          _
      $region68: #{simple_gat_forward.6} parent=5 // pred_fallthru
        _
    $region6: #{simple_gat_forward.6} parent=1 // loop_footer
      %s27 = sadd.s32 1, %s23
    $region7: #{simple_gat_forward.6} parent=1 // loop_footer_branch
      %22 = sbr.rel target = $region3
    $region8: #{simple_gat_forward.6} parent=1 // loop_exit
      _
    %2648 = vsyncpa [#allocation3], 1
    %s2649 = scalar_lea.sflag [#allocation3], 1
    %2650 = vsyncpa %s2649, 1
    %2651 = vsyncpa [#allocation6], 1
    %s2652 = scalar_lea.sflag [#allocation6], 1
    %2653 = vsyncpa %s2652, 1
    %2654 = vsyncpa [#allocation9], 1
    %s2655 = scalar_lea.sflag [#allocation9], 1
    %2656 = vsyncpa %s2655, 1
    %2657 = vsyncpa [#allocation4], 1
    %s2658 = scalar_lea.sflag [#allocation4], 1
    %2659 = vsyncpa %s2658, 1

// kernel: simple_gat_forward.9
$region0: #{simple_gat_forward.9}
  #allocation0 [shape = 'u32[]', space=smem, size = 0x4, offset = 0x4, fixed_abs, tag = 'smem constant byte address 0x4 - core index']
  #allocation1 [shape = 'u32[144,128]{1,0:T(1,128)}', space=vmem, size = 0x12000, scoped, tag = 'internal scratch']
  %s0 = inlined_call_operand.hbm [shape: bf16[512,128], index: 0, kind: input, shape index: {}]
  %s1 = inlined_call_operand.vmem [shape: bf16[4,512], index: 1, kind: input, shape index: {}]
  %s2 = inlined_call_operand.vmem [shape: f32[128,32], index: 2, kind: input, shape index: {}]
  %s3 = inlined_call_operand.vmem [shape: f32[1,32], index: 3, kind: input, shape index: {}]
  %s4 = inlined_call_operand.vmem [shape: f32[32,16], index: 4, kind: input, shape index: {}]
  %s5 = inlined_call_operand.vmem [shape: f32[1,16], index: 5, kind: input, shape index: {}]
  %s6 = inlined_call_operand.vmem [shape: f32[16,4], index: 6, kind: input, shape index: {}]
  %s7 = inlined_call_operand.vmem [shape: f32[1,4], index: 7, kind: input, shape index: {}]
  %s8 = inlined_call_operand.hbm [shape: f32[4,4], index: 8, kind: output, shape index: {}]
  %s9 = sld [smem:[#allocation0]]
  $region46: #{simple_gat_forward.9} parent=0
    _
  %s11 = ssub.s32 1, %s9
  %s12 = scalar_select 0, %s11, %s9
  $region1: #{simple_gat_forward.9} parent=0
    #allocation2 [shape = 'u8[131072]{0}', space=vmem, size = 0x20000, scoped, tag = 'input window, operand 0, single buffered']
    #allocation3 [shape = 's32[1]{0}', space=sflag, size = 0x4, scoped, tag = 'scoped memory for simple_gat_forward.9']
    #allocation4 [shape = 's32[1]{0}', space=sflag, size = 0x4, scoped, tag = 'scoped memory for simple_gat_forward.9']
    #allocation5 [shape = 'u8[2048]{0}', space=vmem, size = 0x800, scoped, tag = 'output window, operand 0, single buffered']
    %13 = vsyncpa [#allocation3], 0
    %14 = vsyncpa [#allocation4], 0
    // Predicated region
    $region2: #{simple_gat_forward.9} parent=1 // pred_check
      _
    $region3: #{simple_gat_forward.9} parent=1 // pred_check_branch
      %16 = sbr.rel (0) target = $region5
    $region4: #{simple_gat_forward.9} parent=1 // pred_region
      %s18 = ssub.s32 4096, 4096
      %19 = vsyncadd [#allocation3], %s18
      %s20 = sshll.u32 [#allocation2], 4
      %s21 = int_to_ptr.vmem [resolvable:$true] %s20
      %26 = dma.hbm_to_vmem [thread:$0]  %s0, 4096, %s21, [#allocation3], 64, 64, 4
    $region5: #{simple_gat_forward.9} parent=1 // pred_fallthru
      _
    // Predicated region
    $region6: #{simple_gat_forward.9} parent=1 // pred_check
      _
    $region7: #{simple_gat_forward.9} parent=1 // pred_check_branch
      %28 = sbr.rel (0) target = $region9
    $region8: #{simple_gat_forward.9} parent=1 // pred_region
      _
    $region9: #{simple_gat_forward.9} parent=1 // pred_fallthru
      _
    // Predicated region
    $region10: #{simple_gat_forward.9} parent=1 // pred_check
      _
    $region11: #{simple_gat_forward.9} parent=1 // pred_check_branch
      %30 = sbr.rel (0) target = $region13
    $region12: #{simple_gat_forward.9} parent=1 // pred_region
      _
    $region13: #{simple_gat_forward.9} parent=1 // pred_fallthru
      _
    // Predicated region
    $region14: #{simple_gat_forward.9} parent=1 // pred_check
      _
    $region15: #{simple_gat_forward.9} parent=1 // pred_check_branch
      %32 = sbr.rel (0) target = $region17
    $region16: #{simple_gat_forward.9} parent=1 // pred_region
      _
    $region17: #{simple_gat_forward.9} parent=1 // pred_fallthru
      _
    // Predicated region
    $region18: #{simple_gat_forward.9} parent=1 // pred_check
      _
    $region19: #{simple_gat_forward.9} parent=1 // pred_check_branch
      %34 = sbr.rel (0) target = $region21
    $region20: #{simple_gat_forward.9} parent=1 // pred_region
      _
    $region21: #{simple_gat_forward.9} parent=1 // pred_fallthru
      _
    // Predicated region
    $region22: #{simple_gat_forward.9} parent=1 // pred_check
      _
    $region23: #{simple_gat_forward.9} parent=1 // pred_check_branch
      %36 = sbr.rel (0) target = $region25
    $region24: #{simple_gat_forward.9} parent=1 // pred_region
      _
    $region25: #{simple_gat_forward.9} parent=1 // pred_fallthru
      _
    // Predicated region
    $region26: #{simple_gat_forward.9} parent=1 // pred_check
      _
    $region27: #{simple_gat_forward.9} parent=1 // pred_check_branch
      %38 = sbr.rel (0) target = $region29
    $region28: #{simple_gat_forward.9} parent=1 // pred_region
      _
    $region29: #{simple_gat_forward.9} parent=1 // pred_fallthru
      _
    // Predicated region
    $region30: #{simple_gat_forward.9} parent=1 // pred_check
      _
    $region31: #{simple_gat_forward.9} parent=1 // pred_check_branch
      %40 = sbr.rel (0) target = $region33
    $region32: #{simple_gat_forward.9} parent=1 // pred_region
      _
    $region33: #{simple_gat_forward.9} parent=1 // pred_fallthru
      _
    // Predicated region
    $region34: #{simple_gat_forward.9} parent=1 // pred_check
      _
    $region35: #{simple_gat_forward.9} parent=1 // pred_check_branch
      %42 = sbr.rel (0) target = $region37
    $region36: #{simple_gat_forward.9} parent=1 // pred_region
      %43 = dma.done [#allocation3], 4096
    $region37: #{simple_gat_forward.9} parent=1 // pred_fallthru
      _
    %v45 = vld [vmem:[%s1] sm:$0xff]
    %v46 = vld [vmem:[#allocation2] sm:$0xf]
    %v47 = vld [vmem:[#allocation2 + $0x4] sm:$0xf]
    %v48 = vld [vmem:[#allocation2 + $0x8] sm:$0xf]
    %v49 = vld [vmem:[#allocation2 + $0xc] sm:$0xf]
    %v50 = vld [vmem:[#allocation2 + $0x10] sm:$0xf]
    %v51 = vld [vmem:[#allocation2 + $0x14] sm:$0xf]
    %v52 = vld [vmem:[#allocation2 + $0x18] sm:$0xf]
    %v53 = vld [vmem:[#allocation2 + $0x1c] sm:$0xf]
    %v54 = vld [vmem:[#allocation2 + $0x20] sm:$0xf]
    %v55 = vld [vmem:[#allocation2 + $0x24] sm:$0xf]
    %v56 = vld [vmem:[#allocation2 + $0x28] sm:$0xf]
    %v57 = vld [vmem:[#allocation2 + $0x2c] sm:$0xf]
    %v58 = vld [vmem:[#allocation2 + $0x30] sm:$0xf]
    %v59 = vld [vmem:[#allocation2 + $0x34] sm:$0xf]
    %v60 = vld [vmem:[#allocation2 + $0x38] sm:$0xf]
    %v61 = vld [vmem:[#allocation2 + $0x3c] sm:$0xf]
    %v62 = vld [vmem:[#allocation2 + $0x40] sm:$0xf]
    %v63 = vld [vmem:[#allocation2 + $0x44] sm:$0xf]
    %v64 = vld [vmem:[#allocation2 + $0x48] sm:$0xf]
    %v65 = vld [vmem:[#allocation2 + $0x4c] sm:$0xf]
    %v66 = vld [vmem:[#allocation2 + $0x50] sm:$0xf]
    %v67 = vld [vmem:[#allocation2 + $0x54] sm:$0xf]
    %v68 = vld [vmem:[#allocation2 + $0x58] sm:$0xf]
    %v69 = vld [vmem:[#allocation2 + $0x5c] sm:$0xf]
    %v70 = vld [vmem:[#allocation2 + $0x60] sm:$0xf]
    %v71 = vld [vmem:[#allocation2 + $0x64] sm:$0xf]
    %v72 = vld [vmem:[#allocation2 + $0x68] sm:$0xf]
    %v73 = vld [vmem:[#allocation2 + $0x6c] sm:$0xf]
    %v74 = vld [vmem:[#allocation2 + $0x70] sm:$0xf]
    %v75 = vld [vmem:[#allocation2 + $0x74] sm:$0xf]
    %v76 = vld [vmem:[#allocation2 + $0x78] sm:$0xf]
    %v77 = vld [vmem:[#allocation2 + $0x7c] sm:$0xf]
    %v78 = vld [vmem:[#allocation2 + $0x80] sm:$0xf]
    %v79 = vld [vmem:[#allocation2 + $0x84] sm:$0xf]
    %v80 = vld [vmem:[#allocation2 + $0x88] sm:$0xf]
    %v81 = vld [vmem:[#allocation2 + $0x8c] sm:$0xf]
    %v82 = vld [vmem:[#allocation2 + $0x90] sm:$0xf]
    %v83 = vld [vmem:[#allocation2 + $0x94] sm:$0xf]
    %v84 = vld [vmem:[#allocation2 + $0x98] sm:$0xf]
    %v85 = vld [vmem:[#allocation2 + $0x9c] sm:$0xf]
    %v86 = vld [vmem:[#allocation2 + $0xa0] sm:$0xf]
    %v87 = vld [vmem:[#allocation2 + $0xa4] sm:$0xf]
    %v88 = vld [vmem:[#allocation2 + $0xa8] sm:$0xf]
    %v89 = vld [vmem:[#allocation2 + $0xac] sm:$0xf]
    %v90 = vld [vmem:[#allocation2 + $0xb0] sm:$0xf]
    %v91 = vld [vmem:[#allocation2 + $0xb4] sm:$0xf]
    %v92 = vld [vmem:[#allocation2 + $0xb8] sm:$0xf]
    %v93 = vld [vmem:[#allocation2 + $0xbc] sm:$0xf]
    %v94 = vld [vmem:[#allocation2 + $0xc0] sm:$0xf]
    %v95 = vld [vmem:[#allocation2 + $0xc4] sm:$0xf]
    %v96 = vld [vmem:[#allocation2 + $0xc8] sm:$0xf]
    %v97 = vld [vmem:[#allocation2 + $0xcc] sm:$0xf]
    %v98 = vld [vmem:[#allocation2 + $0xd0] sm:$0xf]
    %v99 = vld [vmem:[#allocation2 + $0xd4] sm:$0xf]
    %v100 = vld [vmem:[#allocation2 + $0xd8] sm:$0xf]
    %v101 = vld [vmem:[#allocation2 + $0xdc] sm:$0xf]
    %v102 = vld [vmem:[#allocation2 + $0xe0] sm:$0xf]
    %v103 = vld [vmem:[#allocation2 + $0xe4] sm:$0xf]
    %v104 = vld [vmem:[#allocation2 + $0xe8] sm:$0xf]
    %v105 = vld [vmem:[#allocation2 + $0xec] sm:$0xf]
    %v106 = vld [vmem:[#allocation2 + $0xf0] sm:$0xf]
    %v107 = vld [vmem:[#allocation2 + $0xf4] sm:$0xf]
    %v108 = vld [vmem:[#allocation2 + $0xf8] sm:$0xf]
    %v109 = vld [vmem:[#allocation2 + $0xfc] sm:$0xf]
    %v111 = vcombine.high %v45, %v45
    %v113 = vunpack.c.l.s4 1983009808
    %v114 = vunpack.c.0.s8 %v113
    %v115 = vlaneseq
    %v116 = vshrl.u32 %v115, 7
    %v117 = vsub.s32 %v114, %v116
    %v118 = vrot.slane %v45, %v117
    %v120 = vunpack.c.l.s4 1983009808
    %v121 = vunpack.c.0.s8 %v120
    %v122 = vlaneseq
    %v123 = vshrl.u32 %v122, 7
    %v124 = vsub.s32 %v121, %v123
    %v125 = vrot.slane %v111, %v124
    %v126 = vcombine.high %v118, %v118
    %v127 = vcombine.high %v125, %v125
    %v196 = vunpack.c.l.b16 %v46
    %v197 = vunpack.c.l.b16 %v47
    %v198 = vunpack.c.l.b16 %v48
    %v199 = vunpack.c.l.b16 %v49
    %v200 = vunpack.c.l.b16 %v50
    %v201 = vunpack.c.l.b16 %v51
    %v202 = vunpack.c.l.b16 %v52
    %v203 = vunpack.c.l.b16 %v53
    %v204 = vunpack.c.l.b16 %v54
    %v205 = vunpack.c.l.b16 %v55
    %v206 = vunpack.c.l.b16 %v56
    %v207 = vunpack.c.l.b16 %v57
    %v208 = vunpack.c.l.b16 %v58
    %v209 = vunpack.c.l.b16 %v59
    %v210 = vunpack.c.l.b16 %v60
    %v211 = vunpack.c.l.b16 %v61
    %v212 = vunpack.c.l.b16 %v62
    %v213 = vunpack.c.l.b16 %v63
    %v214 = vunpack.c.l.b16 %v64
    %v215 = vunpack.c.l.b16 %v65
    %v216 = vunpack.c.l.b16 %v66
    %v217 = vunpack.c.l.b16 %v67
    %v218 = vunpack.c.l.b16 %v68
    %v219 = vunpack.c.l.b16 %v69
    %v220 = vunpack.c.l.b16 %v70
    %v221 = vunpack.c.l.b16 %v71
    %v222 = vunpack.c.l.b16 %v72
    %v223 = vunpack.c.l.b16 %v73
    %v224 = vunpack.c.l.b16 %v74
    %v225 = vunpack.c.l.b16 %v75
    %v226 = vunpack.c.l.b16 %v76
    %v227 = vunpack.c.l.b16 %v77
    %v228 = vunpack.c.l.b16 %v78
    %v229 = vunpack.c.l.b16 %v79
    %v230 = vunpack.c.l.b16 %v80
    %v231 = vunpack.c.l.b16 %v81
    %v232 = vunpack.c.l.b16 %v82
    %v233 = vunpack.c.l.b16 %v83
    %v234 = vunpack.c.l.b16 %v84
    %v235 = vunpack.c.l.b16 %v85
    %v236 = vunpack.c.l.b16 %v86
    %v237 = vunpack.c.l.b16 %v87
    %v238 = vunpack.c.l.b16 %v88
    %v239 = vunpack.c.l.b16 %v89
    %v240 = vunpack.c.l.b16 %v90
    %v241 = vunpack.c.l.b16 %v91
    %v242 = vunpack.c.l.b16 %v92
    %v243 = vunpack.c.l.b16 %v93
    %v244 = vunpack.c.l.b16 %v94
    %v245 = vunpack.c.l.b16 %v95
    %v246 = vunpack.c.l.b16 %v96
    %v247 = vunpack.c.l.b16 %v97
    %v248 = vunpack.c.l.b16 %v98
    %v249 = vunpack.c.l.b16 %v99
    %v250 = vunpack.c.l.b16 %v100
    %v251 = vunpack.c.l.b16 %v101
    %v252 = vunpack.c.l.b16 %v102
    %v253 = vunpack.c.l.b16 %v103
    %v254 = vunpack.c.l.b16 %v104
    %v255 = vunpack.c.l.b16 %v105
    %v256 = vunpack.c.l.b16 %v106
    %v257 = vunpack.c.l.b16 %v107
    %v258 = vunpack.c.l.b16 %v108
    %v259 = vunpack.c.l.b16 %v109
    %v260 = vpack.c.b16 %v197, %v196
    %v261 = vpack.c.b16 %v199, %v198
    %v262 = vpack.c.b16 %v201, %v200
    %v263 = vpack.c.b16 %v203, %v202
    %v264 = vpack.c.b16 %v205, %v204
    %v265 = vpack.c.b16 %v207, %v206
    %v266 = vpack.c.b16 %v209, %v208
    %v267 = vpack.c.b16 %v211, %v210
    %v268 = vpack.c.b16 %v213, %v212
    %v269 = vpack.c.b16 %v215, %v214
    %v270 = vpack.c.b16 %v217, %v216
    %v271 = vpack.c.b16 %v219, %v218
    %v272 = vpack.c.b16 %v221, %v220
    %v273 = vpack.c.b16 %v223, %v222
    %v274 = vpack.c.b16 %v225, %v224
    %v275 = vpack.c.b16 %v227, %v226
    %v276 = vpack.c.b16 %v229, %v228
    %v277 = vpack.c.b16 %v231, %v230
    %v278 = vpack.c.b16 %v233, %v232
    %v279 = vpack.c.b16 %v235, %v234
    %v280 = vpack.c.b16 %v237, %v236
    %v281 = vpack.c.b16 %v239, %v238
    %v282 = vpack.c.b16 %v241, %v240
    %v283 = vpack.c.b16 %v243, %v242
    %v284 = vpack.c.b16 %v245, %v244
    %v285 = vpack.c.b16 %v247, %v246
    %v286 = vpack.c.b16 %v249, %v248
    %v287 = vpack.c.b16 %v251, %v250
    %v288 = vpack.c.b16 %v253, %v252
    %v289 = vpack.c.b16 %v255, %v254
    %v290 = vpack.c.b16 %v257, %v256
    %v291 = vpack.c.b16 %v259, %v258
    %324 = vmatprep.subr.bf16.mxu0 0
    %325 = vmatpush1.bf16.msra.mxu0 %v260
    %326 = vmatprep.subr.bf16.mxu0 0
    %327 = vmatpush1.bf16.msra.mxu0 %v261
    %328 = vmatprep.subr.bf16.mxu0 0
    %329 = vmatpush1.bf16.msra.mxu0 %v262
    %330 = vmatprep.subr.bf16.mxu0 0
    %331 = vmatpush1.bf16.msra.mxu0 %v263
    %332 = vmatprep.subr.bf16.mxu0 0
    %333 = vmatpush1.bf16.msra.mxu0 %v264
    %334 = vmatprep.subr.bf16.mxu0 0
    %335 = vmatpush1.bf16.msra.mxu0 %v265
    %336 = vmatprep.subr.bf16.mxu0 0
    %337 = vmatpush1.bf16.msra.mxu0 %v266
    %338 = vmatprep.subr.bf16.mxu0 0
    %339 = vmatpush1.bf16.msra.mxu0 %v267
    %340 = vmatprep.subr.bf16.mxu0 0
    %341 = vmatpush1.bf16.msra.mxu0 %v268
    %342 = vmatprep.subr.bf16.mxu0 0
    %343 = vmatpush1.bf16.msra.mxu0 %v269
    %344 = vmatprep.subr.bf16.mxu0 0
    %345 = vmatpush1.bf16.msra.mxu0 %v270
    %346 = vmatprep.subr.bf16.mxu0 0
    %347 = vmatpush1.bf16.msra.mxu0 %v271
    %348 = vmatprep.subr.bf16.mxu0 0
    %349 = vmatpush1.bf16.msra.mxu0 %v272
    %350 = vmatprep.subr.bf16.mxu0 0
    %351 = vmatpush1.bf16.msra.mxu0 %v273
    %352 = vmatprep.subr.bf16.mxu0 0
    %353 = vmatpush1.bf16.msra.mxu0 %v274
    %354 = vmatprep.subr.bf16.mxu0 0
    %355 = vmatpush1.bf16.msra.mxu0 %v275
    %356 = vmatprep.mubr.bf16.mxu0 %v126
    %357 = vmatmul.mubr.bf16.gmra.mrb[0].mxu0 %v118
    %v358 = vpop.f32.mrb[0].mxu0
    %v359 = vadd.f32 0.0, %v358
    %v360 = vpop.f32.mrb[0].mxu0
    %v361 = vpop.f32.mrb[0].mxu0
    %v362 = vpop.f32.mrb[0].mxu0
    %363 = vdwg.mxu0
    %364 = vmatprep.subr.bf16.mxu0 0
    %365 = vmatpush1.bf16.msra.mxu0 %v276
    %366 = vmatprep.subr.bf16.mxu0 0
    %367 = vmatpush1.bf16.msra.mxu0 %v277
    %368 = vmatprep.subr.bf16.mxu0 0
    %369 = vmatpush1.bf16.msra.mxu0 %v278
    %370 = vmatprep.subr.bf16.mxu0 0
    %371 = vmatpush1.bf16.msra.mxu0 %v279
    %372 = vmatprep.subr.bf16.mxu0 0
    %373 = vmatpush1.bf16.msra.mxu0 %v280
    %374 = vmatprep.subr.bf16.mxu0 0
    %375 = vmatpush1.bf16.msra.mxu0 %v281
    %376 = vmatprep.subr.bf16.mxu0 0
    %377 = vmatpush1.bf16.msra.mxu0 %v282
    %378 = vmatprep.subr.bf16.mxu0 0
    %379 = vmatpush1.bf16.msra.mxu0 %v283
    %380 = vmatprep.subr.bf16.mxu0 0
    %381 = vmatpush1.bf16.msra.mxu0 %v284
    %382 = vmatprep.subr.bf16.mxu0 0
    %383 = vmatpush1.bf16.msra.mxu0 %v285
    %384 = vmatprep.subr.bf16.mxu0 0
    %385 = vmatpush1.bf16.msra.mxu0 %v286
    %386 = vmatprep.subr.bf16.mxu0 0
    %387 = vmatpush1.bf16.msra.mxu0 %v287
    %388 = vmatprep.subr.bf16.mxu0 0
    %389 = vmatpush1.bf16.msra.mxu0 %v288
    %390 = vmatprep.subr.bf16.mxu0 0
    %391 = vmatpush1.bf16.msra.mxu0 %v289
    %392 = vmatprep.subr.bf16.mxu0 0
    %393 = vmatpush1.bf16.msra.mxu0 %v290
    %394 = vmatprep.subr.bf16.mxu0 0
    %395 = vmatpush1.bf16.msra.mxu0 %v291
    %396 = vmatprep.mubr.bf16.mxu0 %v127
    %397 = vmatmul.mubr.bf16.gmra.mrb[0].mxu0 %v125
    %v398 = vpop.f32.mrb[0].mxu0
    %v399 = vadd.f32 %v359, %v398
    %v400 = vpop.f32.mrb[0].mxu0
    %v401 = vpop.f32.mrb[0].mxu0
    %v402 = vpop.f32.mrb[0].mxu0
    %403 = vdwg.mxu0
    %v404 = vld [vmem:[%s2] sm:$0xff]
    %v405 = vld [vmem:[%s2 + $0x8] sm:$0xff]
    %v406 = vld [vmem:[%s2 + $0x10] sm:$0xff]
    %v407 = vld [vmem:[%s2 + $0x18] sm:$0xff]
    %v408 = vld [vmem:[%s2 + $0x20] sm:$0xff]
    %v409 = vld [vmem:[%s2 + $0x28] sm:$0xff]
    %v410 = vld [vmem:[%s2 + $0x30] sm:$0xff]
    %v411 = vld [vmem:[%s2 + $0x38] sm:$0xff]
    %v412 = vld [vmem:[%s2 + $0x40] sm:$0xff]
    %v413 = vld [vmem:[%s2 + $0x48] sm:$0xff]
    %v414 = vld [vmem:[%s2 + $0x50] sm:$0xff]
    %v415 = vld [vmem:[%s2 + $0x58] sm:$0xff]
    %v416 = vld [vmem:[%s2 + $0x60] sm:$0xff]
    %v417 = vld [vmem:[%s2 + $0x68] sm:$0xff]
    %v418 = vld [vmem:[%s2 + $0x70] sm:$0xff]
    %v419 = vld [vmem:[%s2 + $0x78] sm:$0xff]
    %v420 = vld [vmem:[%s3] sm:$0x1]
    %v422 = vlaneseq
    %v423 = vshrl.u32 %v422, 7
    %v424 = vsub.s32 0, %v423
    %v425 = vrot.slane %v420, %v424
    %427 = vmatprep.subr.mxu0 0.0
    %428 = vmatpush1.msra.mxu0 %v404
    %429 = vmatprep.subr.mxu0 0.0
    %430 = vmatpush1.msra.mxu0 %v405
    %431 = vmatprep.subr.mxu0 0.0
    %432 = vmatpush1.msra.mxu0 %v406
    %433 = vmatprep.subr.mxu0 0.0
    %434 = vmatpush1.msra.mxu0 %v407
    %435 = vmatprep.subr.mxu0 0.0
    %436 = vmatpush1.msra.mxu0 %v408
    %437 = vmatprep.subr.mxu0 0.0
    %438 = vmatpush1.msra.mxu0 %v409
    %439 = vmatprep.subr.mxu0 0.0
    %440 = vmatpush1.msra.mxu0 %v410
    %441 = vmatprep.subr.mxu0 0.0
    %442 = vmatpush1.msra.mxu0 %v411
    %443 = vmatprep.subr.mxu0 0.0
    %444 = vmatpush1.msra.mxu0 %v412
    %445 = vmatprep.subr.mxu0 0.0
    %446 = vmatpush1.msra.mxu0 %v413
    %447 = vmatprep.subr.mxu0 0.0
    %448 = vmatpush1.msra.mxu0 %v414
    %449 = vmatprep.subr.mxu0 0.0
    %450 = vmatpush1.msra.mxu0 %v415
    %451 = vmatprep.subr.mxu0 0.0
    %452 = vmatpush1.msra.mxu0 %v416
    %453 = vmatprep.subr.mxu0 0.0
    %454 = vmatpush1.msra.mxu0 %v417
    %455 = vmatprep.subr.mxu0 0.0
    %456 = vmatpush1.msra.mxu0 %v418
    %457 = vmatprep.subr.mxu0 0.0
    %458 = vmatpush1.msra.mxu0 %v419
    %459 = vmatprep.subr.mxu0 0.0
    %460 = vmatpush1.msra.mxu0 0.0
    %461 = vmatprep.subr.mxu0 0.0
    %462 = vmatpush1.msra.mxu0 0.0
    %463 = vmatprep.subr.mxu0 0.0
    %464 = vmatpush1.msra.mxu0 0.0
    %465 = vmatprep.subr.mxu0 0.0
    %466 = vmatpush1.msra.mxu0 0.0
    %467 = vmatprep.subr.mxu0 0.0
    %468 = vmatpush1.msra.mxu0 0.0
    %469 = vmatprep.subr.mxu0 0.0
    %470 = vmatpush1.msra.mxu0 0.0
    %471 = vmatprep.subr.mxu0 0.0
    %472 = vmatpush1.msra.mxu0 0.0
    %473 = vmatprep.subr.mxu0 0.0
    %474 = vmatpush1.msra.mxu0 0.0
    %475 = vmatprep.subr.mxu0 0.0
    %476 = vmatpush1.msra.mxu0 0.0
    %477 = vmatprep.subr.mxu0 0.0
    %478 = vmatpush1.msra.mxu0 0.0
    %479 = vmatprep.subr.mxu0 0.0
    %480 = vmatpush1.msra.mxu0 0.0
    %481 = vmatprep.subr.mxu0 0.0
    %482 = vmatpush1.msra.mxu0 0.0
    %483 = vmatprep.subr.mxu0 0.0
    %484 = vmatpush1.msra.mxu0 0.0
    %485 = vmatprep.subr.mxu0 0.0
    %486 = vmatpush1.msra.mxu0 0.0
    %487 = vmatprep.subr.mxu0 0.0
    %488 = vmatpush1.msra.mxu0 0.0
    %489 = vmatprep.subr.mxu0 0.0
    %490 = vmatpush1.msra.mxu0 0.0
    %491 = vmatprep.mubr.f32.mxu0 0.0
    %492 = vmatmul.mubr.f32.gmra.mrb[0].mxu0 %v399
    %v493 = vpop.f32.mrb[0].mxu0
    %v494 = vadd.f32 %v425, %v493
    %v495 = vpop.f32.mrb[0].mxu0
    %496 = vdwg.mxu0
    %v497 = vmax.f32 %v494, 0.0
    %v498 = vld [vmem:[%s4] sm:$0xff]
    %v499 = vld [vmem:[%s4 + $0x8] sm:$0xff]
    %v500 = vld [vmem:[%s4 + $0x10] sm:$0xff]
    %v501 = vld [vmem:[%s4 + $0x18] sm:$0xff]
    %v502 = vld [vmem:[%s5] sm:$0x1]
    %v504 = vlaneseq
    %v505 = vshrl.u32 %v504, 7
    %v506 = vsub.s32 0, %v505
    %v507 = vrot.slane %v502, %v506
    %vm509 = vcmask 261120
    %v511 = vsel %vm509, %v497, 0
    %513 = vmatprep.subr.mxu0 0.0
    %514 = vmatpush1.msra.mxu0 %v498
    %515 = vmatprep.subr.mxu0 0.0
    %516 = vmatpush1.msra.mxu0 %v499
    %517 = vmatprep.subr.mxu0 0.0
    %518 = vmatpush1.msra.mxu0 %v500
    %519 = vmatprep.subr.mxu0 0.0
    %520 = vmatpush1.msra.mxu0 %v501
    %521 = vmatprep.subr.mxu0 0.0
    %522 = vmatpush1.msra.mxu0 0.0
    %523 = vmatprep.subr.mxu0 0.0
    %524 = vmatpush1.msra.mxu0 0.0
    %525 = vmatprep.subr.mxu0 0.0
    %526 = vmatpush1.msra.mxu0 0.0
    %527 = vmatprep.subr.mxu0 0.0
    %528 = vmatpush1.msra.mxu0 0.0
    %529 = vmatprep.subr.mxu0 0.0
    %530 = vmatpush1.msra.mxu0 0.0
    %531 = vmatprep.subr.mxu0 0.0
    %532 = vmatpush1.msra.mxu0 0.0
    %533 = vmatprep.subr.mxu0 0.0
    %534 = vmatpush1.msra.mxu0 0.0
    %535 = vmatprep.subr.mxu0 0.0
    %536 = vmatpush1.msra.mxu0 0.0
    %537 = vmatprep.subr.mxu0 0.0
    %538 = vmatpush1.msra.mxu0 0.0
    %539 = vmatprep.subr.mxu0 0.0
    %540 = vmatpush1.msra.mxu0 0.0
    %541 = vmatprep.subr.mxu0 0.0
    %542 = vmatpush1.msra.mxu0 0.0
    %543 = vmatprep.subr.mxu0 0.0
    %544 = vmatpush1.msra.mxu0 0.0
    %545 = vmatprep.subr.mxu0 0.0
    %546 = vmatpush1.msra.mxu0 0.0
    %547 = vmatprep.subr.mxu0 0.0
    %548 = vmatpush1.msra.mxu0 0.0
    %549 = vmatprep.subr.mxu0 0.0
    %550 = vmatpush1.msra.mxu0 0.0
    %551 = vmatprep.subr.mxu0 0.0
    %552 = vmatpush1.msra.mxu0 0.0
    %553 = vmatprep.subr.mxu0 0.0
    %554 = vmatpush1.msra.mxu0 0.0
    %555 = vmatprep.subr.mxu0 0.0
    %556 = vmatpush1.msra.mxu0 0.0
    %557 = vmatprep.subr.mxu0 0.0
    %558 = vmatpush1.msra.mxu0 0.0
    %559 = vmatprep.subr.mxu0 0.0
    %560 = vmatpush1.msra.mxu0 0.0
    %561 = vmatprep.subr.mxu0 0.0
    %562 = vmatpush1.msra.mxu0 0.0
    %563 = vmatprep.subr.mxu0 0.0
    %564 = vmatpush1.msra.mxu0 0.0
    %565 = vmatprep.subr.mxu0 0.0
    %566 = vmatpush1.msra.mxu0 0.0
    %567 = vmatprep.subr.mxu0 0.0
    %568 = vmatpush1.msra.mxu0 0.0
    %569 = vmatprep.subr.mxu0 0.0
    %570 = vmatpush1.msra.mxu0 0.0
    %571 = vmatprep.subr.mxu0 0.0
    %572 = vmatpush1.msra.mxu0 0.0
    %573 = vmatprep.subr.mxu0 0.0
    %574 = vmatpush1.msra.mxu0 0.0
    %575 = vmatprep.subr.mxu0 0.0
    %576 = vmatpush1.msra.mxu0 0.0
    %577 = vmatprep.mubr.f32.mxu0 0.0
    %578 = vmatmul.mubr.f32.gmra.mrb[0].mxu0 %v511
    %v579 = vpop.f32.mrb[0].mxu0
    %v580 = vadd.f32 %v507, %v579
    %v581 = vpop.f32.mrb[0].mxu0
    %582 = vdwg.mxu0
    %v583 = vmax.f32 %v580, 0.0
    %v584 = vld [vmem:[%s6] sm:$0xff]
    %v585 = vld [vmem:[%s6 + $0x8] sm:$0xff]
    %v586 = vld [vmem:[%s7] sm:$0x1]
    %v588 = vlaneseq
    %v589 = vshrl.u32 %v588, 7
    %v590 = vsub.s32 0, %v589
    %v591 = vrot.slane %v586, %v590
    %vm593 = vcmask 130048
    %v595 = vsel %vm593, %v583, 0
    %597 = vmatprep.subr.mxu0 0.0
    %598 = vmatpush1.msra.mxu0 %v584
    %599 = vmatprep.subr.mxu0 0.0
    %600 = vmatpush1.msra.mxu0 %v585
    %601 = vmatprep.subr.mxu0 0.0
    %602 = vmatpush1.msra.mxu0 0.0
    %603 = vmatprep.subr.mxu0 0.0
    %604 = vmatpush1.msra.mxu0 0.0
    %605 = vmatprep.subr.mxu0 0.0
    %606 = vmatpush1.msra.mxu0 0.0
    %607 = vmatprep.subr.mxu0 0.0
    %608 = vmatpush1.msra.mxu0 0.0
    %609 = vmatprep.subr.mxu0 0.0
    %610 = vmatpush1.msra.mxu0 0.0
    %611 = vmatprep.subr.mxu0 0.0
    %612 = vmatpush1.msra.mxu0 0.0
    %613 = vmatprep.subr.mxu0 0.0
    %614 = vmatpush1.msra.mxu0 0.0
    %615 = vmatprep.subr.mxu0 0.0
    %616 = vmatpush1.msra.mxu0 0.0
    %617 = vmatprep.subr.mxu0 0.0
    %618 = vmatpush1.msra.mxu0 0.0
    %619 = vmatprep.subr.mxu0 0.0
    %620 = vmatpush1.msra.mxu0 0.0
    %621 = vmatprep.subr.mxu0 0.0
    %622 = vmatpush1.msra.mxu0 0.0
    %623 = vmatprep.subr.mxu0 0.0
    %624 = vmatpush1.msra.mxu0 0.0
    %625 = vmatprep.subr.mxu0 0.0
    %626 = vmatpush1.msra.mxu0 0.0
    %627 = vmatprep.subr.mxu0 0.0
    %628 = vmatpush1.msra.mxu0 0.0
    %629 = vmatprep.subr.mxu0 0.0
    %630 = vmatpush1.msra.mxu0 0.0
    %631 = vmatprep.subr.mxu0 0.0
    %632 = vmatpush1.msra.mxu0 0.0
    %633 = vmatprep.subr.mxu0 0.0
    %634 = vmatpush1.msra.mxu0 0.0
    %635 = vmatprep.subr.mxu0 0.0
    %636 = vmatpush1.msra.mxu0 0.0
    %637 = vmatprep.subr.mxu0 0.0
    %638 = vmatpush1.msra.mxu0 0.0
    %639 = vmatprep.subr.mxu0 0.0
    %640 = vmatpush1.msra.mxu0 0.0
    %641 = vmatprep.subr.mxu0 0.0
    %642 = vmatpush1.msra.mxu0 0.0
    %643 = vmatprep.subr.mxu0 0.0
    %644 = vmatpush1.msra.mxu0 0.0
    %645 = vmatprep.subr.mxu0 0.0
    %646 = vmatpush1.msra.mxu0 0.0
    %647 = vmatprep.subr.mxu0 0.0
    %648 = vmatpush1.msra.mxu0 0.0
    %649 = vmatprep.subr.mxu0 0.0
    %650 = vmatpush1.msra.mxu0 0.0
    %651 = vmatprep.subr.mxu0 0.0
    %652 = vmatpush1.msra.mxu0 0.0
    %653 = vmatprep.subr.mxu0 0.0
    %654 = vmatpush1.msra.mxu0 0.0
    %655 = vmatprep.subr.mxu0 0.0
    %656 = vmatpush1.msra.mxu0 0.0
    %657 = vmatprep.subr.mxu0 0.0
    %658 = vmatpush1.msra.mxu0 0.0
    %659 = vmatprep.subr.mxu0 0.0
    %660 = vmatpush1.msra.mxu0 0.0
    %661 = vmatprep.mubr.f32.mxu0 0.0
    %662 = vmatmul.mubr.f32.gmra.mrb[0].mxu0 %v595
    %v663 = vpop.f32.mrb[0].mxu0
    %v664 = vadd.f32 %v591, %v663
    %v665 = vpop.f32.mrb[0].mxu0
    %666 = vdwg.mxu0
    %vm667 = vcmask 27648
    %668 = vst.msk [vmem:[#allocation5] sm:$0xf] %vm667, %v664
    // Predicated region
    $region38: #{simple_gat_forward.9} parent=1 // pred_check
      _
    $region39: #{simple_gat_forward.9} parent=1 // pred_check_branch
      %670 = sbr.rel (0) target = $region41
    $region40: #{simple_gat_forward.9} parent=1 // pred_region
      %s672 = ssub.s32 64, 64
      %673 = vsyncadd [#allocation4], %s672
      %s675 = sshll.u32 [#allocation5], 4
      %s676 = int_to_ptr.vmem [resolvable:$true] %s675
      %678 = dma.vmem_to_hbm [thread:$0]  %s676, 64, %s8, [#allocation4]
    $region41: #{simple_gat_forward.9} parent=1 // pred_fallthru
      _
    // Predicated region
    $region42: #{simple_gat_forward.9} parent=1 // pred_check
      _
    $region43: #{simple_gat_forward.9} parent=1 // pred_check_branch
      %680 = sbr.rel (0) target = $region45
    $region44: #{simple_gat_forward.9} parent=1 // pred_region
      %681 = dma.done [#allocation4], 64
    $region45: #{simple_gat_forward.9} parent=1 // pred_fallthru
      _
    %682 = vsyncpa [#allocation3], 1
    %683 = vsyncpa [#allocation4], 1

</llo_original>
